<compile_context>
chip_gen: v6e
topology: v6e:2x2x1
jax: 0.10.0
libtpu: 0.0.40
codegen_flags: <defaults>
</compile_context>

<pallas_src>
import functools

import jax
import jax.numpy as jnp
from jax import lax
from jax.experimental import pallas as pl
from jax.experimental.pallas import tpu as pltpu

NEG_INF = float("-inf")

_LAYER_W_KEYS = ("wq", "wk", "wv", "bq", "bk", "bv", "wo", "bo",
                 "g1", "be1", "g2", "be2", "w1", "b1", "w2", "b2")


# ----------------------------------------------------------------------------
# Fused Pallas kernel: all layers + output head in one call
# ----------------------------------------------------------------------------
def _fused_forward_kernel(x_ref, pad_ref,
                          wq_ref, wk_ref, wv_ref, bq_ref, bk_ref, bv_ref,
                          wo_ref, bo_ref, g1_ref, be1_ref, g2_ref, be2_ref,
                          w1_ref, b1_ref, w2_ref, b2_ref,
                          wcat_ref, bcat_ref,
                          o_ref, ctx_ref, *, num_heads):
    B, Tp, E = x_ref.shape
    BT = B * Tp
    H = num_heads
    Dh = E // H
    L = wq_ref.shape[0]
    CP = o_ref.shape[-1]
    scale = 1.0 / (Dh ** 0.5)

    # ---- attention bias built in-kernel: causal + key-padding (additive) ----
    row = lax.broadcasted_iota(jnp.int32, (Tp, Tp), 0)
    col = lax.broadcasted_iota(jnp.int32, (Tp, Tp), 1)
    causal = jnp.where(col <= row, 0.0, NEG_INF).astype(jnp.float32)   # (Tp, Tp)
    keypad = jnp.where(pad_ref[...] > 0.5, NEG_INF, 0.0)               # (B, Tp)
    bias = causal[None, :, :] + keypad[:, None, :]                     # (B, Tp, Tp)

    x = x_ref[...].reshape(BT, E)                                      # (B*Tp, E)

    for l in range(L):
        # QKV projections on the full (B*Tp, E) slab; scale folded into q once.
        q = (jnp.dot(x, wq_ref[l], preferred_element_type=jnp.float32)
             + bq_ref[l]) * scale
        k = jnp.dot(x, wk_ref[l], preferred_element_type=jnp.float32) + bk_ref[l]
        v = jnp.dot(x, wv_ref[l], preferred_element_type=jnp.float32) + bv_ref[l]
        q3 = q.reshape(B, Tp, E)
        k3 = k.reshape(B, Tp, E)
        v3 = v.reshape(B, Tp, E)

        # Per-head attention, batch folded into the einsum batch dim;
        # context written into VMEM scratch slices (no concatenate relayout).
        for h in range(H):
            sl = slice(h * Dh, (h + 1) * Dh)
            s = jnp.einsum("bqd,bkd->bqk", q3[:, :, sl], k3[:, :, sl],
                           preferred_element_type=jnp.float32) + bias
            s = s - jnp.max(s, axis=-1, keepdims=True)
            p = jnp.exp(s)
            p = p * pl.reciprocal(jnp.sum(p, axis=-1, keepdims=True), approx=False)
            ctx_ref[:, :, sl] = jnp.einsum("bqk,bkd->bqd", p, v3[:, :, sl],
                                           preferred_element_type=jnp.float32)

        attn = (jnp.dot(ctx_ref[...].reshape(BT, E), wo_ref[l],
                        preferred_element_type=jnp.float32) + bo_ref[l])

        # residual + LayerNorm 1 (post-norm, eps=1e-5)
        h1 = x + attn
        mu = jnp.mean(h1, axis=-1, keepdims=True)
        var = jnp.mean((h1 - mu) ** 2, axis=-1, keepdims=True)
        h1 = (h1 - mu) * lax.rsqrt(var + 1e-5) * g1_ref[l] + be1_ref[l]

        # FFN: linear -> ReLU -> linear
        ff = jnp.maximum(
            jnp.dot(h1, w1_ref[l], preferred_element_type=jnp.float32) + b1_ref[l],
            0.0)
        ff = jnp.dot(ff, w2_ref[l], preferred_element_type=jnp.float32) + b2_ref[l]

        # residual + LayerNorm 2
        h2 = h1 + ff
        mu2 = jnp.mean(h2, axis=-1, keepdims=True)
        var2 = jnp.mean((h2 - mu2) ** 2, axis=-1, keepdims=True)
        x = (h2 - mu2) * lax.rsqrt(var2 + 1e-5) * g2_ref[l] + be2_ref[l]

    # ---- output head: Linear(E -> CP) + log_softmax (padded cols carry -1e30
    # bias so they contribute exp(.) == 0 and are sliced away by the wrapper) --
    logits = (jnp.dot(x, wcat_ref[...], preferred_element_type=jnp.float32)
              + bcat_ref[...])                                          # (BT, CP)
    m = jnp.max(logits, axis=-1, keepdims=True)
    z = logits - m
    lse = jnp.log(jnp.sum(jnp.exp(z), axis=-1, keepdims=True))
    o_ref[...] = (z - lse).reshape(B, Tp, CP)


# ----------------------------------------------------------------------------
# Shared embedding glue (gathers stay in JAX)
# ----------------------------------------------------------------------------
def _embed(params, cat_seq, x_seq, y_seq, z_seq, o_seq):
    S = cat_seq.shape[1]
    return (jnp.take(params["cat_table"], cat_seq, axis=0)
            + jnp.take(params["x_table"], x_seq, axis=0)
            + jnp.take(params["y_table"], y_seq, axis=0)
            + jnp.take(params["z_table"], z_seq, axis=0)
            + jnp.take(params["ori_table"], o_seq, axis=0)
            + params["pos_table"][None, :S, :])


# ----------------------------------------------------------------------------
# Fused forward wrapper
# ----------------------------------------------------------------------------
def forward(params, cfg, cat_seq, x_seq, y_seq, z_seq, o_seq):
    B, S = cat_seq.shape
    T = S - 1
    E = cfg["emb_dim"]
    C = cfg["cat_start"]
    Tp = ((T + 7) // 8) * 8          # pad seq to sublane multiple
    CP = ((C + 127) // 128) * 128    # pad class dim to lane width

    emb = _embed(params, cat_seq, x_seq, y_seq, z_seq, o_seq)
    tgt = emb[:, :T, :].astype(jnp.float32)                     # drop last pos
    x = jnp.pad(tgt, ((0, 0), (0, Tp - T), (0, 0)))             # (B, Tp, E)

    pad = (cat_seq[:, :T] == cfg["cat_pad"]).astype(jnp.float32)
    padf = jnp.pad(pad, ((0, 0), (0, Tp - T)), constant_values=1.0)  # (B, Tp)

    # Stack per-layer weights along a leading L axis (static in-kernel indexing).
    stacked = [jnp.stack([lay[k] for lay in params["layers"]])
               for k in _LAYER_W_KEYS]

    wcat_p = jnp.pad(params["wcat"], ((0, 0), (0, CP - C)))
    bcat_p = jnp.pad(params["bcat"], ((0, 0), (0, CP - C)),
                     constant_values=-1e30)

    out = pl.pallas_call(
        functools.partial(_fused_forward_kernel, num_heads=cfg["num_heads"]),
        out_shape=jax.ShapeDtypeStruct((B, Tp, CP), jnp.float32),
        scratch_shapes=[pltpu.VMEM((B, Tp, E), jnp.float32)],
        compiler_params=pltpu.CompilerParams(vmem_limit_bytes=32 * 1024 * 1024),
    )(x, padf, *stacked, wcat_p, bcat_p)

    # TODO(synk): at realistic dims (E=512, F=2048) stream per-layer weights
    # from HBM with double-buffered DMA instead of keeping all layers resident
    # (v7x 64 MiB VMEM), and use bf16 MXU operands; unnecessary at these sizes.
    return out[:, :T, :C]


# ----------------------------------------------------------------------------
# Parameter init (deterministic, synthetic)
# ----------------------------------------------------------------------------
def init_params(key, cfg):
    E, F, L, C = cfg["emb_dim"], cfg["dim_fwd"], cfg["num_blocks"], cfg["cat_start"]
    keys = iter(jax.random.split(key, 128))

    def nrm(shape, s=0.02):
        return s * jax.random.normal(next(keys), shape, jnp.float32)

    params = {}
    params["cat_table"] = nrm((cfg["cat_start"] + 1, E)).at[cfg["cat_pad"]].set(0.0)
    params["pos_table"] = nrm((cfg["max_seq_len"], E))
    for n in ("x", "y", "z"):
        params[f"{n}_table"] = nrm((cfg["coor_start"] + 1, E)).at[cfg["coor_pad"]].set(0.0)
    params["ori_table"] = nrm((cfg["orient_start"] + 1, E)).at[cfg["orient_pad"]].set(0.0)

    layers = []
    for _ in range(L):
        layers.append(dict(
            wq=nrm((E, E)), wk=nrm((E, E)), wv=nrm((E, E)),
            bq=nrm((1, E)), bk=nrm((1, E)), bv=nrm((1, E)),
            wo=nrm((E, E)), bo=nrm((1, E)),
            g1=jnp.ones((1, E), jnp.float32), be1=jnp.zeros((1, E), jnp.float32),
            g2=jnp.ones((1, E), jnp.float32), be2=jnp.zeros((1, E), jnp.float32),
            w1=nrm((E, F)), b1=nrm((1, F)),
            w2=nrm((F, E)), b2=nrm((1, E)),
        ))
    params["layers"] = layers
    params["wcat"] = nrm((E, C))
    params["bcat"] = nrm((1, C))
    return params


# ----------------------------------------------------------------------------
# Pure-JAX reference (same math, for validation)
# ----------------------------------------------------------------------------
def _ln(x, g, b):
    mu = jnp.mean(x, axis=-1, keepdims=True)
    var = jnp.mean((x - mu) ** 2, axis=-1, keepdims=True)
    return (x - mu) / jnp.sqrt(var + 1e-5) * g + b


def reference_forward(params, cfg, cat_seq, x_seq, y_seq, z_seq, o_seq):
    B, S = cat_seq.shape
    T = S - 1
    emb = _embed(params, cat_seq, x_seq, y_seq, z_seq, o_seq)
    x = emb[:, :T, :].astype(jnp.float32)
    i = jnp.arange(T)[:, None]
    j = jnp.arange(T)[None, :]
    causal = jnp.where(j <= i, 0.0, NEG_INF).astype(jnp.float32)
    pad = cat_seq[:, :T] == cfg["cat_pad"]
    bias = causal[None] + jnp.where(pad[:, None, :], NEG_INF, 0.0).astype(jnp.float32)

    H = cfg["num_heads"]
    _, _, E = x.shape
    Dh = E // H
    for p in params["layers"]:
        q = x @ p["wq"] + p["bq"]
        k = x @ p["wk"] + p["bk"]
        v = x @ p["wv"] + p["bv"]
        qh = q.reshape(B, T, H, Dh).transpose(0, 2, 1, 3) * (1.0 / Dh ** 0.5)
        kh = k.reshape(B, T, H, Dh).transpose(0, 2, 1, 3)
        vh = v.reshape(B, T, H, Dh).transpose(0, 2, 1, 3)
        s = qh @ kh.transpose(0, 1, 3, 2) + bias[:, None]
        a = jax.nn.softmax(s, axis=-1)
        ctx = (a @ vh).transpose(0, 2, 1, 3).reshape(B, T, E)
        h1 = _ln(x + ctx @ p["wo"] + p["bo"], p["g1"], p["be1"])
        ff = jnp.maximum(h1 @ p["w1"] + p["b1"], 0.0) @ p["w2"] + p["b2"]
        x = _ln(h1 + ff, p["g2"], p["be2"])
    logits = x @ params["wcat"] + params["bcat"]
    return jax.nn.log_softmax(logits, axis=-1)


# ----------------------------------------------------------------------------
if __name__ == "__main__":
    cfg = dict(emb_dim=32, num_heads=4, dim_fwd=64, num_blocks=2, max_seq_len=8,
               cat_start=10, cat_pad=9,
               coor_start=12, coor_pad=11,
               orient_start=6, orient_pad=5)

    key = jax.random.PRNGKey(0)
    pkey, k1, k2, k3, k4, k5 = jax.random.split(key, 6)
    params = init_params(pkey, cfg)

    B, S = 2, cfg["max_seq_len"]
    cat_seq = jax.random.randint(k1, (B, S), 0, cfg["cat_start"] - 1)
    cat_seq = cat_seq.at[0, S - 2].set(cfg["cat_pad"])   # exercise key-padding mask
    x_seq = jax.random.randint(k2, (B, S), 0, cfg["coor_start"] - 1)
    y_seq = jax.random.randint(k3, (B, S), 0, cfg["coor_start"] - 1)
    z_seq = jax.random.randint(k4, (B, S), 0, cfg["coor_start"] - 1)
    o_seq = jax.random.randint(k5, (B, S), 0, cfg["orient_start"] - 1)

    logprobs = forward(params, cfg, cat_seq, x_seq, y_seq, z_seq, o_seq)
    logprobs = jax.block_until_ready(logprobs)

    ref = reference_forward(params, cfg, cat_seq, x_seq, y_seq, z_seq, o_seq)

    assert logprobs.shape == (B, S - 1, cfg["cat_start"])
    assert bool(jnp.all(jnp.isfinite(logprobs)))
    assert bool(jnp.allclose(logprobs, ref, atol=1e-4, rtol=1e-4))
    print("KERNEL_OK")
</pallas_src>

<mosaic_0001>
module attributes {stable_mosaic.version = 11 : i64} {
  func.func @_fused_forward_kernel(%arg0: memref<2x8x32xf32, #tpu.memory_space<vmem>>, %arg1: memref<2x8xf32, #tpu.memory_space<vmem>>, %arg2: memref<2x32x32xf32, #tpu.memory_space<vmem>>, %arg3: memref<2x32x32xf32, #tpu.memory_space<vmem>>, %arg4: memref<2x32x32xf32, #tpu.memory_space<vmem>>, %arg5: memref<2x1x32xf32, #tpu.memory_space<vmem>>, %arg6: memref<2x1x32xf32, #tpu.memory_space<vmem>>, %arg7: memref<2x1x32xf32, #tpu.memory_space<vmem>>, %arg8: memref<2x32x32xf32, #tpu.memory_space<vmem>>, %arg9: memref<2x1x32xf32, #tpu.memory_space<vmem>>, %arg10: memref<2x1x32xf32, #tpu.memory_space<vmem>>, %arg11: memref<2x1x32xf32, #tpu.memory_space<vmem>>, %arg12: memref<2x1x32xf32, #tpu.memory_space<vmem>>, %arg13: memref<2x1x32xf32, #tpu.memory_space<vmem>>, %arg14: memref<2x32x64xf32, #tpu.memory_space<vmem>>, %arg15: memref<2x1x64xf32, #tpu.memory_space<vmem>>, %arg16: memref<2x64x32xf32, #tpu.memory_space<vmem>>, %arg17: memref<2x1x32xf32, #tpu.memory_space<vmem>>, %arg18: memref<32x128xf32, #tpu.memory_space<vmem>>, %arg19: memref<1x128xf32, #tpu.memory_space<vmem>>, %arg20: memref<2x8x128xf32, #tpu.memory_space<vmem>>, %arg21: memref<2x8x32xf32, #tpu.memory_space<vmem>>) attributes {dimension_semantics = [], scalar_prefetch = 0 : i64, scratch_operands = 1 : i64, tpu.core_type = #tpu.core_type<tc>} {
    %0 = tpu.iota {dimensions = array<i32: 0>} : vector<8x8xi32>
    %1 = tpu.iota {dimensions = array<i32: 1>} : vector<8x8xi32>
    %2 = arith.cmpi sle, %1, %0 : vector<8x8xi32>
    %cst = arith.constant 0.000000e+00 : f32
    %cst_0 = arith.constant 0xFF800000 : f32
    %3 = vector.broadcast %cst : f32 to vector<8x8xf32>
    %4 = vector.broadcast %cst_0 : f32 to vector<8x8xf32>
    %5 = arith.select %2, %3, %4 : vector<8x8xi1>, vector<8x8xf32>
    %c0 = arith.constant 0 : index
    %c0_1 = arith.constant 0 : index
    %6 = vector.load %arg1[%c0, %c0_1] : memref<2x8xf32, #tpu.memory_space<vmem>>, vector<2x8xf32>
    %cst_2 = arith.constant 5.000000e-01 : f32
    %7 = vector.broadcast %cst_2 : f32 to vector<2x8xf32>
    %8 = arith.cmpf ogt, %6, %7 : vector<2x8xf32>
    %cst_3 = arith.constant 0xFF800000 : f32
    %cst_4 = arith.constant 0.000000e+00 : f32
    %9 = vector.broadcast %cst_3 : f32 to vector<2x8xf32>
    %10 = vector.broadcast %cst_4 : f32 to vector<2x8xf32>
    %11 = arith.select %8, %9, %10 : vector<2x8xi1>, vector<2x8xf32>
    %12 = vector.shape_cast %5 : vector<8x8xf32> to vector<1x8x8xf32>
    %13 = vector.shape_cast %11 : vector<2x8xf32> to vector<2x1x8xf32>
    %14 = vector.broadcast %12 : vector<1x8x8xf32> to vector<2x8x8xf32>
    %15 = vector.broadcast %13 : vector<2x1x8xf32> to vector<2x8x8xf32>
    %16 = arith.addf %14, %15 : vector<2x8x8xf32>
    %c0_5 = arith.constant 0 : index
    %c0_6 = arith.constant 0 : index
    %c0_7 = arith.constant 0 : index
    %17 = vector.load %arg0[%c0_5, %c0_6, %c0_7] : memref<2x8x32xf32, #tpu.memory_space<vmem>>, vector<2x8x32xf32>
    %18 = vector.shape_cast %17 : vector<2x8x32xf32> to vector<16x32xf32>
    %c0_8 = arith.constant 0 : index
    %c0_9 = arith.constant 0 : index
    %c0_10 = arith.constant 0 : index
    %19 = vector.load %arg2[%c0_8, %c0_9, %c0_10] : memref<2x32x32xf32, #tpu.memory_space<vmem>>, vector<1x32x32xf32>
    %20 = vector.shape_cast %19 : vector<1x32x32xf32> to vector<32x32xf32>
    %cst_11 = arith.constant dense<0.000000e+00> : vector<16x32xf32>
    %21 = tpu.matmul %18, %20, %cst_11 {dimension_numbers = #tpu.dot_dimension_numbers<[1], [0], [0], [1], [0, 0, 1, 1], [], []>} : vector<16x32xf32>, vector<32x32xf32>, vector<16x32xf32> -> vector<16x32xf32>
    %c0_12 = arith.constant 0 : index
    %c0_13 = arith.constant 0 : index
    %c0_14 = arith.constant 0 : index
    %22 = vector.load %arg5[%c0_12, %c0_13, %c0_14] : memref<2x1x32xf32, #tpu.memory_space<vmem>>, vector<1x1x32xf32>
    %23 = vector.shape_cast %22 : vector<1x1x32xf32> to vector<1x32xf32>
    %24 = vector.broadcast %23 : vector<1x32xf32> to vector<16x32xf32>
    %25 = arith.addf %21, %24 : vector<16x32xf32>
    %cst_15 = arith.constant 0.353553385 : f32
    %26 = vector.broadcast %cst_15 : f32 to vector<16x32xf32>
    %27 = arith.mulf %25, %26 : vector<16x32xf32>
    %c0_16 = arith.constant 0 : index
    %c0_17 = arith.constant 0 : index
    %c0_18 = arith.constant 0 : index
    %28 = vector.load %arg3[%c0_16, %c0_17, %c0_18] : memref<2x32x32xf32, #tpu.memory_space<vmem>>, vector<1x32x32xf32>
    %29 = vector.shape_cast %28 : vector<1x32x32xf32> to vector<32x32xf32>
    %cst_19 = arith.constant dense<0.000000e+00> : vector<16x32xf32>
    %30 = tpu.matmul %18, %29, %cst_19 {dimension_numbers = #tpu.dot_dimension_numbers<[1], [0], [0], [1], [0, 0, 1, 1], [], []>} : vector<16x32xf32>, vector<32x32xf32>, vector<16x32xf32> -> vector<16x32xf32>
    %c0_20 = arith.constant 0 : index
    %c0_21 = arith.constant 0 : index
    %c0_22 = arith.constant 0 : index
    %31 = vector.load %arg6[%c0_20, %c0_21, %c0_22] : memref<2x1x32xf32, #tpu.memory_space<vmem>>, vector<1x1x32xf32>
    %32 = vector.shape_cast %31 : vector<1x1x32xf32> to vector<1x32xf32>
    %33 = vector.broadcast %32 : vector<1x32xf32> to vector<16x32xf32>
    %34 = arith.addf %30, %33 : vector<16x32xf32>
    %c0_23 = arith.constant 0 : index
    %c0_24 = arith.constant 0 : index
    %c0_25 = arith.constant 0 : index
    %35 = vector.load %arg4[%c0_23, %c0_24, %c0_25] : memref<2x32x32xf32, #tpu.memory_space<vmem>>, vector<1x32x32xf32>
    %36 = vector.shape_cast %35 : vector<1x32x32xf32> to vector<32x32xf32>
    %cst_26 = arith.constant dense<0.000000e+00> : vector<16x32xf32>
    %37 = tpu.matmul %18, %36, %cst_26 {dimension_numbers = #tpu.dot_dimension_numbers<[1], [0], [0], [1], [0, 0, 1, 1], [], []>} : vector<16x32xf32>, vector<32x32xf32>, vector<16x32xf32> -> vector<16x32xf32>
    %c0_27 = arith.constant 0 : index
    %c0_28 = arith.constant 0 : index
    %c0_29 = arith.constant 0 : index
    %38 = vector.load %arg7[%c0_27, %c0_28, %c0_29] : memref<2x1x32xf32, #tpu.memory_space<vmem>>, vector<1x1x32xf32>
    %39 = vector.shape_cast %38 : vector<1x1x32xf32> to vector<1x32xf32>
    %40 = vector.broadcast %39 : vector<1x32xf32> to vector<16x32xf32>
    %41 = arith.addf %37, %40 : vector<16x32xf32>
    %42 = vector.shape_cast %27 : vector<16x32xf32> to vector<2x8x32xf32>
    %43 = vector.shape_cast %34 : vector<16x32xf32> to vector<2x8x32xf32>
    %44 = vector.shape_cast %41 : vector<16x32xf32> to vector<2x8x32xf32>
    %45 = vector.extract_strided_slice %42 {offsets = [0, 0, 0], sizes = [2, 8, 8], strides = [1, 1, 1]} : vector<2x8x32xf32> to vector<2x8x8xf32>
    %46 = vector.extract_strided_slice %43 {offsets = [0, 0, 0], sizes = [2, 8, 8], strides = [1, 1, 1]} : vector<2x8x32xf32> to vector<2x8x8xf32>
    "tpu.trace_start"() <{level = 10 : i32, message = "bqd,bkd->bqk"}> : () -> ()
    %cst_30 = arith.constant dense<0.000000e+00> : vector<2x8x8xf32>
    %47 = tpu.matmul %45, %46, %cst_30 {dimension_numbers = #tpu.dot_dimension_numbers<[2], [2], [1], [1], [0, 0, 0, 1, 1, 1], [0], [0]>} : vector<2x8x8xf32>, vector<2x8x8xf32>, vector<2x8x8xf32> -> vector<2x8x8xf32>
    "tpu.trace_stop"() : () -> ()
    %48 = arith.addf %47, %16 : vector<2x8x8xf32>
    %cst_31 = arith.constant dense<0xFF800000> : vector<2x8xf32>
    %49 = vector.multi_reduction <maximumf>, %48, %cst_31 [2] : vector<2x8x8xf32> to vector<2x8xf32>
    %50 = vector.shape_cast %49 : vector<2x8xf32> to vector<2x8x1xf32>
    %51 = vector.broadcast %50 : vector<2x8x1xf32> to vector<2x8x8xf32>
    %52 = arith.subf %48, %51 : vector<2x8x8xf32>
    %53 = math.exp %52 : vector<2x8x8xf32>
    %cst_32 = arith.constant dense<0.000000e+00> : vector<2x8xf32>
    %54 = vector.multi_reduction <add>, %53, %cst_32 [2] : vector<2x8x8xf32> to vector<2x8xf32>
    %55 = vector.shape_cast %54 : vector<2x8xf32> to vector<2x8x1xf32>
    %56 = tpu.reciprocal %55 : vector<2x8x1xf32> -> vector<2x8x1xf32>
    %57 = vector.broadcast %56 : vector<2x8x1xf32> to vector<2x8x8xf32>
    %58 = arith.mulf %53, %57 : vector<2x8x8xf32>
    %59 = vector.extract_strided_slice %44 {offsets = [0, 0, 0], sizes = [2, 8, 8], strides = [1, 1, 1]} : vector<2x8x32xf32> to vector<2x8x8xf32>
    "tpu.trace_start"() <{level = 10 : i32, message = "bqk,bkd->bqd"}> : () -> ()
    %cst_33 = arith.constant dense<0.000000e+00> : vector<2x8x8xf32>
    %60 = tpu.matmul %58, %59, %cst_33 {dimension_numbers = #tpu.dot_dimension_numbers<[2], [1], [1], [2], [0, 0, 0, 1, 1, 2], [0], [0]>} : vector<2x8x8xf32>, vector<2x8x8xf32>, vector<2x8x8xf32> -> vector<2x8x8xf32>
    "tpu.trace_stop"() : () -> ()
    %c0_34 = arith.constant 0 : index
    %c0_35 = arith.constant 0 : index
    %c0_36 = arith.constant 0 : index
    %61 = vector.load %arg21[%c0_34, %c0_35, %c0_36] : memref<2x8x32xf32, #tpu.memory_space<vmem>>, vector<2x8x8xf32>
    tpu.vector_store %arg21[%c0_34, %c0_35, %c0_36], %60 {strides = array<i32>} : memref<2x8x32xf32, #tpu.memory_space<vmem>>, vector<2x8x8xf32>,
    %62 = vector.extract_strided_slice %42 {offsets = [0, 0, 8], sizes = [2, 8, 8], strides = [1, 1, 1]} : vector<2x8x32xf32> to vector<2x8x8xf32>
    %63 = vector.extract_strided_slice %43 {offsets = [0, 0, 8], sizes = [2, 8, 8], strides = [1, 1, 1]} : vector<2x8x32xf32> to vector<2x8x8xf32>
    "tpu.trace_start"() <{level = 10 : i32, message = "bqd,bkd->bqk"}> : () -> ()
    %cst_37 = arith.constant dense<0.000000e+00> : vector<2x8x8xf32>
    %64 = tpu.matmul %62, %63, %cst_37 {dimension_numbers = #tpu.dot_dimension_numbers<[2], [2], [1], [1], [0, 0, 0, 1, 1, 1], [0], [0]>} : vector<2x8x8xf32>, vector<2x8x8xf32>, vector<2x8x8xf32> -> vector<2x8x8xf32>
    "tpu.trace_stop"() : () -> ()
    %65 = arith.addf %64, %16 : vector<2x8x8xf32>
    %cst_38 = arith.constant dense<0xFF800000> : vector<2x8xf32>
    %66 = vector.multi_reduction <maximumf>, %65, %cst_38 [2] : vector<2x8x8xf32> to vector<2x8xf32>
    %67 = vector.shape_cast %66 : vector<2x8xf32> to vector<2x8x1xf32>
    %68 = vector.broadcast %67 : vector<2x8x1xf32> to vector<2x8x8xf32>
    %69 = arith.subf %65, %68 : vector<2x8x8xf32>
    %70 = math.exp %69 : vector<2x8x8xf32>
    %cst_39 = arith.constant dense<0.000000e+00> : vector<2x8xf32>
    %71 = vector.multi_reduction <add>, %70, %cst_39 [2] : vector<2x8x8xf32> to vector<2x8xf32>
    %72 = vector.shape_cast %71 : vector<2x8xf32> to vector<2x8x1xf32>
    %73 = tpu.reciprocal %72 : vector<2x8x1xf32> -> vector<2x8x1xf32>
    %74 = vector.broadcast %73 : vector<2x8x1xf32> to vector<2x8x8xf32>
    %75 = arith.mulf %70, %74 : vector<2x8x8xf32>
    %76 = vector.extract_strided_slice %44 {offsets = [0, 0, 8], sizes = [2, 8, 8], strides = [1, 1, 1]} : vector<2x8x32xf32> to vector<2x8x8xf32>
    "tpu.trace_start"() <{level = 10 : i32, message = "bqk,bkd->bqd"}> : () -> ()
    %cst_40 = arith.constant dense<0.000000e+00> : vector<2x8x8xf32>
    %77 = tpu.matmul %75, %76, %cst_40 {dimension_numbers = #tpu.dot_dimension_numbers<[2], [1], [1], [2], [0, 0, 0, 1, 1, 2], [0], [0]>} : vector<2x8x8xf32>, vector<2x8x8xf32>, vector<2x8x8xf32> -> vector<2x8x8xf32>
    "tpu.trace_stop"() : () -> ()
    %c0_41 = arith.constant 0 : index
    %c0_42 = arith.constant 0 : index
    %c8 = arith.constant 8 : index
    %78 = vector.load %arg21[%c0_41, %c0_42, %c8] : memref<2x8x32xf32, #tpu.memory_space<vmem>>, vector<2x8x8xf32>
    tpu.vector_store %arg21[%c0_41, %c0_42, %c8], %77 {strides = array<i32>} : memref<2x8x32xf32, #tpu.memory_space<vmem>>, vector<2x8x8xf32>,
    %79 = vector.extract_strided_slice %42 {offsets = [0, 0, 16], sizes = [2, 8, 8], strides = [1, 1, 1]} : vector<2x8x32xf32> to vector<2x8x8xf32>
    %80 = vector.extract_strided_slice %43 {offsets = [0, 0, 16], sizes = [2, 8, 8], strides = [1, 1, 1]} : vector<2x8x32xf32> to vector<2x8x8xf32>
    "tpu.trace_start"() <{level = 10 : i32, message = "bqd,bkd->bqk"}> : () -> ()
    %cst_43 = arith.constant dense<0.000000e+00> : vector<2x8x8xf32>
    %81 = tpu.matmul %79, %80, %cst_43 {dimension_numbers = #tpu.dot_dimension_numbers<[2], [2], [1], [1], [0, 0, 0, 1, 1, 1], [0], [0]>} : vector<2x8x8xf32>, vector<2x8x8xf32>, vector<2x8x8xf32> -> vector<2x8x8xf32>
    "tpu.trace_stop"() : () -> ()
    %82 = arith.addf %81, %16 : vector<2x8x8xf32>
    %cst_44 = arith.constant dense<0xFF800000> : vector<2x8xf32>
    %83 = vector.multi_reduction <maximumf>, %82, %cst_44 [2] : vector<2x8x8xf32> to vector<2x8xf32>
    %84 = vector.shape_cast %83 : vector<2x8xf32> to vector<2x8x1xf32>
    %85 = vector.broadcast %84 : vector<2x8x1xf32> to vector<2x8x8xf32>
    %86 = arith.subf %82, %85 : vector<2x8x8xf32>
    %87 = math.exp %86 : vector<2x8x8xf32>
    %cst_45 = arith.constant dense<0.000000e+00> : vector<2x8xf32>
    %88 = vector.multi_reduction <add>, %87, %cst_45 [2] : vector<2x8x8xf32> to vector<2x8xf32>
    %89 = vector.shape_cast %88 : vector<2x8xf32> to vector<2x8x1xf32>
    %90 = tpu.reciprocal %89 : vector<2x8x1xf32> -> vector<2x8x1xf32>
    %91 = vector.broadcast %90 : vector<2x8x1xf32> to vector<2x8x8xf32>
    %92 = arith.mulf %87, %91 : vector<2x8x8xf32>
    %93 = vector.extract_strided_slice %44 {offsets = [0, 0, 16], sizes = [2, 8, 8], strides = [1, 1, 1]} : vector<2x8x32xf32> to vector<2x8x8xf32>
    "tpu.trace_start"() <{level = 10 : i32, message = "bqk,bkd->bqd"}> : () -> ()
    %cst_46 = arith.constant dense<0.000000e+00> : vector<2x8x8xf32>
    %94 = tpu.matmul %92, %93, %cst_46 {dimension_numbers = #tpu.dot_dimension_numbers<[2], [1], [1], [2], [0, 0, 0, 1, 1, 2], [0], [0]>} : vector<2x8x8xf32>, vector<2x8x8xf32>, vector<2x8x8xf32> -> vector<2x8x8xf32>
    "tpu.trace_stop"() : () -> ()
    %c0_47 = arith.constant 0 : index
    %c0_48 = arith.constant 0 : index
    %c16 = arith.constant 16 : index
    %95 = vector.load %arg21[%c0_47, %c0_48, %c16] : memref<2x8x32xf32, #tpu.memory_space<vmem>>, vector<2x8x8xf32>
    tpu.vector_store %arg21[%c0_47, %c0_48, %c16], %94 {strides = array<i32>} : memref<2x8x32xf32, #tpu.memory_space<vmem>>, vector<2x8x8xf32>,
    %96 = vector.extract_strided_slice %42 {offsets = [0, 0, 24], sizes = [2, 8, 8], strides = [1, 1, 1]} : vector<2x8x32xf32> to vector<2x8x8xf32>
    %97 = vector.extract_strided_slice %43 {offsets = [0, 0, 24], sizes = [2, 8, 8], strides = [1, 1, 1]} : vector<2x8x32xf32> to vector<2x8x8xf32>
    "tpu.trace_start"() <{level = 10 : i32, message = "bqd,bkd->bqk"}> : () -> ()
    %cst_49 = arith.constant dense<0.000000e+00> : vector<2x8x8xf32>
    %98 = tpu.matmul %96, %97, %cst_49 {dimension_numbers = #tpu.dot_dimension_numbers<[2], [2], [1], [1], [0, 0, 0, 1, 1, 1], [0], [0]>} : vector<2x8x8xf32>, vector<2x8x8xf32>, vector<2x8x8xf32> -> vector<2x8x8xf32>
    "tpu.trace_stop"() : () -> ()
    %99 = arith.addf %98, %16 : vector<2x8x8xf32>
    %cst_50 = arith.constant dense<0xFF800000> : vector<2x8xf32>
    %100 = vector.multi_reduction <maximumf>, %99, %cst_50 [2] : vector<2x8x8xf32> to vector<2x8xf32>
    %101 = vector.shape_cast %100 : vector<2x8xf32> to vector<2x8x1xf32>
    %102 = vector.broadcast %101 : vector<2x8x1xf32> to vector<2x8x8xf32>
    %103 = arith.subf %99, %102 : vector<2x8x8xf32>
    %104 = math.exp %103 : vector<2x8x8xf32>
    %cst_51 = arith.constant dense<0.000000e+00> : vector<2x8xf32>
    %105 = vector.multi_reduction <add>, %104, %cst_51 [2] : vector<2x8x8xf32> to vector<2x8xf32>
    %106 = vector.shape_cast %105 : vector<2x8xf32> to vector<2x8x1xf32>
    %107 = tpu.reciprocal %106 : vector<2x8x1xf32> -> vector<2x8x1xf32>
    %108 = vector.broadcast %107 : vector<2x8x1xf32> to vector<2x8x8xf32>
    %109 = arith.mulf %104, %108 : vector<2x8x8xf32>
    %110 = vector.extract_strided_slice %44 {offsets = [0, 0, 24], sizes = [2, 8, 8], strides = [1, 1, 1]} : vector<2x8x32xf32> to vector<2x8x8xf32>
    "tpu.trace_start"() <{level = 10 : i32, message = "bqk,bkd->bqd"}> : () -> ()
    %cst_52 = arith.constant dense<0.000000e+00> : vector<2x8x8xf32>
    %111 = tpu.matmul %109, %110, %cst_52 {dimension_numbers = #tpu.dot_dimension_numbers<[2], [1], [1], [2], [0, 0, 0, 1, 1, 2], [0], [0]>} : vector<2x8x8xf32>, vector<2x8x8xf32>, vector<2x8x8xf32> -> vector<2x8x8xf32>
    "tpu.trace_stop"() : () -> ()
    %c0_53 = arith.constant 0 : index
    %c0_54 = arith.constant 0 : index
    %c24 = arith.constant 24 : index
    %112 = vector.load %arg21[%c0_53, %c0_54, %c24] : memref<2x8x32xf32, #tpu.memory_space<vmem>>, vector<2x8x8xf32>
    tpu.vector_store %arg21[%c0_53, %c0_54, %c24], %111 {strides = array<i32>} : memref<2x8x32xf32, #tpu.memory_space<vmem>>, vector<2x8x8xf32>,
    %c0_55 = arith.constant 0 : index
    %c0_56 = arith.constant 0 : index
    %c0_57 = arith.constant 0 : index
    %113 = vector.load %arg21[%c0_55, %c0_56, %c0_57] : memref<2x8x32xf32, #tpu.memory_space<vmem>>, vector<2x8x32xf32>
    %114 = vector.shape_cast %113 : vector<2x8x32xf32> to vector<16x32xf32>
    %c0_58 = arith.constant 0 : index
    %c0_59 = arith.constant 0 : index
    %c0_60 = arith.constant 0 : index
    %115 = vector.load %arg8[%c0_58, %c0_59, %c0_60] : memref<2x32x32xf32, #tpu.memory_space<vmem>>, vector<1x32x32xf32>
    %116 = vector.shape_cast %115 : vector<1x32x32xf32> to vector<32x32xf32>
    %cst_61 = arith.constant dense<0.000000e+00> : vector<16x32xf32>
    %117 = tpu.matmul %114, %116, %cst_61 {dimension_numbers = #tpu.dot_dimension_numbers<[1], [0], [0], [1], [0, 0, 1, 1], [], []>} : vector<16x32xf32>, vector<32x32xf32>, vector<16x32xf32> -> vector<16x32xf32>
    %c0_62 = arith.constant 0 : index
    %c0_63 = arith.constant 0 : index
    %c0_64 = arith.constant 0 : index
    %118 = vector.load %arg9[%c0_62, %c0_63, %c0_64] : memref<2x1x32xf32, #tpu.memory_space<vmem>>, vector<1x1x32xf32>
    %119 = vector.shape_cast %118 : vector<1x1x32xf32> to vector<1x32xf32>
    %120 = vector.broadcast %119 : vector<1x32xf32> to vector<16x32xf32>
    %121 = arith.addf %117, %120 : vector<16x32xf32>
    %122 = arith.addf %18, %121 : vector<16x32xf32>
    %cst_65 = arith.constant dense<0.000000e+00> : vector<16xf32>
    %123 = vector.multi_reduction <add>, %122, %cst_65 [1] : vector<16x32xf32> to vector<16xf32>
    %124 = vector.shape_cast %123 : vector<16xf32> to vector<16x1xf32>
    %cst_66 = arith.constant 3.200000e+01 : f32
    %125 = vector.broadcast %cst_66 : f32 to vector<16x1xf32>
    %126 = arith.divf %124, %125 : vector<16x1xf32>
    %127 = vector.broadcast %126 : vector<16x1xf32> to vector<16x32xf32>
    %128 = arith.subf %122, %127 : vector<16x32xf32>
    %129 = arith.mulf %128, %128 : vector<16x32xf32>
    %cst_67 = arith.constant dense<0.000000e+00> : vector<16xf32>
    %130 = vector.multi_reduction <add>, %129, %cst_67 [1] : vector<16x32xf32> to vector<16xf32>
    %131 = vector.shape_cast %130 : vector<16xf32> to vector<16x1xf32>
    %cst_68 = arith.constant 3.200000e+01 : f32
    %132 = vector.broadcast %cst_68 : f32 to vector<16x1xf32>
    %133 = arith.divf %131, %132 : vector<16x1xf32>
    %134 = vector.broadcast %126 : vector<16x1xf32> to vector<16x32xf32>
    %135 = arith.subf %122, %134 : vector<16x32xf32>
    %cst_69 = arith.constant 9.99999974E-6 : f32
    %136 = vector.broadcast %cst_69 : f32 to vector<16x1xf32>
    %137 = arith.addf %133, %136 : vector<16x1xf32>
    %138 = math.rsqrt %137 : vector<16x1xf32>
    %139 = vector.broadcast %138 : vector<16x1xf32> to vector<16x32xf32>
    %140 = arith.mulf %135, %139 : vector<16x32xf32>
    %c0_70 = arith.constant 0 : index
    %c0_71 = arith.constant 0 : index
    %c0_72 = arith.constant 0 : index
    %141 = vector.load %arg10[%c0_70, %c0_71, %c0_72] : memref<2x1x32xf32, #tpu.memory_space<vmem>>, vector<1x1x32xf32>
    %142 = vector.shape_cast %141 : vector<1x1x32xf32> to vector<1x32xf32>
    %143 = vector.broadcast %142 : vector<1x32xf32> to vector<16x32xf32>
    %144 = arith.mulf %140, %143 : vector<16x32xf32>
    %c0_73 = arith.constant 0 : index
    %c0_74 = arith.constant 0 : index
    %c0_75 = arith.constant 0 : index
    %145 = vector.load %arg11[%c0_73, %c0_74, %c0_75] : memref<2x1x32xf32, #tpu.memory_space<vmem>>, vector<1x1x32xf32>
    %146 = vector.shape_cast %145 : vector<1x1x32xf32> to vector<1x32xf32>
    %147 = vector.broadcast %146 : vector<1x32xf32> to vector<16x32xf32>
    %148 = arith.addf %144, %147 : vector<16x32xf32>
    %c0_76 = arith.constant 0 : index
    %c0_77 = arith.constant 0 : index
    %c0_78 = arith.constant 0 : index
    %149 = vector.load %arg14[%c0_76, %c0_77, %c0_78] : memref<2x32x64xf32, #tpu.memory_space<vmem>>, vector<1x32x64xf32>
    %150 = vector.shape_cast %149 : vector<1x32x64xf32> to vector<32x64xf32>
    %cst_79 = arith.constant dense<0.000000e+00> : vector<16x64xf32>
    %151 = tpu.matmul %148, %150, %cst_79 {dimension_numbers = #tpu.dot_dimension_numbers<[1], [0], [0], [1], [0, 0, 1, 1], [], []>} : vector<16x32xf32>, vector<32x64xf32>, vector<16x64xf32> -> vector<16x64xf32>
    %c0_80 = arith.constant 0 : index
    %c0_81 = arith.constant 0 : index
    %c0_82 = arith.constant 0 : index
    %152 = vector.load %arg15[%c0_80, %c0_81, %c0_82] : memref<2x1x64xf32, #tpu.memory_space<vmem>>, vector<1x1x64xf32>
    %153 = vector.shape_cast %152 : vector<1x1x64xf32> to vector<1x64xf32>
    %154 = vector.broadcast %153 : vector<1x64xf32> to vector<16x64xf32>
    %155 = arith.addf %151, %154 : vector<16x64xf32>
    %cst_83 = arith.constant 0.000000e+00 : f32
    %156 = vector.broadcast %cst_83 : f32 to vector<16x64xf32>
    %157 = arith.maximumf %155, %156 : vector<16x64xf32>
    %c0_84 = arith.constant 0 : index
    %c0_85 = arith.constant 0 : index
    %c0_86 = arith.constant 0 : index
    %158 = vector.load %arg16[%c0_84, %c0_85, %c0_86] : memref<2x64x32xf32, #tpu.memory_space<vmem>>, vector<1x64x32xf32>
    %159 = vector.shape_cast %158 : vector<1x64x32xf32> to vector<64x32xf32>
    %cst_87 = arith.constant dense<0.000000e+00> : vector<16x32xf32>
    %160 = tpu.matmul %157, %159, %cst_87 {dimension_numbers = #tpu.dot_dimension_numbers<[1], [0], [0], [1], [0, 0, 1, 1], [], []>} : vector<16x64xf32>, vector<64x32xf32>, vector<16x32xf32> -> vector<16x32xf32>
    %c0_88 = arith.constant 0 : index
    %c0_89 = arith.constant 0 : index
    %c0_90 = arith.constant 0 : index
    %161 = vector.load %arg17[%c0_88, %c0_89, %c0_90] : memref<2x1x32xf32, #tpu.memory_space<vmem>>, vector<1x1x32xf32>
    %162 = vector.shape_cast %161 : vector<1x1x32xf32> to vector<1x32xf32>
    %163 = vector.broadcast %162 : vector<1x32xf32> to vector<16x32xf32>
    %164 = arith.addf %160, %163 : vector<16x32xf32>
    %165 = arith.addf %148, %164 : vector<16x32xf32>
    %cst_91 = arith.constant dense<0.000000e+00> : vector<16xf32>
    %166 = vector.multi_reduction <add>, %165, %cst_91 [1] : vector<16x32xf32> to vector<16xf32>
    %167 = vector.shape_cast %166 : vector<16xf32> to vector<16x1xf32>
    %cst_92 = arith.constant 3.200000e+01 : f32
    %168 = vector.broadcast %cst_92 : f32 to vector<16x1xf32>
    %169 = arith.divf %167, %168 : vector<16x1xf32>
    %170 = vector.broadcast %169 : vector<16x1xf32> to vector<16x32xf32>
    %171 = arith.subf %165, %170 : vector<16x32xf32>
    %172 = arith.mulf %171, %171 : vector<16x32xf32>
    %cst_93 = arith.constant dense<0.000000e+00> : vector<16xf32>
    %173 = vector.multi_reduction <add>, %172, %cst_93 [1] : vector<16x32xf32> to vector<16xf32>
    %174 = vector.shape_cast %173 : vector<16xf32> to vector<16x1xf32>
    %cst_94 = arith.constant 3.200000e+01 : f32
    %175 = vector.broadcast %cst_94 : f32 to vector<16x1xf32>
    %176 = arith.divf %174, %175 : vector<16x1xf32>
    %177 = vector.broadcast %169 : vector<16x1xf32> to vector<16x32xf32>
    %178 = arith.subf %165, %177 : vector<16x32xf32>
    %cst_95 = arith.constant 9.99999974E-6 : f32
    %179 = vector.broadcast %cst_95 : f32 to vector<16x1xf32>
    %180 = arith.addf %176, %179 : vector<16x1xf32>
    %181 = math.rsqrt %180 : vector<16x1xf32>
    %182 = vector.broadcast %181 : vector<16x1xf32> to vector<16x32xf32>
    %183 = arith.mulf %178, %182 : vector<16x32xf32>
    %c0_96 = arith.constant 0 : index
    %c0_97 = arith.constant 0 : index
    %c0_98 = arith.constant 0 : index
    %184 = vector.load %arg12[%c0_96, %c0_97, %c0_98] : memref<2x1x32xf32, #tpu.memory_space<vmem>>, vector<1x1x32xf32>
    %185 = vector.shape_cast %184 : vector<1x1x32xf32> to vector<1x32xf32>
    %186 = vector.broadcast %185 : vector<1x32xf32> to vector<16x32xf32>
    %187 = arith.mulf %183, %186 : vector<16x32xf32>
    %c0_99 = arith.constant 0 : index
    %c0_100 = arith.constant 0 : index
    %c0_101 = arith.constant 0 : index
    %188 = vector.load %arg13[%c0_99, %c0_100, %c0_101] : memref<2x1x32xf32, #tpu.memory_space<vmem>>, vector<1x1x32xf32>
    %189 = vector.shape_cast %188 : vector<1x1x32xf32> to vector<1x32xf32>
    %190 = vector.broadcast %189 : vector<1x32xf32> to vector<16x32xf32>
    %191 = arith.addf %187, %190 : vector<16x32xf32>
    %c1 = arith.constant 1 : index
    %c0_102 = arith.constant 0 : index
    %c0_103 = arith.constant 0 : index
    %192 = vector.load %arg2[%c1, %c0_102, %c0_103] : memref<2x32x32xf32, #tpu.memory_space<vmem>>, vector<1x32x32xf32>
    %193 = vector.shape_cast %192 : vector<1x32x32xf32> to vector<32x32xf32>
    %cst_104 = arith.constant dense<0.000000e+00> : vector<16x32xf32>
    %194 = tpu.matmul %191, %193, %cst_104 {dimension_numbers = #tpu.dot_dimension_numbers<[1], [0], [0], [1], [0, 0, 1, 1], [], []>} : vector<16x32xf32>, vector<32x32xf32>, vector<16x32xf32> -> vector<16x32xf32>
    %c1_105 = arith.constant 1 : index
    %c0_106 = arith.constant 0 : index
    %c0_107 = arith.constant 0 : index
    %195 = vector.load %arg5[%c1_105, %c0_106, %c0_107] : memref<2x1x32xf32, #tpu.memory_space<vmem>>, vector<1x1x32xf32>
    %196 = vector.shape_cast %195 : vector<1x1x32xf32> to vector<1x32xf32>
    %197 = vector.broadcast %196 : vector<1x32xf32> to vector<16x32xf32>
    %198 = arith.addf %194, %197 : vector<16x32xf32>
    %cst_108 = arith.constant 0.353553385 : f32
    %199 = vector.broadcast %cst_108 : f32 to vector<16x32xf32>
    %200 = arith.mulf %198, %199 : vector<16x32xf32>
    %c1_109 = arith.constant 1 : index
    %c0_110 = arith.constant 0 : index
    %c0_111 = arith.constant 0 : index
    %201 = vector.load %arg3[%c1_109, %c0_110, %c0_111] : memref<2x32x32xf32, #tpu.memory_space<vmem>>, vector<1x32x32xf32>
    %202 = vector.shape_cast %201 : vector<1x32x32xf32> to vector<32x32xf32>
    %cst_112 = arith.constant dense<0.000000e+00> : vector<16x32xf32>
    %203 = tpu.matmul %191, %202, %cst_112 {dimension_numbers = #tpu.dot_dimension_numbers<[1], [0], [0], [1], [0, 0, 1, 1], [], []>} : vector<16x32xf32>, vector<32x32xf32>, vector<16x32xf32> -> vector<16x32xf32>
    %c1_113 = arith.constant 1 : index
    %c0_114 = arith.constant 0 : index
    %c0_115 = arith.constant 0 : index
    %204 = vector.load %arg6[%c1_113, %c0_114, %c0_115] : memref<2x1x32xf32, #tpu.memory_space<vmem>>, vector<1x1x32xf32>
    %205 = vector.shape_cast %204 : vector<1x1x32xf32> to vector<1x32xf32>
    %206 = vector.broadcast %205 : vector<1x32xf32> to vector<16x32xf32>
    %207 = arith.addf %203, %206 : vector<16x32xf32>
    %c1_116 = arith.constant 1 : index
    %c0_117 = arith.constant 0 : index
    %c0_118 = arith.constant 0 : index
    %208 = vector.load %arg4[%c1_116, %c0_117, %c0_118] : memref<2x32x32xf32, #tpu.memory_space<vmem>>, vector<1x32x32xf32>
    %209 = vector.shape_cast %208 : vector<1x32x32xf32> to vector<32x32xf32>
    %cst_119 = arith.constant dense<0.000000e+00> : vector<16x32xf32>
    %210 = tpu.matmul %191, %209, %cst_119 {dimension_numbers = #tpu.dot_dimension_numbers<[1], [0], [0], [1], [0, 0, 1, 1], [], []>} : vector<16x32xf32>, vector<32x32xf32>, vector<16x32xf32> -> vector<16x32xf32>
    %c1_120 = arith.constant 1 : index
    %c0_121 = arith.constant 0 : index
    %c0_122 = arith.constant 0 : index
    %211 = vector.load %arg7[%c1_120, %c0_121, %c0_122] : memref<2x1x32xf32, #tpu.memory_space<vmem>>, vector<1x1x32xf32>
    %212 = vector.shape_cast %211 : vector<1x1x32xf32> to vector<1x32xf32>
    %213 = vector.broadcast %212 : vector<1x32xf32> to vector<16x32xf32>
    %214 = arith.addf %210, %213 : vector<16x32xf32>
    %215 = vector.shape_cast %200 : vector<16x32xf32> to vector<2x8x32xf32>
    %216 = vector.shape_cast %207 : vector<16x32xf32> to vector<2x8x32xf32>
    %217 = vector.shape_cast %214 : vector<16x32xf32> to vector<2x8x32xf32>
    %218 = vector.extract_strided_slice %215 {offsets = [0, 0, 0], sizes = [2, 8, 8], strides = [1, 1, 1]} : vector<2x8x32xf32> to vector<2x8x8xf32>
    %219 = vector.extract_strided_slice %216 {offsets = [0, 0, 0], sizes = [2, 8, 8], strides = [1, 1, 1]} : vector<2x8x32xf32> to vector<2x8x8xf32>
    "tpu.trace_start"() <{level = 10 : i32, message = "bqd,bkd->bqk"}> : () -> ()
    %cst_123 = arith.constant dense<0.000000e+00> : vector<2x8x8xf32>
    %220 = tpu.matmul %218, %219, %cst_123 {dimension_numbers = #tpu.dot_dimension_numbers<[2], [2], [1], [1], [0, 0, 0, 1, 1, 1], [0], [0]>} : vector<2x8x8xf32>, vector<2x8x8xf32>, vector<2x8x8xf32> -> vector<2x8x8xf32>
    "tpu.trace_stop"() : () -> ()
    %221 = arith.addf %220, %16 : vector<2x8x8xf32>
    %cst_124 = arith.constant dense<0xFF800000> : vector<2x8xf32>
    %222 = vector.multi_reduction <maximumf>, %221, %cst_124 [2] : vector<2x8x8xf32> to vector<2x8xf32>
    %223 = vector.shape_cast %222 : vector<2x8xf32> to vector<2x8x1xf32>
    %224 = vector.broadcast %223 : vector<2x8x1xf32> to vector<2x8x8xf32>
    %225 = arith.subf %221, %224 : vector<2x8x8xf32>
    %226 = math.exp %225 : vector<2x8x8xf32>
    %cst_125 = arith.constant dense<0.000000e+00> : vector<2x8xf32>
    %227 = vector.multi_reduction <add>, %226, %cst_125 [2] : vector<2x8x8xf32> to vector<2x8xf32>
    %228 = vector.shape_cast %227 : vector<2x8xf32> to vector<2x8x1xf32>
    %229 = tpu.reciprocal %228 : vector<2x8x1xf32> -> vector<2x8x1xf32>
    %230 = vector.broadcast %229 : vector<2x8x1xf32> to vector<2x8x8xf32>
    %231 = arith.mulf %226, %230 : vector<2x8x8xf32>
    %232 = vector.extract_strided_slice %217 {offsets = [0, 0, 0], sizes = [2, 8, 8], strides = [1, 1, 1]} : vector<2x8x32xf32> to vector<2x8x8xf32>
    "tpu.trace_start"() <{level = 10 : i32, message = "bqk,bkd->bqd"}> : () -> ()
    %cst_126 = arith.constant dense<0.000000e+00> : vector<2x8x8xf32>
    %233 = tpu.matmul %231, %232, %cst_126 {dimension_numbers = #tpu.dot_dimension_numbers<[2], [1], [1], [2], [0, 0, 0, 1, 1, 2], [0], [0]>} : vector<2x8x8xf32>, vector<2x8x8xf32>, vector<2x8x8xf32> -> vector<2x8x8xf32>
    "tpu.trace_stop"() : () -> ()
    %c0_127 = arith.constant 0 : index
    %c0_128 = arith.constant 0 : index
    %c0_129 = arith.constant 0 : index
    %234 = vector.load %arg21[%c0_127, %c0_128, %c0_129] : memref<2x8x32xf32, #tpu.memory_space<vmem>>, vector<2x8x8xf32>
    tpu.vector_store %arg21[%c0_127, %c0_128, %c0_129], %233 {strides = array<i32>} : memref<2x8x32xf32, #tpu.memory_space<vmem>>, vector<2x8x8xf32>,
    %235 = vector.extract_strided_slice %215 {offsets = [0, 0, 8], sizes = [2, 8, 8], strides = [1, 1, 1]} : vector<2x8x32xf32> to vector<2x8x8xf32>
    %236 = vector.extract_strided_slice %216 {offsets = [0, 0, 8], sizes = [2, 8, 8], strides = [1, 1, 1]} : vector<2x8x32xf32> to vector<2x8x8xf32>
    "tpu.trace_start"() <{level = 10 : i32, message = "bqd,bkd->bqk"}> : () -> ()
    %cst_130 = arith.constant dense<0.000000e+00> : vector<2x8x8xf32>
    %237 = tpu.matmul %235, %236, %cst_130 {dimension_numbers = #tpu.dot_dimension_numbers<[2], [2], [1], [1], [0, 0, 0, 1, 1, 1], [0], [0]>} : vector<2x8x8xf32>, vector<2x8x8xf32>, vector<2x8x8xf32> -> vector<2x8x8xf32>
    "tpu.trace_stop"() : () -> ()
    %238 = arith.addf %237, %16 : vector<2x8x8xf32>
    %cst_131 = arith.constant dense<0xFF800000> : vector<2x8xf32>
    %239 = vector.multi_reduction <maximumf>, %238, %cst_131 [2] : vector<2x8x8xf32> to vector<2x8xf32>
    %240 = vector.shape_cast %239 : vector<2x8xf32> to vector<2x8x1xf32>
    %241 = vector.broadcast %240 : vector<2x8x1xf32> to vector<2x8x8xf32>
    %242 = arith.subf %238, %241 : vector<2x8x8xf32>
    %243 = math.exp %242 : vector<2x8x8xf32>
    %cst_132 = arith.constant dense<0.000000e+00> : vector<2x8xf32>
    %244 = vector.multi_reduction <add>, %243, %cst_132 [2] : vector<2x8x8xf32> to vector<2x8xf32>
    %245 = vector.shape_cast %244 : vector<2x8xf32> to vector<2x8x1xf32>
    %246 = tpu.reciprocal %245 : vector<2x8x1xf32> -> vector<2x8x1xf32>
    %247 = vector.broadcast %246 : vector<2x8x1xf32> to vector<2x8x8xf32>
    %248 = arith.mulf %243, %247 : vector<2x8x8xf32>
    %249 = vector.extract_strided_slice %217 {offsets = [0, 0, 8], sizes = [2, 8, 8], strides = [1, 1, 1]} : vector<2x8x32xf32> to vector<2x8x8xf32>
    "tpu.trace_start"() <{level = 10 : i32, message = "bqk,bkd->bqd"}> : () -> ()
    %cst_133 = arith.constant dense<0.000000e+00> : vector<2x8x8xf32>
    %250 = tpu.matmul %248, %249, %cst_133 {dimension_numbers = #tpu.dot_dimension_numbers<[2], [1], [1], [2], [0, 0, 0, 1, 1, 2], [0], [0]>} : vector<2x8x8xf32>, vector<2x8x8xf32>, vector<2x8x8xf32> -> vector<2x8x8xf32>
    "tpu.trace_stop"() : () -> ()
    %c0_134 = arith.constant 0 : index
    %c0_135 = arith.constant 0 : index
    %c8_136 = arith.constant 8 : index
    %251 = vector.load %arg21[%c0_134, %c0_135, %c8_136] : memref<2x8x32xf32, #tpu.memory_space<vmem>>, vector<2x8x8xf32>
    tpu.vector_store %arg21[%c0_134, %c0_135, %c8_136], %250 {strides = array<i32>} : memref<2x8x32xf32, #tpu.memory_space<vmem>>, vector<2x8x8xf32>,
    %252 = vector.extract_strided_slice %215 {offsets = [0, 0, 16], sizes = [2, 8, 8], strides = [1, 1, 1]} : vector<2x8x32xf32> to vector<2x8x8xf32>
    %253 = vector.extract_strided_slice %216 {offsets = [0, 0, 16], sizes = [2, 8, 8], strides = [1, 1, 1]} : vector<2x8x32xf32> to vector<2x8x8xf32>
    "tpu.trace_start"() <{level = 10 : i32, message = "bqd,bkd->bqk"}> : () -> ()
    %cst_137 = arith.constant dense<0.000000e+00> : vector<2x8x8xf32>
    %254 = tpu.matmul %252, %253, %cst_137 {dimension_numbers = #tpu.dot_dimension_numbers<[2], [2], [1], [1], [0, 0, 0, 1, 1, 1], [0], [0]>} : vector<2x8x8xf32>, vector<2x8x8xf32>, vector<2x8x8xf32> -> vector<2x8x8xf32>
    "tpu.trace_stop"() : () -> ()
    %255 = arith.addf %254, %16 : vector<2x8x8xf32>
    %cst_138 = arith.constant dense<0xFF800000> : vector<2x8xf32>
    %256 = vector.multi_reduction <maximumf>, %255, %cst_138 [2] : vector<2x8x8xf32> to vector<2x8xf32>
    %257 = vector.shape_cast %256 : vector<2x8xf32> to vector<2x8x1xf32>
    %258 = vector.broadcast %257 : vector<2x8x1xf32> to vector<2x8x8xf32>
    %259 = arith.subf %255, %258 : vector<2x8x8xf32>
    %260 = math.exp %259 : vector<2x8x8xf32>
    %cst_139 = arith.constant dense<0.000000e+00> : vector<2x8xf32>
    %261 = vector.multi_reduction <add>, %260, %cst_139 [2] : vector<2x8x8xf32> to vector<2x8xf32>
    %262 = vector.shape_cast %261 : vector<2x8xf32> to vector<2x8x1xf32>
    %263 = tpu.reciprocal %262 : vector<2x8x1xf32> -> vector<2x8x1xf32>
    %264 = vector.broadcast %263 : vector<2x8x1xf32> to vector<2x8x8xf32>
    %265 = arith.mulf %260, %264 : vector<2x8x8xf32>
    %266 = vector.extract_strided_slice %217 {offsets = [0, 0, 16], sizes = [2, 8, 8], strides = [1, 1, 1]} : vector<2x8x32xf32> to vector<2x8x8xf32>
    "tpu.trace_start"() <{level = 10 : i32, message = "bqk,bkd->bqd"}> : () -> ()
    %cst_140 = arith.constant dense<0.000000e+00> : vector<2x8x8xf32>
    %267 = tpu.matmul %265, %266, %cst_140 {dimension_numbers = #tpu.dot_dimension_numbers<[2], [1], [1], [2], [0, 0, 0, 1, 1, 2], [0], [0]>} : vector<2x8x8xf32>, vector<2x8x8xf32>, vector<2x8x8xf32> -> vector<2x8x8xf32>
    "tpu.trace_stop"() : () -> ()
    %c0_141 = arith.constant 0 : index
    %c0_142 = arith.constant 0 : index
    %c16_143 = arith.constant 16 : index
    %268 = vector.load %arg21[%c0_141, %c0_142, %c16_143] : memref<2x8x32xf32, #tpu.memory_space<vmem>>, vector<2x8x8xf32>
    tpu.vector_store %arg21[%c0_141, %c0_142, %c16_143], %267 {strides = array<i32>} : memref<2x8x32xf32, #tpu.memory_space<vmem>>, vector<2x8x8xf32>,
    %269 = vector.extract_strided_slice %215 {offsets = [0, 0, 24], sizes = [2, 8, 8], strides = [1, 1, 1]} : vector<2x8x32xf32> to vector<2x8x8xf32>
    %270 = vector.extract_strided_slice %216 {offsets = [0, 0, 24], sizes = [2, 8, 8], strides = [1, 1, 1]} : vector<2x8x32xf32> to vector<2x8x8xf32>
    "tpu.trace_start"() <{level = 10 : i32, message = "bqd,bkd->bqk"}> : () -> ()
    %cst_144 = arith.constant dense<0.000000e+00> : vector<2x8x8xf32>
    %271 = tpu.matmul %269, %270, %cst_144 {dimension_numbers = #tpu.dot_dimension_numbers<[2], [2], [1], [1], [0, 0, 0, 1, 1, 1], [0], [0]>} : vector<2x8x8xf32>, vector<2x8x8xf32>, vector<2x8x8xf32> -> vector<2x8x8xf32>
    "tpu.trace_stop"() : () -> ()
    %272 = arith.addf %271, %16 : vector<2x8x8xf32>
    %cst_145 = arith.constant dense<0xFF800000> : vector<2x8xf32>
    %273 = vector.multi_reduction <maximumf>, %272, %cst_145 [2] : vector<2x8x8xf32> to vector<2x8xf32>
    %274 = vector.shape_cast %273 : vector<2x8xf32> to vector<2x8x1xf32>
    %275 = vector.broadcast %274 : vector<2x8x1xf32> to vector<2x8x8xf32>
    %276 = arith.subf %272, %275 : vector<2x8x8xf32>
    %277 = math.exp %276 : vector<2x8x8xf32>
    %cst_146 = arith.constant dense<0.000000e+00> : vector<2x8xf32>
    %278 = vector.multi_reduction <add>, %277, %cst_146 [2] : vector<2x8x8xf32> to vector<2x8xf32>
    %279 = vector.shape_cast %278 : vector<2x8xf32> to vector<2x8x1xf32>
    %280 = tpu.reciprocal %279 : vector<2x8x1xf32> -> vector<2x8x1xf32>
    %281 = vector.broadcast %280 : vector<2x8x1xf32> to vector<2x8x8xf32>
    %282 = arith.mulf %277, %281 : vector<2x8x8xf32>
    %283 = vector.extract_strided_slice %217 {offsets = [0, 0, 24], sizes = [2, 8, 8], strides = [1, 1, 1]} : vector<2x8x32xf32> to vector<2x8x8xf32>
    "tpu.trace_start"() <{level = 10 : i32, message = "bqk,bkd->bqd"}> : () -> ()
    %cst_147 = arith.constant dense<0.000000e+00> : vector<2x8x8xf32>
    %284 = tpu.matmul %282, %283, %cst_147 {dimension_numbers = #tpu.dot_dimension_numbers<[2], [1], [1], [2], [0, 0, 0, 1, 1, 2], [0], [0]>} : vector<2x8x8xf32>, vector<2x8x8xf32>, vector<2x8x8xf32> -> vector<2x8x8xf32>
    "tpu.trace_stop"() : () -> ()
    %c0_148 = arith.constant 0 : index
    %c0_149 = arith.constant 0 : index
    %c24_150 = arith.constant 24 : index
    %285 = vector.load %arg21[%c0_148, %c0_149, %c24_150] : memref<2x8x32xf32, #tpu.memory_space<vmem>>, vector<2x8x8xf32>
    tpu.vector_store %arg21[%c0_148, %c0_149, %c24_150], %284 {strides = array<i32>} : memref<2x8x32xf32, #tpu.memory_space<vmem>>, vector<2x8x8xf32>,
    %c0_151 = arith.constant 0 : index
    %c0_152 = arith.constant 0 : index
    %c0_153 = arith.constant 0 : index
    %286 = vector.load %arg21[%c0_151, %c0_152, %c0_153] : memref<2x8x32xf32, #tpu.memory_space<vmem>>, vector<2x8x32xf32>
    %287 = vector.shape_cast %286 : vector<2x8x32xf32> to vector<16x32xf32>
    %c1_154 = arith.constant 1 : index
    %c0_155 = arith.constant 0 : index
    %c0_156 = arith.constant 0 : index
    %288 = vector.load %arg8[%c1_154, %c0_155, %c0_156] : memref<2x32x32xf32, #tpu.memory_space<vmem>>, vector<1x32x32xf32>
    %289 = vector.shape_cast %288 : vector<1x32x32xf32> to vector<32x32xf32>
    %cst_157 = arith.constant dense<0.000000e+00> : vector<16x32xf32>
    %290 = tpu.matmul %287, %289, %cst_157 {dimension_numbers = #tpu.dot_dimension_numbers<[1], [0], [0], [1], [0, 0, 1, 1], [], []>} : vector<16x32xf32>, vector<32x32xf32>, vector<16x32xf32> -> vector<16x32xf32>
    %c1_158 = arith.constant 1 : index
    %c0_159 = arith.constant 0 : index
    %c0_160 = arith.constant 0 : index
    %291 = vector.load %arg9[%c1_158, %c0_159, %c0_160] : memref<2x1x32xf32, #tpu.memory_space<vmem>>, vector<1x1x32xf32>
    %292 = vector.shape_cast %291 : vector<1x1x32xf32> to vector<1x32xf32>
    %293 = vector.broadcast %292 : vector<1x32xf32> to vector<16x32xf32>
    %294 = arith.addf %290, %293 : vector<16x32xf32>
    %295 = arith.addf %191, %294 : vector<16x32xf32>
    %cst_161 = arith.constant dense<0.000000e+00> : vector<16xf32>
    %296 = vector.multi_reduction <add>, %295, %cst_161 [1] : vector<16x32xf32> to vector<16xf32>
    %297 = vector.shape_cast %296 : vector<16xf32> to vector<16x1xf32>
    %cst_162 = arith.constant 3.200000e+01 : f32
    %298 = vector.broadcast %cst_162 : f32 to vector<16x1xf32>
    %299 = arith.divf %297, %298 : vector<16x1xf32>
    %300 = vector.broadcast %299 : vector<16x1xf32> to vector<16x32xf32>
    %301 = arith.subf %295, %300 : vector<16x32xf32>
    %302 = arith.mulf %301, %301 : vector<16x32xf32>
    %cst_163 = arith.constant dense<0.000000e+00> : vector<16xf32>
    %303 = vector.multi_reduction <add>, %302, %cst_163 [1] : vector<16x32xf32> to vector<16xf32>
    %304 = vector.shape_cast %303 : vector<16xf32> to vector<16x1xf32>
    %cst_164 = arith.constant 3.200000e+01 : f32
    %305 = vector.broadcast %cst_164 : f32 to vector<16x1xf32>
    %306 = arith.divf %304, %305 : vector<16x1xf32>
    %307 = vector.broadcast %299 : vector<16x1xf32> to vector<16x32xf32>
    %308 = arith.subf %295, %307 : vector<16x32xf32>
    %cst_165 = arith.constant 9.99999974E-6 : f32
    %309 = vector.broadcast %cst_165 : f32 to vector<16x1xf32>
    %310 = arith.addf %306, %309 : vector<16x1xf32>
    %311 = math.rsqrt %310 : vector<16x1xf32>
    %312 = vector.broadcast %311 : vector<16x1xf32> to vector<16x32xf32>
    %313 = arith.mulf %308, %312 : vector<16x32xf32>
    %c1_166 = arith.constant 1 : index
    %c0_167 = arith.constant 0 : index
    %c0_168 = arith.constant 0 : index
    %314 = vector.load %arg10[%c1_166, %c0_167, %c0_168] : memref<2x1x32xf32, #tpu.memory_space<vmem>>, vector<1x1x32xf32>
    %315 = vector.shape_cast %314 : vector<1x1x32xf32> to vector<1x32xf32>
    %316 = vector.broadcast %315 : vector<1x32xf32> to vector<16x32xf32>
    %317 = arith.mulf %313, %316 : vector<16x32xf32>
    %c1_169 = arith.constant 1 : index
    %c0_170 = arith.constant 0 : index
    %c0_171 = arith.constant 0 : index
    %318 = vector.load %arg11[%c1_169, %c0_170, %c0_171] : memref<2x1x32xf32, #tpu.memory_space<vmem>>, vector<1x1x32xf32>
    %319 = vector.shape_cast %318 : vector<1x1x32xf32> to vector<1x32xf32>
    %320 = vector.broadcast %319 : vector<1x32xf32> to vector<16x32xf32>
    %321 = arith.addf %317, %320 : vector<16x32xf32>
    %c1_172 = arith.constant 1 : index
    %c0_173 = arith.constant 0 : index
    %c0_174 = arith.constant 0 : index
    %322 = vector.load %arg14[%c1_172, %c0_173, %c0_174] : memref<2x32x64xf32, #tpu.memory_space<vmem>>, vector<1x32x64xf32>
    %323 = vector.shape_cast %322 : vector<1x32x64xf32> to vector<32x64xf32>
    %cst_175 = arith.constant dense<0.000000e+00> : vector<16x64xf32>
    %324 = tpu.matmul %321, %323, %cst_175 {dimension_numbers = #tpu.dot_dimension_numbers<[1], [0], [0], [1], [0, 0, 1, 1], [], []>} : vector<16x32xf32>, vector<32x64xf32>, vector<16x64xf32> -> vector<16x64xf32>
    %c1_176 = arith.constant 1 : index
    %c0_177 = arith.constant 0 : index
    %c0_178 = arith.constant 0 : index
    %325 = vector.load %arg15[%c1_176, %c0_177, %c0_178] : memref<2x1x64xf32, #tpu.memory_space<vmem>>, vector<1x1x64xf32>
    %326 = vector.shape_cast %325 : vector<1x1x64xf32> to vector<1x64xf32>
    %327 = vector.broadcast %326 : vector<1x64xf32> to vector<16x64xf32>
    %328 = arith.addf %324, %327 : vector<16x64xf32>
    %cst_179 = arith.constant 0.000000e+00 : f32
    %329 = vector.broadcast %cst_179 : f32 to vector<16x64xf32>
    %330 = arith.maximumf %328, %329 : vector<16x64xf32>
    %c1_180 = arith.constant 1 : index
    %c0_181 = arith.constant 0 : index
    %c0_182 = arith.constant 0 : index
    %331 = vector.load %arg16[%c1_180, %c0_181, %c0_182] : memref<2x64x32xf32, #tpu.memory_space<vmem>>, vector<1x64x32xf32>
    %332 = vector.shape_cast %331 : vector<1x64x32xf32> to vector<64x32xf32>
    %cst_183 = arith.constant dense<0.000000e+00> : vector<16x32xf32>
    %333 = tpu.matmul %330, %332, %cst_183 {dimension_numbers = #tpu.dot_dimension_numbers<[1], [0], [0], [1], [0, 0, 1, 1], [], []>} : vector<16x64xf32>, vector<64x32xf32>, vector<16x32xf32> -> vector<16x32xf32>
    %c1_184 = arith.constant 1 : index
    %c0_185 = arith.constant 0 : index
    %c0_186 = arith.constant 0 : index
    %334 = vector.load %arg17[%c1_184, %c0_185, %c0_186] : memref<2x1x32xf32, #tpu.memory_space<vmem>>, vector<1x1x32xf32>
    %335 = vector.shape_cast %334 : vector<1x1x32xf32> to vector<1x32xf32>
    %336 = vector.broadcast %335 : vector<1x32xf32> to vector<16x32xf32>
    %337 = arith.addf %333, %336 : vector<16x32xf32>
    %338 = arith.addf %321, %337 : vector<16x32xf32>
    %cst_187 = arith.constant dense<0.000000e+00> : vector<16xf32>
    %339 = vector.multi_reduction <add>, %338, %cst_187 [1] : vector<16x32xf32> to vector<16xf32>
    %340 = vector.shape_cast %339 : vector<16xf32> to vector<16x1xf32>
    %cst_188 = arith.constant 3.200000e+01 : f32
    %341 = vector.broadcast %cst_188 : f32 to vector<16x1xf32>
    %342 = arith.divf %340, %341 : vector<16x1xf32>
    %343 = vector.broadcast %342 : vector<16x1xf32> to vector<16x32xf32>
    %344 = arith.subf %338, %343 : vector<16x32xf32>
    %345 = arith.mulf %344, %344 : vector<16x32xf32>
    %cst_189 = arith.constant dense<0.000000e+00> : vector<16xf32>
    %346 = vector.multi_reduction <add>, %345, %cst_189 [1] : vector<16x32xf32> to vector<16xf32>
    %347 = vector.shape_cast %346 : vector<16xf32> to vector<16x1xf32>
    %cst_190 = arith.constant 3.200000e+01 : f32
    %348 = vector.broadcast %cst_190 : f32 to vector<16x1xf32>
    %349 = arith.divf %347, %348 : vector<16x1xf32>
    %350 = vector.broadcast %342 : vector<16x1xf32> to vector<16x32xf32>
    %351 = arith.subf %338, %350 : vector<16x32xf32>
    %cst_191 = arith.constant 9.99999974E-6 : f32
    %352 = vector.broadcast %cst_191 : f32 to vector<16x1xf32>
    %353 = arith.addf %349, %352 : vector<16x1xf32>
    %354 = math.rsqrt %353 : vector<16x1xf32>
    %355 = vector.broadcast %354 : vector<16x1xf32> to vector<16x32xf32>
    %356 = arith.mulf %351, %355 : vector<16x32xf32>
    %c1_192 = arith.constant 1 : index
    %c0_193 = arith.constant 0 : index
    %c0_194 = arith.constant 0 : index
    %357 = vector.load %arg12[%c1_192, %c0_193, %c0_194] : memref<2x1x32xf32, #tpu.memory_space<vmem>>, vector<1x1x32xf32>
    %358 = vector.shape_cast %357 : vector<1x1x32xf32> to vector<1x32xf32>
    %359 = vector.broadcast %358 : vector<1x32xf32> to vector<16x32xf32>
    %360 = arith.mulf %356, %359 : vector<16x32xf32>
    %c1_195 = arith.constant 1 : index
    %c0_196 = arith.constant 0 : index
    %c0_197 = arith.constant 0 : index
    %361 = vector.load %arg13[%c1_195, %c0_196, %c0_197] : memref<2x1x32xf32, #tpu.memory_space<vmem>>, vector<1x1x32xf32>
    %362 = vector.shape_cast %361 : vector<1x1x32xf32> to vector<1x32xf32>
    %363 = vector.broadcast %362 : vector<1x32xf32> to vector<16x32xf32>
    %364 = arith.addf %360, %363 : vector<16x32xf32>
    %c0_198 = arith.constant 0 : index
    %c0_199 = arith.constant 0 : index
    %365 = vector.load %arg18[%c0_198, %c0_199] : memref<32x128xf32, #tpu.memory_space<vmem>>, vector<32x128xf32>
    %cst_200 = arith.constant dense<0.000000e+00> : vector<16x128xf32>
    %366 = tpu.matmul %364, %365, %cst_200 {dimension_numbers = #tpu.dot_dimension_numbers<[1], [0], [0], [1], [0, 0, 1, 1], [], []>} : vector<16x32xf32>, vector<32x128xf32>, vector<16x128xf32> -> vector<16x128xf32>
    %c0_201 = arith.constant 0 : index
    %c0_202 = arith.constant 0 : index
    %367 = vector.load %arg19[%c0_201, %c0_202] : memref<1x128xf32, #tpu.memory_space<vmem>>, vector<1x128xf32>
    %368 = vector.broadcast %367 : vector<1x128xf32> to vector<16x128xf32>
    %369 = arith.addf %366, %368 : vector<16x128xf32>
    %cst_203 = arith.constant dense<0xFF800000> : vector<16xf32>
    %370 = vector.multi_reduction <maximumf>, %369, %cst_203 [1] : vector<16x128xf32> to vector<16xf32>
    %371 = vector.shape_cast %370 : vector<16xf32> to vector<16x1xf32>
    %372 = vector.broadcast %371 : vector<16x1xf32> to vector<16x128xf32>
    %373 = arith.subf %369, %372 : vector<16x128xf32>
    %374 = math.exp %373 : vector<16x128xf32>
    %cst_204 = arith.constant dense<0.000000e+00> : vector<16xf32>
    %375 = vector.multi_reduction <add>, %374, %cst_204 [1] : vector<16x128xf32> to vector<16xf32>
    %376 = vector.shape_cast %375 : vector<16xf32> to vector<16x1xf32>
    %377 = math.log %376 : vector<16x1xf32>
    %378 = vector.broadcast %377 : vector<16x1xf32> to vector<16x128xf32>
    %379 = arith.subf %373, %378 : vector<16x128xf32>
    %380 = vector.shape_cast %379 : vector<16x128xf32> to vector<2x8x128xf32>
    %c0_205 = arith.constant 0 : index
    %c0_206 = arith.constant 0 : index
    %c0_207 = arith.constant 0 : index
    %381 = vector.load %arg20[%c0_205, %c0_206, %c0_207] : memref<2x8x128xf32, #tpu.memory_space<vmem>>, vector<2x8x128xf32>
    tpu.vector_store %arg20[%c0_205, %c0_206, %c0_207], %380 {strides = array<i32>} : memref<2x8x128xf32, #tpu.memory_space<vmem>>, vector<2x8x128xf32>,
    return
  }
}

</mosaic_0001>

<llo_original>
// kernel: tpu_custom_call.1
$region0: #{tpu_custom_call.1}
  #allocation0 [shape = 'u32[]', space=smem, size = 0x4, offset = 0x4, fixed_abs, tag = 'smem constant byte address 0x4 - core index']
  #allocation1 [shape = 'u32[144,128]{1,0:T(1,128)}', space=vmem, size = 0x12000, scoped, tag = 'internal scratch']
  #allocation2 [shape = 'f32[2,8,32]{2,1,0:T(8,128)}', space=vmem, size = 0x2000, scoped, tag = 'scratch operand']
  %s0 = inlined_call_operand.hbm [shape: f32[2,8,32], index: 0, kind: input, shape index: {}]
  %s1 = inlined_call_operand.hbm [shape: f32[2,8], index: 1, kind: input, shape index: {}]
  %s2 = inlined_call_operand.vmem [shape: f32[2,32,32], index: 2, kind: input, shape index: {}]
  %s3 = inlined_call_operand.vmem [shape: f32[2,32,32], index: 3, kind: input, shape index: {}]
  %s4 = inlined_call_operand.vmem [shape: f32[2,32,32], index: 4, kind: input, shape index: {}]
  %s5 = inlined_call_operand.hbm [shape: f32[2,1,32], index: 5, kind: input, shape index: {}]
  %s6 = inlined_call_operand.hbm [shape: f32[2,1,32], index: 6, kind: input, shape index: {}]
  %s7 = inlined_call_operand.hbm [shape: f32[2,1,32], index: 7, kind: input, shape index: {}]
  %s8 = inlined_call_operand.hbm [shape: f32[2,32,32], index: 8, kind: input, shape index: {}]
  %s9 = inlined_call_operand.hbm [shape: f32[2,1,32], index: 9, kind: input, shape index: {}]
  %s10 = inlined_call_operand.hbm [shape: f32[2,1,32], index: 10, kind: input, shape index: {}]
  %s11 = inlined_call_operand.hbm [shape: f32[2,1,32], index: 11, kind: input, shape index: {}]
  %s12 = inlined_call_operand.hbm [shape: f32[2,1,32], index: 12, kind: input, shape index: {}]
  %s13 = inlined_call_operand.hbm [shape: f32[2,1,32], index: 13, kind: input, shape index: {}]
  %s14 = inlined_call_operand.hbm [shape: f32[2,32,64], index: 14, kind: input, shape index: {}]
  %s15 = inlined_call_operand.hbm [shape: f32[2,1,64], index: 15, kind: input, shape index: {}]
  %s16 = inlined_call_operand.vmem [shape: f32[2,64,32], index: 16, kind: input, shape index: {}]
  %s17 = inlined_call_operand.hbm [shape: f32[2,1,32], index: 17, kind: input, shape index: {}]
  %s18 = inlined_call_operand.vmem [shape: f32[32,128], index: 18, kind: input, shape index: {}]
  %s19 = inlined_call_operand.hbm [shape: f32[1,128], index: 19, kind: input, shape index: {}]
  %s20 = inlined_call_operand.hbm [shape: f32[2,8,128], index: 20, kind: output, shape index: {}]
  %s21 = sld [smem:[#allocation0]]
  $region150: #{tpu_custom_call.1} parent=0
    _
  %s23 = ssub.s32 1, %s21
  %s24 = scalar_select 0, %s23, %s21
  $region1: #{tpu_custom_call.1} parent=0
    #allocation3 [shape = 'u8[8192]{0}', space=vmem, size = 0x2000, scoped, tag = 'input window, operand 0, single buffered']
    #allocation4 [shape = 's32[1]{0}', space=sflag, size = 0x4, scoped, tag = 'scoped memory for tpu_custom_call.1']
    #allocation5 [shape = 's32[1]{0}', space=sflag, size = 0x4, scoped, tag = 'scoped memory for tpu_custom_call.1']
    #allocation6 [shape = 'u8[1024]{0}', space=vmem, size = 0x400, scoped, tag = 'input window, operand 1, single buffered']
    #allocation7 [shape = 's32[1]{0}', space=sflag, size = 0x4, scoped, tag = 'scoped memory for tpu_custom_call.1']
    #allocation8 [shape = 'u8[1024]{0}', space=vmem, size = 0x400, scoped, tag = 'input window, operand 5, single buffered']
    #allocation9 [shape = 'u8[1024]{0}', space=vmem, size = 0x400, scoped, tag = 'input window, operand 6, single buffered']
    #allocation10 [shape = 's32[1]{0}', space=sflag, size = 0x4, scoped, tag = 'scoped memory for tpu_custom_call.1']
    #allocation11 [shape = 'u8[1024]{0}', space=vmem, size = 0x400, scoped, tag = 'input window, operand 7, single buffered']
    #allocation12 [shape = 'u8[32768]{0}', space=vmem, size = 0x8000, scoped, tag = 'input window, operand 8, single buffered']
    #allocation13 [shape = 's32[1]{0}', space=sflag, size = 0x4, scoped, tag = 'scoped memory for tpu_custom_call.1']
    #allocation14 [shape = 'u8[1024]{0}', space=vmem, size = 0x400, scoped, tag = 'input window, operand 9, single buffered']
    #allocation15 [shape = 'u8[1024]{0}', space=vmem, size = 0x400, scoped, tag = 'input window, operand 10, single buffered']
    #allocation16 [shape = 's32[1]{0}', space=sflag, size = 0x4, scoped, tag = 'scoped memory for tpu_custom_call.1']
    #allocation17 [shape = 'u8[1024]{0}', space=vmem, size = 0x400, scoped, tag = 'input window, operand 11, single buffered']
    #allocation18 [shape = 'u8[1024]{0}', space=vmem, size = 0x400, scoped, tag = 'input window, operand 12, single buffered']
    #allocation19 [shape = 's32[1]{0}', space=sflag, size = 0x4, scoped, tag = 'scoped memory for tpu_custom_call.1']
    #allocation20 [shape = 'u8[1024]{0}', space=vmem, size = 0x400, scoped, tag = 'input window, operand 13, single buffered']
    #allocation21 [shape = 'u8[32768]{0}', space=vmem, size = 0x8000, scoped, tag = 'input window, operand 14, single buffered']
    #allocation22 [shape = 's32[1]{0}', space=sflag, size = 0x4, scoped, tag = 'scoped memory for tpu_custom_call.1']
    #allocation23 [shape = 'u8[1024]{0}', space=vmem, size = 0x400, scoped, tag = 'input window, operand 15, single buffered']
    #allocation24 [shape = 'u8[1024]{0}', space=vmem, size = 0x400, scoped, tag = 'input window, operand 17, single buffered']
    #allocation25 [shape = 's32[1]{0}', space=sflag, size = 0x4, scoped, tag = 'scoped memory for tpu_custom_call.1']
    #allocation26 [shape = 'u8[512]{0}', space=vmem, size = 0x400, scoped, tag = 'input window, operand 19, single buffered']
    #allocation27 [shape = 'u8[8192]{0}', space=vmem, size = 0x2000, scoped, tag = 'output window, operand 0, single buffered']
    %25 = vsyncpa [#allocation4], 0
    %26 = vsyncpa [#allocation7], 0
    %27 = vsyncpa [#allocation10], 0
    %28 = vsyncpa [#allocation13], 0
    %29 = vsyncpa [#allocation16], 0
    %30 = vsyncpa [#allocation19], 0
    %31 = vsyncpa [#allocation22], 0
    %32 = vsyncpa [#allocation25], 0
    %33 = vsyncpa [#allocation5], 0
    // Predicated region
    $region2: #{tpu_custom_call.1} parent=1 // pred_check
      _
    $region3: #{tpu_custom_call.1} parent=1 // pred_check_branch
      %35 = sbr.rel (0) target = $region5
    $region4: #{tpu_custom_call.1} parent=1 // pred_region
      %s37 = ssub.s32 256, 256
      %38 = vsyncadd [#allocation4], %s37
      %s39 = sshll.u32 [#allocation3], 4
      %s40 = int_to_ptr.vmem [resolvable:$true] %s39
      %45 = dma.hbm_to_vmem [thread:$0]  %s0, 256, %s40, [#allocation4], 128, 128, 8
    $region5: #{tpu_custom_call.1} parent=1 // pred_fallthru
      _
    // Predicated region
    $region6: #{tpu_custom_call.1} parent=1 // pred_check
      _
    $region7: #{tpu_custom_call.1} parent=1 // pred_check_branch
      %47 = sbr.rel (0) target = $region9
    $region8: #{tpu_custom_call.1} parent=1 // pred_region
      %s49 = ssub.s32 32, 32
      %50 = vsyncadd [#allocation7], %s49
      %s52 = sshll.u32 [#allocation6], 4
      %s53 = int_to_ptr.vmem [resolvable:$true] %s52
      %55 = dma.hbm_to_vmem [thread:$0]  %s1, 32, %s53, [#allocation7]
    $region9: #{tpu_custom_call.1} parent=1 // pred_fallthru
      _
    // Predicated region
    $region10: #{tpu_custom_call.1} parent=1 // pred_check
      _
    $region11: #{tpu_custom_call.1} parent=1 // pred_check_branch
      %57 = sbr.rel (0) target = $region13
    $region12: #{tpu_custom_call.1} parent=1 // pred_region
      _
    $region13: #{tpu_custom_call.1} parent=1 // pred_fallthru
      _
    // Predicated region
    $region14: #{tpu_custom_call.1} parent=1 // pred_check
      _
    $region15: #{tpu_custom_call.1} parent=1 // pred_check_branch
      %59 = sbr.rel (0) target = $region17
    $region16: #{tpu_custom_call.1} parent=1 // pred_region
      _
    $region17: #{tpu_custom_call.1} parent=1 // pred_fallthru
      _
    // Predicated region
    $region18: #{tpu_custom_call.1} parent=1 // pred_check
      _
    $region19: #{tpu_custom_call.1} parent=1 // pred_check_branch
      %61 = sbr.rel (0) target = $region21
    $region20: #{tpu_custom_call.1} parent=1 // pred_region
      _
    $region21: #{tpu_custom_call.1} parent=1 // pred_fallthru
      _
    // Predicated region
    $region22: #{tpu_custom_call.1} parent=1 // pred_check
      _
    $region23: #{tpu_custom_call.1} parent=1 // pred_check_branch
      %63 = sbr.rel (0) target = $region25
    $region24: #{tpu_custom_call.1} parent=1 // pred_region
      %s65 = ssub.s32 32, 32
      %66 = vsyncadd [#allocation7], %s65
      %s67 = sshll.u32 [#allocation8], 4
      %s68 = int_to_ptr.vmem [resolvable:$true] %s67
      %73 = dma.hbm_to_vmem [thread:$0]  %s5, 32, %s68, [#allocation7], 16, 16, 1
    $region25: #{tpu_custom_call.1} parent=1 // pred_fallthru
      _
    // Predicated region
    $region26: #{tpu_custom_call.1} parent=1 // pred_check
      _
    $region27: #{tpu_custom_call.1} parent=1 // pred_check_branch
      %75 = sbr.rel (0) target = $region29
    $region28: #{tpu_custom_call.1} parent=1 // pred_region
      %s77 = ssub.s32 32, 32
      %78 = vsyncadd [#allocation10], %s77
      %s79 = sshll.u32 [#allocation9], 4
      %s80 = int_to_ptr.vmem [resolvable:$true] %s79
      %85 = dma.hbm_to_vmem [thread:$0]  %s6, 32, %s80, [#allocation10], 16, 16, 1
    $region29: #{tpu_custom_call.1} parent=1 // pred_fallthru
      _
    // Predicated region
    $region30: #{tpu_custom_call.1} parent=1 // pred_check
      _
    $region31: #{tpu_custom_call.1} parent=1 // pred_check_branch
      %87 = sbr.rel (0) target = $region33
    $region32: #{tpu_custom_call.1} parent=1 // pred_region
      %s89 = ssub.s32 32, 32
      %90 = vsyncadd [#allocation10], %s89
      %s91 = sshll.u32 [#allocation11], 4
      %s92 = int_to_ptr.vmem [resolvable:$true] %s91
      %97 = dma.hbm_to_vmem [thread:$0]  %s7, 32, %s92, [#allocation10], 16, 16, 1
    $region33: #{tpu_custom_call.1} parent=1 // pred_fallthru
      _
    // Predicated region
    $region34: #{tpu_custom_call.1} parent=1 // pred_check
      _
    $region35: #{tpu_custom_call.1} parent=1 // pred_check_branch
      %99 = sbr.rel (0) target = $region37
    $region36: #{tpu_custom_call.1} parent=1 // pred_region
      %s101 = ssub.s32 1024, 1024
      %102 = vsyncadd [#allocation13], %s101
      %s103 = sshll.u32 [#allocation12], 4
      %s104 = int_to_ptr.vmem [resolvable:$true] %s103
      %109 = dma.hbm_to_vmem [thread:$0]  %s8, 1024, %s104, [#allocation13], 128, 128, 8
    $region37: #{tpu_custom_call.1} parent=1 // pred_fallthru
      _
    // Predicated region
    $region38: #{tpu_custom_call.1} parent=1 // pred_check
      _
    $region39: #{tpu_custom_call.1} parent=1 // pred_check_branch
      %111 = sbr.rel (0) target = $region41
    $region40: #{tpu_custom_call.1} parent=1 // pred_region
      %s113 = ssub.s32 32, 32
      %114 = vsyncadd [#allocation13], %s113
      %s115 = sshll.u32 [#allocation14], 4
      %s116 = int_to_ptr.vmem [resolvable:$true] %s115
      %121 = dma.hbm_to_vmem [thread:$0]  %s9, 32, %s116, [#allocation13], 16, 16, 1
    $region41: #{tpu_custom_call.1} parent=1 // pred_fallthru
      _
    // Predicated region
    $region42: #{tpu_custom_call.1} parent=1 // pred_check
      _
    $region43: #{tpu_custom_call.1} parent=1 // pred_check_branch
      %123 = sbr.rel (0) target = $region45
    $region44: #{tpu_custom_call.1} parent=1 // pred_region
      %s125 = ssub.s32 32, 32
      %126 = vsyncadd [#allocation16], %s125
      %s127 = sshll.u32 [#allocation15], 4
      %s128 = int_to_ptr.vmem [resolvable:$true] %s127
      %133 = dma.hbm_to_vmem [thread:$0]  %s10, 32, %s128, [#allocation16], 16, 16, 1
    $region45: #{tpu_custom_call.1} parent=1 // pred_fallthru
      _
    // Predicated region
    $region46: #{tpu_custom_call.1} parent=1 // pred_check
      _
    $region47: #{tpu_custom_call.1} parent=1 // pred_check_branch
      %135 = sbr.rel (0) target = $region49
    $region48: #{tpu_custom_call.1} parent=1 // pred_region
      %s137 = ssub.s32 32, 32
      %138 = vsyncadd [#allocation16], %s137
      %s139 = sshll.u32 [#allocation17], 4
      %s140 = int_to_ptr.vmem [resolvable:$true] %s139
      %145 = dma.hbm_to_vmem [thread:$0]  %s11, 32, %s140, [#allocation16], 16, 16, 1
    $region49: #{tpu_custom_call.1} parent=1 // pred_fallthru
      _
    // Predicated region
    $region50: #{tpu_custom_call.1} parent=1 // pred_check
      _
    $region51: #{tpu_custom_call.1} parent=1 // pred_check_branch
      %147 = sbr.rel (0) target = $region53
    $region52: #{tpu_custom_call.1} parent=1 // pred_region
      %s149 = ssub.s32 32, 32
      %150 = vsyncadd [#allocation19], %s149
      %s151 = sshll.u32 [#allocation18], 4
      %s152 = int_to_ptr.vmem [resolvable:$true] %s151
      %157 = dma.hbm_to_vmem [thread:$0]  %s12, 32, %s152, [#allocation19], 16, 16, 1
    $region53: #{tpu_custom_call.1} parent=1 // pred_fallthru
      _
    // Predicated region
    $region54: #{tpu_custom_call.1} parent=1 // pred_check
      _
    $region55: #{tpu_custom_call.1} parent=1 // pred_check_branch
      %159 = sbr.rel (0) target = $region57
    $region56: #{tpu_custom_call.1} parent=1 // pred_region
      %s161 = ssub.s32 32, 32
      %162 = vsyncadd [#allocation19], %s161
      %s163 = sshll.u32 [#allocation20], 4
      %s164 = int_to_ptr.vmem [resolvable:$true] %s163
      %169 = dma.hbm_to_vmem [thread:$0]  %s13, 32, %s164, [#allocation19], 16, 16, 1
    $region57: #{tpu_custom_call.1} parent=1 // pred_fallthru
      _
    // Predicated region
    $region58: #{tpu_custom_call.1} parent=1 // pred_check
      _
    $region59: #{tpu_custom_call.1} parent=1 // pred_check_branch
      %171 = sbr.rel (0) target = $region61
    $region60: #{tpu_custom_call.1} parent=1 // pred_region
      %s173 = ssub.s32 1024, 1024
      %174 = vsyncadd [#allocation22], %s173
      %s175 = sshll.u32 [#allocation21], 4
      %s176 = int_to_ptr.vmem [resolvable:$true] %s175
      %181 = dma.hbm_to_vmem [thread:$0]  %s14, 1024, %s176, [#allocation22], 128, 128, 8
    $region61: #{tpu_custom_call.1} parent=1 // pred_fallthru
      _
    // Predicated region
    $region62: #{tpu_custom_call.1} parent=1 // pred_check
      _
    $region63: #{tpu_custom_call.1} parent=1 // pred_check_branch
      %183 = sbr.rel (0) target = $region65
    $region64: #{tpu_custom_call.1} parent=1 // pred_region
      %s185 = ssub.s32 32, 32
      %186 = vsyncadd [#allocation22], %s185
      %s187 = sshll.u32 [#allocation23], 4
      %s188 = int_to_ptr.vmem [resolvable:$true] %s187
      %193 = dma.hbm_to_vmem [thread:$0]  %s15, 32, %s188, [#allocation22], 16, 16, 1
    $region65: #{tpu_custom_call.1} parent=1 // pred_fallthru
      _
    // Predicated region
    $region66: #{tpu_custom_call.1} parent=1 // pred_check
      _
    $region67: #{tpu_custom_call.1} parent=1 // pred_check_branch
      %195 = sbr.rel (0) target = $region69
    $region68: #{tpu_custom_call.1} parent=1 // pred_region
      _
    $region69: #{tpu_custom_call.1} parent=1 // pred_fallthru
      _
    // Predicated region
    $region70: #{tpu_custom_call.1} parent=1 // pred_check
      _
    $region71: #{tpu_custom_call.1} parent=1 // pred_check_branch
      %197 = sbr.rel (0) target = $region73
    $region72: #{tpu_custom_call.1} parent=1 // pred_region
      %s199 = ssub.s32 32, 32
      %200 = vsyncadd [#allocation25], %s199
      %s201 = sshll.u32 [#allocation24], 4
      %s202 = int_to_ptr.vmem [resolvable:$true] %s201
      %207 = dma.hbm_to_vmem [thread:$0]  %s17, 32, %s202, [#allocation25], 16, 16, 1
    $region73: #{tpu_custom_call.1} parent=1 // pred_fallthru
      _
    // Predicated region
    $region74: #{tpu_custom_call.1} parent=1 // pred_check
      _
    $region75: #{tpu_custom_call.1} parent=1 // pred_check_branch
      %209 = sbr.rel (0) target = $region77
    $region76: #{tpu_custom_call.1} parent=1 // pred_region
      _
    $region77: #{tpu_custom_call.1} parent=1 // pred_fallthru
      _
    // Predicated region
    $region78: #{tpu_custom_call.1} parent=1 // pred_check
      _
    $region79: #{tpu_custom_call.1} parent=1 // pred_check_branch
      %211 = sbr.rel (0) target = $region81
    $region80: #{tpu_custom_call.1} parent=1 // pred_region
      %s213 = ssub.s32 16, 16
      %214 = vsyncadd [#allocation25], %s213
      %s216 = sshll.u32 [#allocation26], 4
      %s217 = int_to_ptr.vmem [resolvable:$true] %s216
      %219 = dma.hbm_to_vmem [thread:$0]  %s19, 16, %s217, [#allocation25]
    $region81: #{tpu_custom_call.1} parent=1 // pred_fallthru
      _
    // Predicated region
    $region82: #{tpu_custom_call.1} parent=1 // pred_check
      _
    $region83: #{tpu_custom_call.1} parent=1 // pred_check_branch
      %221 = sbr.rel (0) target = $region85
    $region84: #{tpu_custom_call.1} parent=1 // pred_region
      %222 = dma.done [#allocation4], 256
    $region85: #{tpu_custom_call.1} parent=1 // pred_fallthru
      _
    // Predicated region
    $region86: #{tpu_custom_call.1} parent=1 // pred_check
      _
    $region87: #{tpu_custom_call.1} parent=1 // pred_check_branch
      %224 = sbr.rel (0) target = $region89
    $region88: #{tpu_custom_call.1} parent=1 // pred_region
      %225 = dma.done [#allocation7], 32
    $region89: #{tpu_custom_call.1} parent=1 // pred_fallthru
      _
    // Predicated region
    $region90: #{tpu_custom_call.1} parent=1 // pred_check
      _
    $region91: #{tpu_custom_call.1} parent=1 // pred_check_branch
      %227 = sbr.rel (0) target = $region93
    $region92: #{tpu_custom_call.1} parent=1 // pred_region
      %228 = dma.done [#allocation7], 32
    $region93: #{tpu_custom_call.1} parent=1 // pred_fallthru
      _
    // Predicated region
    $region94: #{tpu_custom_call.1} parent=1 // pred_check
      _
    $region95: #{tpu_custom_call.1} parent=1 // pred_check_branch
      %230 = sbr.rel (0) target = $region97
    $region96: #{tpu_custom_call.1} parent=1 // pred_region
      %231 = dma.done [#allocation10], 32
    $region97: #{tpu_custom_call.1} parent=1 // pred_fallthru
      _
    // Predicated region
    $region98: #{tpu_custom_call.1} parent=1 // pred_check
      _
    $region99: #{tpu_custom_call.1} parent=1 // pred_check_branch
      %233 = sbr.rel (0) target = $region101
    $region100: #{tpu_custom_call.1} parent=1 // pred_region
      %234 = dma.done [#allocation10], 32
    $region101: #{tpu_custom_call.1} parent=1 // pred_fallthru
      _
    // Predicated region
    $region102: #{tpu_custom_call.1} parent=1 // pred_check
      _
    $region103: #{tpu_custom_call.1} parent=1 // pred_check_branch
      %236 = sbr.rel (0) target = $region105
    $region104: #{tpu_custom_call.1} parent=1 // pred_region
      %237 = dma.done [#allocation13], 1024
    $region105: #{tpu_custom_call.1} parent=1 // pred_fallthru
      _
    // Predicated region
    $region106: #{tpu_custom_call.1} parent=1 // pred_check
      _
    $region107: #{tpu_custom_call.1} parent=1 // pred_check_branch
      %239 = sbr.rel (0) target = $region109
    $region108: #{tpu_custom_call.1} parent=1 // pred_region
      %240 = dma.done [#allocation13], 32
    $region109: #{tpu_custom_call.1} parent=1 // pred_fallthru
      _
    // Predicated region
    $region110: #{tpu_custom_call.1} parent=1 // pred_check
      _
    $region111: #{tpu_custom_call.1} parent=1 // pred_check_branch
      %242 = sbr.rel (0) target = $region113
    $region112: #{tpu_custom_call.1} parent=1 // pred_region
      %243 = dma.done [#allocation16], 32
    $region113: #{tpu_custom_call.1} parent=1 // pred_fallthru
      _
    // Predicated region
    $region114: #{tpu_custom_call.1} parent=1 // pred_check
      _
    $region115: #{tpu_custom_call.1} parent=1 // pred_check_branch
      %245 = sbr.rel (0) target = $region117
    $region116: #{tpu_custom_call.1} parent=1 // pred_region
      %246 = dma.done [#allocation16], 32
    $region117: #{tpu_custom_call.1} parent=1 // pred_fallthru
      _
    // Predicated region
    $region118: #{tpu_custom_call.1} parent=1 // pred_check
      _
    $region119: #{tpu_custom_call.1} parent=1 // pred_check_branch
      %248 = sbr.rel (0) target = $region121
    $region120: #{tpu_custom_call.1} parent=1 // pred_region
      %249 = dma.done [#allocation19], 32
    $region121: #{tpu_custom_call.1} parent=1 // pred_fallthru
      _
    // Predicated region
    $region122: #{tpu_custom_call.1} parent=1 // pred_check
      _
    $region123: #{tpu_custom_call.1} parent=1 // pred_check_branch
      %251 = sbr.rel (0) target = $region125
    $region124: #{tpu_custom_call.1} parent=1 // pred_region
      %252 = dma.done [#allocation19], 32
    $region125: #{tpu_custom_call.1} parent=1 // pred_fallthru
      _
    // Predicated region
    $region126: #{tpu_custom_call.1} parent=1 // pred_check
      _
    $region127: #{tpu_custom_call.1} parent=1 // pred_check_branch
      %254 = sbr.rel (0) target = $region129
    $region128: #{tpu_custom_call.1} parent=1 // pred_region
      %255 = dma.done [#allocation22], 1024
    $region129: #{tpu_custom_call.1} parent=1 // pred_fallthru
      _
    // Predicated region
    $region130: #{tpu_custom_call.1} parent=1 // pred_check
      _
    $region131: #{tpu_custom_call.1} parent=1 // pred_check_branch
      %257 = sbr.rel (0) target = $region133
    $region132: #{tpu_custom_call.1} parent=1 // pred_region
      %258 = dma.done [#allocation22], 32
    $region133: #{tpu_custom_call.1} parent=1 // pred_fallthru
      _
    // Predicated region
    $region134: #{tpu_custom_call.1} parent=1 // pred_check
      _
    $region135: #{tpu_custom_call.1} parent=1 // pred_check_branch
      %260 = sbr.rel (0) target = $region137
    $region136: #{tpu_custom_call.1} parent=1 // pred_region
      %261 = dma.done [#allocation25], 32
    $region137: #{tpu_custom_call.1} parent=1 // pred_fallthru
      _
    // Predicated region
    $region138: #{tpu_custom_call.1} parent=1 // pred_check
      _
    $region139: #{tpu_custom_call.1} parent=1 // pred_check_branch
      %263 = sbr.rel (0) target = $region141
    $region140: #{tpu_custom_call.1} parent=1 // pred_region
      %264 = dma.done [#allocation25], 16
    $region141: #{tpu_custom_call.1} parent=1 // pred_fallthru
      _
    %v265 = vlaneseq
    %v266 = vshrl.u32 %v265, 7
    %v267 = vlaneseq
    %v268 = vand.u32 %v267, 127
    %vm269 = vcmp.le.s32.totalorder %v268, %v266
    %v270 = vsel %vm269, 0.0, -inf
    %v271 = vld [vmem:[#allocation6] sm:$0x3]
    %vm272 = vcmp.gt.f32.partialorder %v271, 0.5
    %v273 = vsel %vm272, -inf, 0.0
    %v276 = vunpack.c.l.s4 1966171168
    %v277 = vunpack.c.0.s8 %v276
    %v278 = vlaneseq
    %v279 = vshrl.u32 %v278, 7
    %v280 = vsub.s32 %v277, %v279
    %v281 = vrot.slane %v273, %v280
    %v282 = vcombine.high %v281, %v281
    %v284 = vunpack.c.l.s4 1966171168
    %v285 = vunpack.c.0.s8 %v284
    %v286 = vlaneseq
    %v287 = vshrl.u32 %v286, 7
    %v288 = vsub.s32 %v285, %v287
    %v289 = vrot.slane %v281, %v288
    %v291 = vunpack.c.l.s4 1966171168
    %v292 = vunpack.c.0.s8 %v291
    %v293 = vlaneseq
    %v294 = vshrl.u32 %v293, 7
    %v295 = vsub.s32 %v292, %v294
    %v296 = vrot.slane %v282, %v295
    %v297 = vlaneseq
    %v298 = vshrl.u32 %v297, 7
    %v299 = vsub.s32 0, %v298
    %v300 = vrot.slane %v289, %v299
    %v301 = vlaneseq
    %v302 = vshrl.u32 %v301, 7
    %v303 = vsub.s32 0, %v302
    %v304 = vrot.slane %v296, %v303
    %v307 = vadd.f32 %v270, %v300
    %v308 = vadd.f32 %v270, %v304
    %v309 = vld [vmem:[#allocation3] sm:$0xff]
    %v310 = vld [vmem:[#allocation3 + $0x8] sm:$0xff]
    %v311 = vld [vmem:[%s2] sm:$0xff]
    %v312 = vld [vmem:[%s2 + $0x8] sm:$0xff]
    %v313 = vld [vmem:[%s2 + $0x10] sm:$0xff]
    %v314 = vld [vmem:[%s2 + $0x18] sm:$0xff]
    %v315 = vld [vmem:[#allocation8] sm:$0x1]
    %v317 = vlaneseq
    %v318 = vshrl.u32 %v317, 7
    %v319 = vsub.s32 0, %v318
    %v320 = vrot.slane %v315, %v319
    %vm322 = vcmask 261120
    %v324 = vsel %vm322, %v309, 0
    %v327 = vsel %vm322, %v310, 0
    %329 = vmatprep.subr.mxu0 0.0
    %330 = vmatpush1.msra.mxu0 0.0
    %331 = vmatprep.subr.mxu0 0.0
    %332 = vmatpush1.msra.mxu0 0.0
    %333 = vmatprep.subr.mxu0 0.0
    %334 = vmatpush1.msra.mxu0 0.0
    %335 = vmatprep.subr.mxu0 0.0
    %336 = vmatpush1.msra.mxu0 0.0
    %337 = vmatprep.subr.mxu0 0.0
    %338 = vmatpush1.msra.mxu0 0.0
    %339 = vmatprep.subr.mxu0 0.0
    %340 = vmatpush1.msra.mxu0 0.0
    %341 = vmatprep.subr.mxu0 0.0
    %342 = vmatpush1.msra.mxu0 0.0
    %343 = vmatprep.subr.mxu0 0.0
    %344 = vmatpush1.msra.mxu0 0.0
    %345 = vmatprep.subr.mxu0 0.0
    %346 = vmatpush1.msra.mxu0 0.0
    %347 = vmatprep.subr.mxu0 0.0
    %348 = vmatpush1.msra.mxu0 0.0
    %349 = vmatprep.subr.mxu0 0.0
    %350 = vmatpush1.msra.mxu0 0.0
    %351 = vmatprep.subr.mxu0 0.0
    %352 = vmatpush1.msra.mxu0 0.0
    %353 = vmatprep.subr.mxu0 0.0
    %354 = vmatpush1.msra.mxu0 %v314
    %355 = vmatprep.subr.mxu0 0.0
    %356 = vmatpush1.msra.mxu0 %v313
    %357 = vmatprep.subr.mxu0 0.0
    %358 = vmatpush1.msra.mxu0 %v312
    %359 = vmatprep.subr.mxu0 0.0
    %360 = vmatpush1.msra.mxu0 %v311
    %361 = vmatprep.subr.mxu0 0.0
    %362 = vmatpush2.msra.mxu0 0.0
    %363 = vmatprep.subr.mxu0 0.0
    %364 = vmatpush2.msra.mxu0 0.0
    %365 = vmatprep.subr.mxu0 0.0
    %366 = vmatpush2.msra.mxu0 0.0
    %367 = vmatprep.subr.mxu0 0.0
    %368 = vmatpush2.msra.mxu0 0.0
    %369 = vmatprep.subr.mxu0 0.0
    %370 = vmatpush2.msra.mxu0 0.0
    %371 = vmatprep.subr.mxu0 0.0
    %372 = vmatpush2.msra.mxu0 0.0
    %373 = vmatprep.subr.mxu0 0.0
    %374 = vmatpush2.msra.mxu0 0.0
    %375 = vmatprep.subr.mxu0 0.0
    %376 = vmatpush2.msra.mxu0 0.0
    %377 = vmatprep.subr.mxu0 0.0
    %378 = vmatpush2.msra.mxu0 0.0
    %379 = vmatprep.subr.mxu0 0.0
    %380 = vmatpush2.msra.mxu0 0.0
    %381 = vmatprep.subr.mxu0 0.0
    %382 = vmatpush2.msra.mxu0 0.0
    %383 = vmatprep.subr.mxu0 0.0
    %384 = vmatpush2.msra.mxu0 0.0
    %385 = vmatprep.subr.mxu0 0.0
    %386 = vmatpush2.msra.mxu0 0.0
    %387 = vmatprep.subr.mxu0 0.0
    %388 = vmatpush2.msra.mxu0 0.0
    %389 = vmatprep.subr.mxu0 0.0
    %390 = vmatpush2.msra.mxu0 0.0
    %391 = vmatprep.subr.mxu0 0.0
    %392 = vmatpush2.msra.mxu0 0.0
    %393 = vmatprep.mubr.f32.mxu0 0.0
    %394 = vmatmul.mubr.f32.gmra.mxu0 %v324
    %v395 = vpop.f32.mrf.mxu0
    %v396 = vadd.f32 %v320, %v395
    %v397 = vpop.f32.mrf.mxu0
    %398 = vmatprep.mubr.f32.mxu0 0.0
    %399 = vmatmul.mubr.f32.gmra.mxu0 %v327
    %v400 = vpop.f32.mrf.mxu0
    %v401 = vadd.f32 %v320, %v400
    %v402 = vpop.f32.mrf.mxu0
    %403 = vdwg.mxu0
    %v404 = vmul.f32 %v396, 0.35355338
    %v405 = vmul.f32 %v401, 0.35355338
    %v406 = vld [vmem:[%s3] sm:$0xff]
    %v407 = vld [vmem:[%s3 + $0x8] sm:$0xff]
    %v408 = vld [vmem:[%s3 + $0x10] sm:$0xff]
    %v409 = vld [vmem:[%s3 + $0x18] sm:$0xff]
    %v410 = vld [vmem:[#allocation9] sm:$0x1]
    %v412 = vlaneseq
    %v413 = vshrl.u32 %v412, 7
    %v414 = vsub.s32 0, %v413
    %v415 = vrot.slane %v410, %v414
    %417 = vmatprep.subr.mxu0 0.0
    %418 = vmatpush1.msra.mxu0 0.0
    %419 = vmatprep.subr.mxu0 0.0
    %420 = vmatpush1.msra.mxu0 0.0
    %421 = vmatprep.subr.mxu0 0.0
    %422 = vmatpush1.msra.mxu0 0.0
    %423 = vmatprep.subr.mxu0 0.0
    %424 = vmatpush1.msra.mxu0 0.0
    %425 = vmatprep.subr.mxu0 0.0
    %426 = vmatpush1.msra.mxu0 0.0
    %427 = vmatprep.subr.mxu0 0.0
    %428 = vmatpush1.msra.mxu0 0.0
    %429 = vmatprep.subr.mxu0 0.0
    %430 = vmatpush1.msra.mxu0 0.0
    %431 = vmatprep.subr.mxu0 0.0
    %432 = vmatpush1.msra.mxu0 0.0
    %433 = vmatprep.subr.mxu0 0.0
    %434 = vmatpush1.msra.mxu0 0.0
    %435 = vmatprep.subr.mxu0 0.0
    %436 = vmatpush1.msra.mxu0 0.0
    %437 = vmatprep.subr.mxu0 0.0
    %438 = vmatpush1.msra.mxu0 0.0
    %439 = vmatprep.subr.mxu0 0.0
    %440 = vmatpush1.msra.mxu0 0.0
    %441 = vmatprep.subr.mxu0 0.0
    %442 = vmatpush1.msra.mxu0 %v409
    %443 = vmatprep.subr.mxu0 0.0
    %444 = vmatpush1.msra.mxu0 %v408
    %445 = vmatprep.subr.mxu0 0.0
    %446 = vmatpush1.msra.mxu0 %v407
    %447 = vmatprep.subr.mxu0 0.0
    %448 = vmatpush1.msra.mxu0 %v406
    %449 = vmatprep.subr.mxu0 0.0
    %450 = vmatpush2.msra.mxu0 0.0
    %451 = vmatprep.subr.mxu0 0.0
    %452 = vmatpush2.msra.mxu0 0.0
    %453 = vmatprep.subr.mxu0 0.0
    %454 = vmatpush2.msra.mxu0 0.0
    %455 = vmatprep.subr.mxu0 0.0
    %456 = vmatpush2.msra.mxu0 0.0
    %457 = vmatprep.subr.mxu0 0.0
    %458 = vmatpush2.msra.mxu0 0.0
    %459 = vmatprep.subr.mxu0 0.0
    %460 = vmatpush2.msra.mxu0 0.0
    %461 = vmatprep.subr.mxu0 0.0
    %462 = vmatpush2.msra.mxu0 0.0
    %463 = vmatprep.subr.mxu0 0.0
    %464 = vmatpush2.msra.mxu0 0.0
    %465 = vmatprep.subr.mxu0 0.0
    %466 = vmatpush2.msra.mxu0 0.0
    %467 = vmatprep.subr.mxu0 0.0
    %468 = vmatpush2.msra.mxu0 0.0
    %469 = vmatprep.subr.mxu0 0.0
    %470 = vmatpush2.msra.mxu0 0.0
    %471 = vmatprep.subr.mxu0 0.0
    %472 = vmatpush2.msra.mxu0 0.0
    %473 = vmatprep.subr.mxu0 0.0
    %474 = vmatpush2.msra.mxu0 0.0
    %475 = vmatprep.subr.mxu0 0.0
    %476 = vmatpush2.msra.mxu0 0.0
    %477 = vmatprep.subr.mxu0 0.0
    %478 = vmatpush2.msra.mxu0 0.0
    %479 = vmatprep.subr.mxu0 0.0
    %480 = vmatpush2.msra.mxu0 0.0
    %481 = vmatprep.mubr.f32.mxu0 0.0
    %482 = vmatmul.mubr.f32.gmra.mxu0 %v324
    %v483 = vpop.f32.mrf.mxu0
    %v484 = vadd.f32 %v415, %v483
    %v485 = vpop.f32.mrf.mxu0
    %486 = vmatprep.mubr.f32.mxu0 0.0
    %487 = vmatmul.mubr.f32.gmra.mxu0 %v327
    %v488 = vpop.f32.mrf.mxu0
    %v489 = vadd.f32 %v415, %v488
    %v490 = vpop.f32.mrf.mxu0
    %491 = vdwg.mxu0
    %v492 = vld [vmem:[%s4] sm:$0xff]
    %v493 = vld [vmem:[%s4 + $0x8] sm:$0xff]
    %v494 = vld [vmem:[%s4 + $0x10] sm:$0xff]
    %v495 = vld [vmem:[%s4 + $0x18] sm:$0xff]
    %v496 = vld [vmem:[#allocation11] sm:$0x1]
    %v498 = vlaneseq
    %v499 = vshrl.u32 %v498, 7
    %v500 = vsub.s32 0, %v499
    %v501 = vrot.slane %v496, %v500
    %503 = vmatprep.subr.mxu0 0.0
    %504 = vmatpush1.msra.mxu0 0.0
    %505 = vmatprep.subr.mxu0 0.0
    %506 = vmatpush1.msra.mxu0 0.0
    %507 = vmatprep.subr.mxu0 0.0
    %508 = vmatpush1.msra.mxu0 0.0
    %509 = vmatprep.subr.mxu0 0.0
    %510 = vmatpush1.msra.mxu0 0.0
    %511 = vmatprep.subr.mxu0 0.0
    %512 = vmatpush1.msra.mxu0 0.0
    %513 = vmatprep.subr.mxu0 0.0
    %514 = vmatpush1.msra.mxu0 0.0
    %515 = vmatprep.subr.mxu0 0.0
    %516 = vmatpush1.msra.mxu0 0.0
    %517 = vmatprep.subr.mxu0 0.0
    %518 = vmatpush1.msra.mxu0 0.0
    %519 = vmatprep.subr.mxu0 0.0
    %520 = vmatpush1.msra.mxu0 0.0
    %521 = vmatprep.subr.mxu0 0.0
    %522 = vmatpush1.msra.mxu0 0.0
    %523 = vmatprep.subr.mxu0 0.0
    %524 = vmatpush1.msra.mxu0 0.0
    %525 = vmatprep.subr.mxu0 0.0
    %526 = vmatpush1.msra.mxu0 0.0
    %527 = vmatprep.subr.mxu0 0.0
    %528 = vmatpush1.msra.mxu0 %v495
    %529 = vmatprep.subr.mxu0 0.0
    %530 = vmatpush1.msra.mxu0 %v494
    %531 = vmatprep.subr.mxu0 0.0
    %532 = vmatpush1.msra.mxu0 %v493
    %533 = vmatprep.subr.mxu0 0.0
    %534 = vmatpush1.msra.mxu0 %v492
    %535 = vmatprep.subr.mxu0 0.0
    %536 = vmatpush2.msra.mxu0 0.0
    %537 = vmatprep.subr.mxu0 0.0
    %538 = vmatpush2.msra.mxu0 0.0
    %539 = vmatprep.subr.mxu0 0.0
    %540 = vmatpush2.msra.mxu0 0.0
    %541 = vmatprep.subr.mxu0 0.0
    %542 = vmatpush2.msra.mxu0 0.0
    %543 = vmatprep.subr.mxu0 0.0
    %544 = vmatpush2.msra.mxu0 0.0
    %545 = vmatprep.subr.mxu0 0.0
    %546 = vmatpush2.msra.mxu0 0.0
    %547 = vmatprep.subr.mxu0 0.0
    %548 = vmatpush2.msra.mxu0 0.0
    %549 = vmatprep.subr.mxu0 0.0
    %550 = vmatpush2.msra.mxu0 0.0
    %551 = vmatprep.subr.mxu0 0.0
    %552 = vmatpush2.msra.mxu0 0.0
    %553 = vmatprep.subr.mxu0 0.0
    %554 = vmatpush2.msra.mxu0 0.0
    %555 = vmatprep.subr.mxu0 0.0
    %556 = vmatpush2.msra.mxu0 0.0
    %557 = vmatprep.subr.mxu0 0.0
    %558 = vmatpush2.msra.mxu0 0.0
    %559 = vmatprep.subr.mxu0 0.0
    %560 = vmatpush2.msra.mxu0 0.0
    %561 = vmatprep.subr.mxu0 0.0
    %562 = vmatpush2.msra.mxu0 0.0
    %563 = vmatprep.subr.mxu0 0.0
    %564 = vmatpush2.msra.mxu0 0.0
    %565 = vmatprep.subr.mxu0 0.0
    %566 = vmatpush2.msra.mxu0 0.0
    %567 = vmatprep.mubr.f32.mxu0 0.0
    %568 = vmatmul.mubr.f32.gmra.mxu0 %v324
    %v569 = vpop.f32.mrf.mxu0
    %v570 = vadd.f32 %v501, %v569
    %v571 = vpop.f32.mrf.mxu0
    %572 = vmatprep.mubr.f32.mxu0 0.0
    %573 = vmatmul.mubr.f32.gmra.mxu0 %v327
    %v574 = vpop.f32.mrf.mxu0
    %v575 = vadd.f32 %v501, %v574
    %v576 = vpop.f32.mrf.mxu0
    %577 = vdwg.mxu0
    %vm578 = vcmask 64512
    %v580 = vsel %vm578, %v404, 0
    %v583 = vsel %vm578, %v484, 0
    %585 = vmatprep.subr.mxu0 0.0
    %586 = vmatpush1.xpose.msra.mxu0 0.0
    %587 = vmatprep.subr.mxu0 0.0
    %588 = vmatpush1.xpose.msra.mxu0 0.0
    %589 = vmatprep.subr.mxu0 0.0
    %590 = vmatpush1.xpose.msra.mxu0 0.0
    %591 = vmatprep.subr.mxu0 0.0
    %592 = vmatpush1.xpose.msra.mxu0 0.0
    %593 = vmatprep.subr.mxu0 0.0
    %594 = vmatpush1.xpose.msra.mxu0 0.0
    %595 = vmatprep.subr.mxu0 0.0
    %596 = vmatpush1.xpose.msra.mxu0 0.0
    %597 = vmatprep.subr.mxu0 0.0
    %598 = vmatpush1.xpose.msra.mxu0 0.0
    %599 = vmatprep.subr.mxu0 0.0
    %600 = vmatpush1.xpose.msra.mxu0 0.0
    %601 = vmatprep.subr.mxu0 0.0
    %602 = vmatpush1.xpose.msra.mxu0 0.0
    %603 = vmatprep.subr.mxu0 0.0
    %604 = vmatpush1.xpose.msra.mxu0 0.0
    %605 = vmatprep.subr.mxu0 0.0
    %606 = vmatpush1.xpose.msra.mxu0 0.0
    %607 = vmatprep.subr.mxu0 0.0
    %608 = vmatpush1.xpose.msra.mxu0 0.0
    %609 = vmatprep.subr.mxu0 0.0
    %610 = vmatpush1.xpose.msra.mxu0 0.0
    %611 = vmatprep.subr.mxu0 0.0
    %612 = vmatpush1.xpose.msra.mxu0 0.0
    %613 = vmatprep.subr.mxu0 0.0
    %614 = vmatpush1.xpose.msra.mxu0 0.0
    %615 = vmatprep.subr.mxu0 0.0
    %616 = vmatpush1.xpose.msra.mxu0 %v583
    %617 = vmatprep.subr.mxu0 0.0
    %618 = vmatpush2.xpose.msra.mxu0 0.0
    %619 = vmatprep.subr.mxu0 0.0
    %620 = vmatpush2.xpose.msra.mxu0 0.0
    %621 = vmatprep.subr.mxu0 0.0
    %622 = vmatpush2.xpose.msra.mxu0 0.0
    %623 = vmatprep.subr.mxu0 0.0
    %624 = vmatpush2.xpose.msra.mxu0 0.0
    %625 = vmatprep.subr.mxu0 0.0
    %626 = vmatpush2.xpose.msra.mxu0 0.0
    %627 = vmatprep.subr.mxu0 0.0
    %628 = vmatpush2.xpose.msra.mxu0 0.0
    %629 = vmatprep.subr.mxu0 0.0
    %630 = vmatpush2.xpose.msra.mxu0 0.0
    %631 = vmatprep.subr.mxu0 0.0
    %632 = vmatpush2.xpose.msra.mxu0 0.0
    %633 = vmatprep.subr.mxu0 0.0
    %634 = vmatpush2.xpose.msra.mxu0 0.0
    %635 = vmatprep.subr.mxu0 0.0
    %636 = vmatpush2.xpose.msra.mxu0 0.0
    %637 = vmatprep.subr.mxu0 0.0
    %638 = vmatpush2.xpose.msra.mxu0 0.0
    %639 = vmatprep.subr.mxu0 0.0
    %640 = vmatpush2.xpose.msra.mxu0 0.0
    %641 = vmatprep.subr.mxu0 0.0
    %642 = vmatpush2.xpose.msra.mxu0 0.0
    %643 = vmatprep.subr.mxu0 0.0
    %644 = vmatpush2.xpose.msra.mxu0 0.0
    %645 = vmatprep.subr.mxu0 0.0
    %646 = vmatpush2.xpose.msra.mxu0 0.0
    %647 = vmatprep.subr.mxu0 0.0
    %648 = vmatpush2.xpose.msra.mxu0 0.0
    %649 = vmatprep.mubr.f32.mxu0 0.0
    %650 = vmatmul.mubr.f32.gmra.mxu0 %v580
    %v651 = vpop.f32.mrf.mxu0
    %v652 = vadd.f32 %v307, %v651
    %v653 = vpop.f32.mrf.mxu0
    %654 = vdwg.mxu0
    %v656 = vsel %vm578, %v405, 0
    %v659 = vsel %vm578, %v489, 0
    %661 = vmatprep.subr.mxu0 0.0
    %662 = vmatpush1.xpose.msra.mxu0 0.0
    %663 = vmatprep.subr.mxu0 0.0
    %664 = vmatpush1.xpose.msra.mxu0 0.0
    %665 = vmatprep.subr.mxu0 0.0
    %666 = vmatpush1.xpose.msra.mxu0 0.0
    %667 = vmatprep.subr.mxu0 0.0
    %668 = vmatpush1.xpose.msra.mxu0 0.0
    %669 = vmatprep.subr.mxu0 0.0
    %670 = vmatpush1.xpose.msra.mxu0 0.0
    %671 = vmatprep.subr.mxu0 0.0
    %672 = vmatpush1.xpose.msra.mxu0 0.0
    %673 = vmatprep.subr.mxu0 0.0
    %674 = vmatpush1.xpose.msra.mxu0 0.0
    %675 = vmatprep.subr.mxu0 0.0
    %676 = vmatpush1.xpose.msra.mxu0 0.0
    %677 = vmatprep.subr.mxu0 0.0
    %678 = vmatpush1.xpose.msra.mxu0 0.0
    %679 = vmatprep.subr.mxu0 0.0
    %680 = vmatpush1.xpose.msra.mxu0 0.0
    %681 = vmatprep.subr.mxu0 0.0
    %682 = vmatpush1.xpose.msra.mxu0 0.0
    %683 = vmatprep.subr.mxu0 0.0
    %684 = vmatpush1.xpose.msra.mxu0 0.0
    %685 = vmatprep.subr.mxu0 0.0
    %686 = vmatpush1.xpose.msra.mxu0 0.0
    %687 = vmatprep.subr.mxu0 0.0
    %688 = vmatpush1.xpose.msra.mxu0 0.0
    %689 = vmatprep.subr.mxu0 0.0
    %690 = vmatpush1.xpose.msra.mxu0 0.0
    %691 = vmatprep.subr.mxu0 0.0
    %692 = vmatpush1.xpose.msra.mxu0 %v659
    %693 = vmatprep.subr.mxu0 0.0
    %694 = vmatpush2.xpose.msra.mxu0 0.0
    %695 = vmatprep.subr.mxu0 0.0
    %696 = vmatpush2.xpose.msra.mxu0 0.0
    %697 = vmatprep.subr.mxu0 0.0
    %698 = vmatpush2.xpose.msra.mxu0 0.0
    %699 = vmatprep.subr.mxu0 0.0
    %700 = vmatpush2.xpose.msra.mxu0 0.0
    %701 = vmatprep.subr.mxu0 0.0
    %702 = vmatpush2.xpose.msra.mxu0 0.0
    %703 = vmatprep.subr.mxu0 0.0
    %704 = vmatpush2.xpose.msra.mxu0 0.0
    %705 = vmatprep.subr.mxu0 0.0
    %706 = vmatpush2.xpose.msra.mxu0 0.0
    %707 = vmatprep.subr.mxu0 0.0
    %708 = vmatpush2.xpose.msra.mxu0 0.0
    %709 = vmatprep.subr.mxu0 0.0
    %710 = vmatpush2.xpose.msra.mxu0 0.0
    %711 = vmatprep.subr.mxu0 0.0
    %712 = vmatpush2.xpose.msra.mxu0 0.0
    %713 = vmatprep.subr.mxu0 0.0
    %714 = vmatpush2.xpose.msra.mxu0 0.0
    %715 = vmatprep.subr.mxu0 0.0
    %716 = vmatpush2.xpose.msra.mxu0 0.0
    %717 = vmatprep.subr.mxu0 0.0
    %718 = vmatpush2.xpose.msra.mxu0 0.0
    %719 = vmatprep.subr.mxu0 0.0
    %720 = vmatpush2.xpose.msra.mxu0 0.0
    %721 = vmatprep.subr.mxu0 0.0
    %722 = vmatpush2.xpose.msra.mxu0 0.0
    %723 = vmatprep.subr.mxu0 0.0
    %724 = vmatpush2.xpose.msra.mxu0 0.0
    %725 = vmatprep.mubr.f32.mxu0 0.0
    %726 = vmatmul.mubr.f32.gmra.mxu0 %v656
    %v727 = vpop.f32.mrf.mxu0
    %v728 = vadd.f32 %v308, %v727
    %v729 = vpop.f32.mrf.mxu0
    %730 = vdwg.mxu0
    %v731 = vsel %vm578, %v652, -inf
    %732 = vmax.xlane.f32.xlu0 %v731
    %v733 = vpop.xlane.xlu0 %732
    %v734 = vsel %vm578, %v728, -inf
    %735 = vmax.xlane.f32.xlu0 %v734
    %v736 = vpop.xlane.xlu0 %735
    %v737 = vsub.f32 %v652, %v733
    %v738 = vsub.f32 %v728, %v736
    %v739 = vmul.f32 %v737, 1.442695
    %v740 = vpow.pop %v739
    %v741 = vmul.f32 %v738, 1.442695
    %v742 = vpow.pop %v741
    %v743 = vsel %vm578, %v740, 0.0
    %744 = vadd.xlane.f32.xlu0 %v743
    %v745 = vpop.xlane.xlu0 %744
    %v746 = vsel %vm578, %v742, 0.0
    %747 = vadd.xlane.f32.xlu0 %v746
    %v748 = vpop.xlane.xlu0 %747
    %v749 = vrcp.pop %v745
    %v750 = vrcp.pop %v748
    %v751 = vmul.f32 %v740, %v749
    %v752 = vmul.f32 %v742, %v750
    %v754 = vsel %vm578, %v751, 0
    %756 = vmatprep.subr.mxu0 0.0
    %757 = vmatpush1.msra.mxu0 0.0
    %758 = vmatprep.subr.mxu0 0.0
    %759 = vmatpush1.msra.mxu0 0.0
    %760 = vmatprep.subr.mxu0 0.0
    %761 = vmatpush1.msra.mxu0 0.0
    %762 = vmatprep.subr.mxu0 0.0
    %763 = vmatpush1.msra.mxu0 0.0
    %764 = vmatprep.subr.mxu0 0.0
    %765 = vmatpush1.msra.mxu0 0.0
    %766 = vmatprep.subr.mxu0 0.0
    %767 = vmatpush1.msra.mxu0 0.0
    %768 = vmatprep.subr.mxu0 0.0
    %769 = vmatpush1.msra.mxu0 0.0
    %770 = vmatprep.subr.mxu0 0.0
    %771 = vmatpush1.msra.mxu0 0.0
    %772 = vmatprep.subr.mxu0 0.0
    %773 = vmatpush1.msra.mxu0 0.0
    %774 = vmatprep.subr.mxu0 0.0
    %775 = vmatpush1.msra.mxu0 0.0
    %776 = vmatprep.subr.mxu0 0.0
    %777 = vmatpush1.msra.mxu0 0.0
    %778 = vmatprep.subr.mxu0 0.0
    %779 = vmatpush1.msra.mxu0 0.0
    %780 = vmatprep.subr.mxu0 0.0
    %781 = vmatpush1.msra.mxu0 0.0
    %782 = vmatprep.subr.mxu0 0.0
    %783 = vmatpush1.msra.mxu0 0.0
    %784 = vmatprep.subr.mxu0 0.0
    %785 = vmatpush1.msra.mxu0 0.0
    %786 = vmatprep.subr.mxu0 0.0
    %787 = vmatpush1.msra.mxu0 %v570
    %788 = vmatprep.subr.mxu0 0.0
    %789 = vmatpush2.msra.mxu0 0.0
    %790 = vmatprep.subr.mxu0 0.0
    %791 = vmatpush2.msra.mxu0 0.0
    %792 = vmatprep.subr.mxu0 0.0
    %793 = vmatpush2.msra.mxu0 0.0
    %794 = vmatprep.subr.mxu0 0.0
    %795 = vmatpush2.msra.mxu0 0.0
    %796 = vmatprep.subr.mxu0 0.0
    %797 = vmatpush2.msra.mxu0 0.0
    %798 = vmatprep.subr.mxu0 0.0
    %799 = vmatpush2.msra.mxu0 0.0
    %800 = vmatprep.subr.mxu0 0.0
    %801 = vmatpush2.msra.mxu0 0.0
    %802 = vmatprep.subr.mxu0 0.0
    %803 = vmatpush2.msra.mxu0 0.0
    %804 = vmatprep.subr.mxu0 0.0
    %805 = vmatpush2.msra.mxu0 0.0
    %806 = vmatprep.subr.mxu0 0.0
    %807 = vmatpush2.msra.mxu0 0.0
    %808 = vmatprep.subr.mxu0 0.0
    %809 = vmatpush2.msra.mxu0 0.0
    %810 = vmatprep.subr.mxu0 0.0
    %811 = vmatpush2.msra.mxu0 0.0
    %812 = vmatprep.subr.mxu0 0.0
    %813 = vmatpush2.msra.mxu0 0.0
    %814 = vmatprep.subr.mxu0 0.0
    %815 = vmatpush2.msra.mxu0 0.0
    %816 = vmatprep.subr.mxu0 0.0
    %817 = vmatpush2.msra.mxu0 0.0
    %818 = vmatprep.subr.mxu0 0.0
    %819 = vmatpush2.msra.mxu0 0.0
    %820 = vmatprep.mubr.f32.mxu0 0.0
    %821 = vmatmul.mubr.f32.gmra.mxu0 %v754
    %v822 = vpop.f32.mrf.mxu0
    %v823 = vadd.f32 0.0, %v822
    %v824 = vpop.f32.mrf.mxu0
    %825 = vdwg.mxu0
    %v827 = vsel %vm578, %v752, 0
    %829 = vmatprep.subr.mxu0 0.0
    %830 = vmatpush1.msra.mxu0 0.0
    %831 = vmatprep.subr.mxu0 0.0
    %832 = vmatpush1.msra.mxu0 0.0
    %833 = vmatprep.subr.mxu0 0.0
    %834 = vmatpush1.msra.mxu0 0.0
    %835 = vmatprep.subr.mxu0 0.0
    %836 = vmatpush1.msra.mxu0 0.0
    %837 = vmatprep.subr.mxu0 0.0
    %838 = vmatpush1.msra.mxu0 0.0
    %839 = vmatprep.subr.mxu0 0.0
    %840 = vmatpush1.msra.mxu0 0.0
    %841 = vmatprep.subr.mxu0 0.0
    %842 = vmatpush1.msra.mxu0 0.0
    %843 = vmatprep.subr.mxu0 0.0
    %844 = vmatpush1.msra.mxu0 0.0
    %845 = vmatprep.subr.mxu0 0.0
    %846 = vmatpush1.msra.mxu0 0.0
    %847 = vmatprep.subr.mxu0 0.0
    %848 = vmatpush1.msra.mxu0 0.0
    %849 = vmatprep.subr.mxu0 0.0
    %850 = vmatpush1.msra.mxu0 0.0
    %851 = vmatprep.subr.mxu0 0.0
    %852 = vmatpush1.msra.mxu0 0.0
    %853 = vmatprep.subr.mxu0 0.0
    %854 = vmatpush1.msra.mxu0 0.0
    %855 = vmatprep.subr.mxu0 0.0
    %856 = vmatpush1.msra.mxu0 0.0
    %857 = vmatprep.subr.mxu0 0.0
    %858 = vmatpush1.msra.mxu0 0.0
    %859 = vmatprep.subr.mxu0 0.0
    %860 = vmatpush1.msra.mxu0 %v575
    %861 = vmatprep.subr.mxu0 0.0
    %862 = vmatpush2.msra.mxu0 0.0
    %863 = vmatprep.subr.mxu0 0.0
    %864 = vmatpush2.msra.mxu0 0.0
    %865 = vmatprep.subr.mxu0 0.0
    %866 = vmatpush2.msra.mxu0 0.0
    %867 = vmatprep.subr.mxu0 0.0
    %868 = vmatpush2.msra.mxu0 0.0
    %869 = vmatprep.subr.mxu0 0.0
    %870 = vmatpush2.msra.mxu0 0.0
    %871 = vmatprep.subr.mxu0 0.0
    %872 = vmatpush2.msra.mxu0 0.0
    %873 = vmatprep.subr.mxu0 0.0
    %874 = vmatpush2.msra.mxu0 0.0
    %875 = vmatprep.subr.mxu0 0.0
    %876 = vmatpush2.msra.mxu0 0.0
    %877 = vmatprep.subr.mxu0 0.0
    %878 = vmatpush2.msra.mxu0 0.0
    %879 = vmatprep.subr.mxu0 0.0
    %880 = vmatpush2.msra.mxu0 0.0
    %881 = vmatprep.subr.mxu0 0.0
    %882 = vmatpush2.msra.mxu0 0.0
    %883 = vmatprep.subr.mxu0 0.0
    %884 = vmatpush2.msra.mxu0 0.0
    %885 = vmatprep.subr.mxu0 0.0
    %886 = vmatpush2.msra.mxu0 0.0
    %887 = vmatprep.subr.mxu0 0.0
    %888 = vmatpush2.msra.mxu0 0.0
    %889 = vmatprep.subr.mxu0 0.0
    %890 = vmatpush2.msra.mxu0 0.0
    %891 = vmatprep.subr.mxu0 0.0
    %892 = vmatpush2.msra.mxu0 0.0
    %893 = vmatprep.mubr.f32.mxu0 0.0
    %894 = vmatmul.mubr.f32.gmra.mxu0 %v827
    %v895 = vpop.f32.mrf.mxu0
    %v896 = vadd.f32 0.0, %v895
    %v897 = vpop.f32.mrf.mxu0
    %898 = vdwg.mxu0
    %899 = vst.msk [vmem:[#allocation2] sm:$0xff] %vm578, %v823
    %900 = vst.msk [vmem:[#allocation2 + $0x8] sm:$0xff] %vm578, %v896
    %901 = vrot.lane.b32.xlu0 %v404, 120
    %v902 = vpop.permute.xlu0 %901
    %903 = vrot.lane.b32.xlu0 %v484, 120
    %v904 = vpop.permute.xlu0 %903
    %v905 = vsel %vm578, %v902, 0
    %v907 = vsel %vm578, %v904, 0
    %909 = vmatprep.subr.mxu0 0.0
    %910 = vmatpush1.xpose.msra.mxu0 0.0
    %911 = vmatprep.subr.mxu0 0.0
    %912 = vmatpush1.xpose.msra.mxu0 0.0
    %913 = vmatprep.subr.mxu0 0.0
    %914 = vmatpush1.xpose.msra.mxu0 0.0
    %915 = vmatprep.subr.mxu0 0.0
    %916 = vmatpush1.xpose.msra.mxu0 0.0
    %917 = vmatprep.subr.mxu0 0.0
    %918 = vmatpush1.xpose.msra.mxu0 0.0
    %919 = vmatprep.subr.mxu0 0.0
    %920 = vmatpush1.xpose.msra.mxu0 0.0
    %921 = vmatprep.subr.mxu0 0.0
    %922 = vmatpush1.xpose.msra.mxu0 0.0
    %923 = vmatprep.subr.mxu0 0.0
    %924 = vmatpush1.xpose.msra.mxu0 0.0
    %925 = vmatprep.subr.mxu0 0.0
    %926 = vmatpush1.xpose.msra.mxu0 0.0
    %927 = vmatprep.subr.mxu0 0.0
    %928 = vmatpush1.xpose.msra.mxu0 0.0
    %929 = vmatprep.subr.mxu0 0.0
    %930 = vmatpush1.xpose.msra.mxu0 0.0
    %931 = vmatprep.subr.mxu0 0.0
    %932 = vmatpush1.xpose.msra.mxu0 0.0
    %933 = vmatprep.subr.mxu0 0.0
    %934 = vmatpush1.xpose.msra.mxu0 0.0
    %935 = vmatprep.subr.mxu0 0.0
    %936 = vmatpush1.xpose.msra.mxu0 0.0
    %937 = vmatprep.subr.mxu0 0.0
    %938 = vmatpush1.xpose.msra.mxu0 0.0
    %939 = vmatprep.subr.mxu0 0.0
    %940 = vmatpush1.xpose.msra.mxu0 %v907
    %941 = vmatprep.subr.mxu0 0.0
    %942 = vmatpush2.xpose.msra.mxu0 0.0
    %943 = vmatprep.subr.mxu0 0.0
    %944 = vmatpush2.xpose.msra.mxu0 0.0
    %945 = vmatprep.subr.mxu0 0.0
    %946 = vmatpush2.xpose.msra.mxu0 0.0
    %947 = vmatprep.subr.mxu0 0.0
    %948 = vmatpush2.xpose.msra.mxu0 0.0
    %949 = vmatprep.subr.mxu0 0.0
    %950 = vmatpush2.xpose.msra.mxu0 0.0
    %951 = vmatprep.subr.mxu0 0.0
    %952 = vmatpush2.xpose.msra.mxu0 0.0
    %953 = vmatprep.subr.mxu0 0.0
    %954 = vmatpush2.xpose.msra.mxu0 0.0
    %955 = vmatprep.subr.mxu0 0.0
    %956 = vmatpush2.xpose.msra.mxu0 0.0
    %957 = vmatprep.subr.mxu0 0.0
    %958 = vmatpush2.xpose.msra.mxu0 0.0
    %959 = vmatprep.subr.mxu0 0.0
    %960 = vmatpush2.xpose.msra.mxu0 0.0
    %961 = vmatprep.subr.mxu0 0.0
    %962 = vmatpush2.xpose.msra.mxu0 0.0
    %963 = vmatprep.subr.mxu0 0.0
    %964 = vmatpush2.xpose.msra.mxu0 0.0
    %965 = vmatprep.subr.mxu0 0.0
    %966 = vmatpush2.xpose.msra.mxu0 0.0
    %967 = vmatprep.subr.mxu0 0.0
    %968 = vmatpush2.xpose.msra.mxu0 0.0
    %969 = vmatprep.subr.mxu0 0.0
    %970 = vmatpush2.xpose.msra.mxu0 0.0
    %971 = vmatprep.subr.mxu0 0.0
    %972 = vmatpush2.xpose.msra.mxu0 0.0
    %973 = vmatprep.mubr.f32.mxu0 0.0
    %974 = vmatmul.mubr.f32.gmra.mxu0 %v905
    %v975 = vpop.f32.mrf.mxu0
    %v976 = vadd.f32 %v307, %v975
    %v977 = vpop.f32.mrf.mxu0
    %978 = vdwg.mxu0
    %979 = vrot.lane.b32.xlu0 %v405, 120
    %v980 = vpop.permute.xlu0 %979
    %981 = vrot.lane.b32.xlu0 %v489, 120
    %v982 = vpop.permute.xlu0 %981
    %v983 = vsel %vm578, %v980, 0
    %v985 = vsel %vm578, %v982, 0
    %987 = vmatprep.subr.mxu0 0.0
    %988 = vmatpush1.xpose.msra.mxu0 0.0
    %989 = vmatprep.subr.mxu0 0.0
    %990 = vmatpush1.xpose.msra.mxu0 0.0
    %991 = vmatprep.subr.mxu0 0.0
    %992 = vmatpush1.xpose.msra.mxu0 0.0
    %993 = vmatprep.subr.mxu0 0.0
    %994 = vmatpush1.xpose.msra.mxu0 0.0
    %995 = vmatprep.subr.mxu0 0.0
    %996 = vmatpush1.xpose.msra.mxu0 0.0
    %997 = vmatprep.subr.mxu0 0.0
    %998 = vmatpush1.xpose.msra.mxu0 0.0
    %999 = vmatprep.subr.mxu0 0.0
    %1000 = vmatpush1.xpose.msra.mxu0 0.0
    %1001 = vmatprep.subr.mxu0 0.0
    %1002 = vmatpush1.xpose.msra.mxu0 0.0
    %1003 = vmatprep.subr.mxu0 0.0
    %1004 = vmatpush1.xpose.msra.mxu0 0.0
    %1005 = vmatprep.subr.mxu0 0.0
    %1006 = vmatpush1.xpose.msra.mxu0 0.0
    %1007 = vmatprep.subr.mxu0 0.0
    %1008 = vmatpush1.xpose.msra.mxu0 0.0
    %1009 = vmatprep.subr.mxu0 0.0
    %1010 = vmatpush1.xpose.msra.mxu0 0.0
    %1011 = vmatprep.subr.mxu0 0.0
    %1012 = vmatpush1.xpose.msra.mxu0 0.0
    %1013 = vmatprep.subr.mxu0 0.0
    %1014 = vmatpush1.xpose.msra.mxu0 0.0
    %1015 = vmatprep.subr.mxu0 0.0
    %1016 = vmatpush1.xpose.msra.mxu0 0.0
    %1017 = vmatprep.subr.mxu0 0.0
    %1018 = vmatpush1.xpose.msra.mxu0 %v985
    %1019 = vmatprep.subr.mxu0 0.0
    %1020 = vmatpush2.xpose.msra.mxu0 0.0
    %1021 = vmatprep.subr.mxu0 0.0
    %1022 = vmatpush2.xpose.msra.mxu0 0.0
    %1023 = vmatprep.subr.mxu0 0.0
    %1024 = vmatpush2.xpose.msra.mxu0 0.0
    %1025 = vmatprep.subr.mxu0 0.0
    %1026 = vmatpush2.xpose.msra.mxu0 0.0
    %1027 = vmatprep.subr.mxu0 0.0
    %1028 = vmatpush2.xpose.msra.mxu0 0.0
    %1029 = vmatprep.subr.mxu0 0.0
    %1030 = vmatpush2.xpose.msra.mxu0 0.0
    %1031 = vmatprep.subr.mxu0 0.0
    %1032 = vmatpush2.xpose.msra.mxu0 0.0
    %1033 = vmatprep.subr.mxu0 0.0
    %1034 = vmatpush2.xpose.msra.mxu0 0.0
    %1035 = vmatprep.subr.mxu0 0.0
    %1036 = vmatpush2.xpose.msra.mxu0 0.0
    %1037 = vmatprep.subr.mxu0 0.0
    %1038 = vmatpush2.xpose.msra.mxu0 0.0
    %1039 = vmatprep.subr.mxu0 0.0
    %1040 = vmatpush2.xpose.msra.mxu0 0.0
    %1041 = vmatprep.subr.mxu0 0.0
    %1042 = vmatpush2.xpose.msra.mxu0 0.0
    %1043 = vmatprep.subr.mxu0 0.0
    %1044 = vmatpush2.xpose.msra.mxu0 0.0
    %1045 = vmatprep.subr.mxu0 0.0
    %1046 = vmatpush2.xpose.msra.mxu0 0.0
    %1047 = vmatprep.subr.mxu0 0.0
    %1048 = vmatpush2.xpose.msra.mxu0 0.0
    %1049 = vmatprep.subr.mxu0 0.0
    %1050 = vmatpush2.xpose.msra.mxu0 0.0
    %1051 = vmatprep.mubr.f32.mxu0 0.0
    %1052 = vmatmul.mubr.f32.gmra.mxu0 %v983
    %v1053 = vpop.f32.mrf.mxu0
    %v1054 = vadd.f32 %v308, %v1053
    %v1055 = vpop.f32.mrf.mxu0
    %1056 = vdwg.mxu0
    %v1057 = vsel %vm578, %v976, -inf
    %1058 = vmax.xlane.f32.xlu0 %v1057
    %v1059 = vpop.xlane.xlu0 %1058
    %v1060 = vsel %vm578, %v1054, -inf
    %1061 = vmax.xlane.f32.xlu0 %v1060
    %v1062 = vpop.xlane.xlu0 %1061
    %v1063 = vsub.f32 %v976, %v1059
    %v1064 = vsub.f32 %v1054, %v1062
    %v1065 = vmul.f32 %v1063, 1.442695
    %v1066 = vpow.pop %v1065
    %v1067 = vmul.f32 %v1064, 1.442695
    %v1068 = vpow.pop %v1067
    %v1069 = vsel %vm578, %v1066, 0.0
    %1070 = vadd.xlane.f32.xlu0 %v1069
    %v1071 = vpop.xlane.xlu0 %1070
    %v1072 = vsel %vm578, %v1068, 0.0
    %1073 = vadd.xlane.f32.xlu0 %v1072
    %v1074 = vpop.xlane.xlu0 %1073
    %v1075 = vrcp.pop %v1071
    %v1076 = vrcp.pop %v1074
    %v1077 = vmul.f32 %v1066, %v1075
    %v1078 = vmul.f32 %v1068, %v1076
    %1080 = vrot.lane.b32.xlu0 %v570, 120
    %v1081 = vpop.permute.xlu0 %1080
    %v1084 = vsel %vm578, %v1077, 0
    %1086 = vmatprep.subr.mxu0 0.0
    %1087 = vmatpush1.msra.mxu0 0.0
    %1088 = vmatprep.subr.mxu0 0.0
    %1089 = vmatpush1.msra.mxu0 0.0
    %1090 = vmatprep.subr.mxu0 0.0
    %1091 = vmatpush1.msra.mxu0 0.0
    %1092 = vmatprep.subr.mxu0 0.0
    %1093 = vmatpush1.msra.mxu0 0.0
    %1094 = vmatprep.subr.mxu0 0.0
    %1095 = vmatpush1.msra.mxu0 0.0
    %1096 = vmatprep.subr.mxu0 0.0
    %1097 = vmatpush1.msra.mxu0 0.0
    %1098 = vmatprep.subr.mxu0 0.0
    %1099 = vmatpush1.msra.mxu0 0.0
    %1100 = vmatprep.subr.mxu0 0.0
    %1101 = vmatpush1.msra.mxu0 0.0
    %1102 = vmatprep.subr.mxu0 0.0
    %1103 = vmatpush1.msra.mxu0 0.0
    %1104 = vmatprep.subr.mxu0 0.0
    %1105 = vmatpush1.msra.mxu0 0.0
    %1106 = vmatprep.subr.mxu0 0.0
    %1107 = vmatpush1.msra.mxu0 0.0
    %1108 = vmatprep.subr.mxu0 0.0
    %1109 = vmatpush1.msra.mxu0 0.0
    %1110 = vmatprep.subr.mxu0 0.0
    %1111 = vmatpush1.msra.mxu0 0.0
    %1112 = vmatprep.subr.mxu0 0.0
    %1113 = vmatpush1.msra.mxu0 0.0
    %1114 = vmatprep.subr.mxu0 0.0
    %1115 = vmatpush1.msra.mxu0 0.0
    %1116 = vmatprep.subr.mxu0 0.0
    %1117 = vmatpush1.msra.mxu0 %v1081
    %1118 = vmatprep.subr.mxu0 0.0
    %1119 = vmatpush2.msra.mxu0 0.0
    %1120 = vmatprep.subr.mxu0 0.0
    %1121 = vmatpush2.msra.mxu0 0.0
    %1122 = vmatprep.subr.mxu0 0.0
    %1123 = vmatpush2.msra.mxu0 0.0
    %1124 = vmatprep.subr.mxu0 0.0
    %1125 = vmatpush2.msra.mxu0 0.0
    %1126 = vmatprep.subr.mxu0 0.0
    %1127 = vmatpush2.msra.mxu0 0.0
    %1128 = vmatprep.subr.mxu0 0.0
    %1129 = vmatpush2.msra.mxu0 0.0
    %1130 = vmatprep.subr.mxu0 0.0
    %1131 = vmatpush2.msra.mxu0 0.0
    %1132 = vmatprep.subr.mxu0 0.0
    %1133 = vmatpush2.msra.mxu0 0.0
    %1134 = vmatprep.subr.mxu0 0.0
    %1135 = vmatpush2.msra.mxu0 0.0
    %1136 = vmatprep.subr.mxu0 0.0
    %1137 = vmatpush2.msra.mxu0 0.0
    %1138 = vmatprep.subr.mxu0 0.0
    %1139 = vmatpush2.msra.mxu0 0.0
    %1140 = vmatprep.subr.mxu0 0.0
    %1141 = vmatpush2.msra.mxu0 0.0
    %1142 = vmatprep.subr.mxu0 0.0
    %1143 = vmatpush2.msra.mxu0 0.0
    %1144 = vmatprep.subr.mxu0 0.0
    %1145 = vmatpush2.msra.mxu0 0.0
    %1146 = vmatprep.subr.mxu0 0.0
    %1147 = vmatpush2.msra.mxu0 0.0
    %1148 = vmatprep.subr.mxu0 0.0
    %1149 = vmatpush2.msra.mxu0 0.0
    %1150 = vmatprep.mubr.f32.mxu0 0.0
    %1151 = vmatmul.mubr.f32.gmra.mxu0 %v1084
    %v1152 = vpop.f32.mrf.mxu0
    %v1153 = vadd.f32 0.0, %v1152
    %v1154 = vpop.f32.mrf.mxu0
    %1155 = vdwg.mxu0
    %1157 = vrot.lane.b32.xlu0 %v575, 120
    %v1158 = vpop.permute.xlu0 %1157
    %v1161 = vsel %vm578, %v1078, 0
    %1163 = vmatprep.subr.mxu0 0.0
    %1164 = vmatpush1.msra.mxu0 0.0
    %1165 = vmatprep.subr.mxu0 0.0
    %1166 = vmatpush1.msra.mxu0 0.0
    %1167 = vmatprep.subr.mxu0 0.0
    %1168 = vmatpush1.msra.mxu0 0.0
    %1169 = vmatprep.subr.mxu0 0.0
    %1170 = vmatpush1.msra.mxu0 0.0
    %1171 = vmatprep.subr.mxu0 0.0
    %1172 = vmatpush1.msra.mxu0 0.0
    %1173 = vmatprep.subr.mxu0 0.0
    %1174 = vmatpush1.msra.mxu0 0.0
    %1175 = vmatprep.subr.mxu0 0.0
    %1176 = vmatpush1.msra.mxu0 0.0
    %1177 = vmatprep.subr.mxu0 0.0
    %1178 = vmatpush1.msra.mxu0 0.0
    %1179 = vmatprep.subr.mxu0 0.0
    %1180 = vmatpush1.msra.mxu0 0.0
    %1181 = vmatprep.subr.mxu0 0.0
    %1182 = vmatpush1.msra.mxu0 0.0
    %1183 = vmatprep.subr.mxu0 0.0
    %1184 = vmatpush1.msra.mxu0 0.0
    %1185 = vmatprep.subr.mxu0 0.0
    %1186 = vmatpush1.msra.mxu0 0.0
    %1187 = vmatprep.subr.mxu0 0.0
    %1188 = vmatpush1.msra.mxu0 0.0
    %1189 = vmatprep.subr.mxu0 0.0
    %1190 = vmatpush1.msra.mxu0 0.0
    %1191 = vmatprep.subr.mxu0 0.0
    %1192 = vmatpush1.msra.mxu0 0.0
    %1193 = vmatprep.subr.mxu0 0.0
    %1194 = vmatpush1.msra.mxu0 %v1158
    %1195 = vmatprep.subr.mxu0 0.0
    %1196 = vmatpush2.msra.mxu0 0.0
    %1197 = vmatprep.subr.mxu0 0.0
    %1198 = vmatpush2.msra.mxu0 0.0
    %1199 = vmatprep.subr.mxu0 0.0
    %1200 = vmatpush2.msra.mxu0 0.0
    %1201 = vmatprep.subr.mxu0 0.0
    %1202 = vmatpush2.msra.mxu0 0.0
    %1203 = vmatprep.subr.mxu0 0.0
    %1204 = vmatpush2.msra.mxu0 0.0
    %1205 = vmatprep.subr.mxu0 0.0
    %1206 = vmatpush2.msra.mxu0 0.0
    %1207 = vmatprep.subr.mxu0 0.0
    %1208 = vmatpush2.msra.mxu0 0.0
    %1209 = vmatprep.subr.mxu0 0.0
    %1210 = vmatpush2.msra.mxu0 0.0
    %1211 = vmatprep.subr.mxu0 0.0
    %1212 = vmatpush2.msra.mxu0 0.0
    %1213 = vmatprep.subr.mxu0 0.0
    %1214 = vmatpush2.msra.mxu0 0.0
    %1215 = vmatprep.subr.mxu0 0.0
    %1216 = vmatpush2.msra.mxu0 0.0
    %1217 = vmatprep.subr.mxu0 0.0
    %1218 = vmatpush2.msra.mxu0 0.0
    %1219 = vmatprep.subr.mxu0 0.0
    %1220 = vmatpush2.msra.mxu0 0.0
    %1221 = vmatprep.subr.mxu0 0.0
    %1222 = vmatpush2.msra.mxu0 0.0
    %1223 = vmatprep.subr.mxu0 0.0
    %1224 = vmatpush2.msra.mxu0 0.0
    %1225 = vmatprep.subr.mxu0 0.0
    %1226 = vmatpush2.msra.mxu0 0.0
    %1227 = vmatprep.mubr.f32.mxu0 0.0
    %1228 = vmatmul.mubr.f32.gmra.mxu0 %v1161
    %v1229 = vpop.f32.mrf.mxu0
    %v1230 = vadd.f32 0.0, %v1229
    %v1231 = vpop.f32.mrf.mxu0
    %1232 = vdwg.mxu0
    %1235 = vrot.lane.b32.xlu0 %v1153, 8
    %v1236 = vpop.permute.xlu0 %1235
    %1237 = vrot.lane.b32.xlu0 %v1230, 8
    %v1238 = vpop.permute.xlu0 %1237
    %vm1241 = vcmask 130112
    %1242 = vst.msk [vmem:[#allocation2] sm:$0xff] %vm1241, %v1236
    %1243 = vst.msk [vmem:[#allocation2 + $0x8] sm:$0xff] %vm1241, %v1238
    %1244 = vrot.lane.b32.xlu0 %v404, 112
    %v1245 = vpop.permute.xlu0 %1244
    %1246 = vrot.lane.b32.xlu0 %v484, 112
    %v1247 = vpop.permute.xlu0 %1246
    %v1248 = vsel %vm578, %v1245, 0
    %v1250 = vsel %vm578, %v1247, 0
    %1252 = vmatprep.subr.mxu0 0.0
    %1253 = vmatpush1.xpose.msra.mxu0 0.0
    %1254 = vmatprep.subr.mxu0 0.0
    %1255 = vmatpush1.xpose.msra.mxu0 0.0
    %1256 = vmatprep.subr.mxu0 0.0
    %1257 = vmatpush1.xpose.msra.mxu0 0.0
    %1258 = vmatprep.subr.mxu0 0.0
    %1259 = vmatpush1.xpose.msra.mxu0 0.0
    %1260 = vmatprep.subr.mxu0 0.0
    %1261 = vmatpush1.xpose.msra.mxu0 0.0
    %1262 = vmatprep.subr.mxu0 0.0
    %1263 = vmatpush1.xpose.msra.mxu0 0.0
    %1264 = vmatprep.subr.mxu0 0.0
    %1265 = vmatpush1.xpose.msra.mxu0 0.0
    %1266 = vmatprep.subr.mxu0 0.0
    %1267 = vmatpush1.xpose.msra.mxu0 0.0
    %1268 = vmatprep.subr.mxu0 0.0
    %1269 = vmatpush1.xpose.msra.mxu0 0.0
    %1270 = vmatprep.subr.mxu0 0.0
    %1271 = vmatpush1.xpose.msra.mxu0 0.0
    %1272 = vmatprep.subr.mxu0 0.0
    %1273 = vmatpush1.xpose.msra.mxu0 0.0
    %1274 = vmatprep.subr.mxu0 0.0
    %1275 = vmatpush1.xpose.msra.mxu0 0.0
    %1276 = vmatprep.subr.mxu0 0.0
    %1277 = vmatpush1.xpose.msra.mxu0 0.0
    %1278 = vmatprep.subr.mxu0 0.0
    %1279 = vmatpush1.xpose.msra.mxu0 0.0
    %1280 = vmatprep.subr.mxu0 0.0
    %1281 = vmatpush1.xpose.msra.mxu0 0.0
    %1282 = vmatprep.subr.mxu0 0.0
    %1283 = vmatpush1.xpose.msra.mxu0 %v1250
    %1284 = vmatprep.subr.mxu0 0.0
    %1285 = vmatpush2.xpose.msra.mxu0 0.0
    %1286 = vmatprep.subr.mxu0 0.0
    %1287 = vmatpush2.xpose.msra.mxu0 0.0
    %1288 = vmatprep.subr.mxu0 0.0
    %1289 = vmatpush2.xpose.msra.mxu0 0.0
    %1290 = vmatprep.subr.mxu0 0.0
    %1291 = vmatpush2.xpose.msra.mxu0 0.0
    %1292 = vmatprep.subr.mxu0 0.0
    %1293 = vmatpush2.xpose.msra.mxu0 0.0
    %1294 = vmatprep.subr.mxu0 0.0
    %1295 = vmatpush2.xpose.msra.mxu0 0.0
    %1296 = vmatprep.subr.mxu0 0.0
    %1297 = vmatpush2.xpose.msra.mxu0 0.0
    %1298 = vmatprep.subr.mxu0 0.0
    %1299 = vmatpush2.xpose.msra.mxu0 0.0
    %1300 = vmatprep.subr.mxu0 0.0
    %1301 = vmatpush2.xpose.msra.mxu0 0.0
    %1302 = vmatprep.subr.mxu0 0.0
    %1303 = vmatpush2.xpose.msra.mxu0 0.0
    %1304 = vmatprep.subr.mxu0 0.0
    %1305 = vmatpush2.xpose.msra.mxu0 0.0
    %1306 = vmatprep.subr.mxu0 0.0
    %1307 = vmatpush2.xpose.msra.mxu0 0.0
    %1308 = vmatprep.subr.mxu0 0.0
    %1309 = vmatpush2.xpose.msra.mxu0 0.0
    %1310 = vmatprep.subr.mxu0 0.0
    %1311 = vmatpush2.xpose.msra.mxu0 0.0
    %1312 = vmatprep.subr.mxu0 0.0
    %1313 = vmatpush2.xpose.msra.mxu0 0.0
    %1314 = vmatprep.subr.mxu0 0.0
    %1315 = vmatpush2.xpose.msra.mxu0 0.0
    %1316 = vmatprep.mubr.f32.mxu0 0.0
    %1317 = vmatmul.mubr.f32.gmra.mxu0 %v1248
    %v1318 = vpop.f32.mrf.mxu0
    %v1319 = vadd.f32 %v307, %v1318
    %v1320 = vpop.f32.mrf.mxu0
    %1321 = vdwg.mxu0
    %1322 = vrot.lane.b32.xlu0 %v405, 112
    %v1323 = vpop.permute.xlu0 %1322
    %1324 = vrot.lane.b32.xlu0 %v489, 112
    %v1325 = vpop.permute.xlu0 %1324
    %v1326 = vsel %vm578, %v1323, 0
    %v1328 = vsel %vm578, %v1325, 0
    %1330 = vmatprep.subr.mxu0 0.0
    %1331 = vmatpush1.xpose.msra.mxu0 0.0
    %1332 = vmatprep.subr.mxu0 0.0
    %1333 = vmatpush1.xpose.msra.mxu0 0.0
    %1334 = vmatprep.subr.mxu0 0.0
    %1335 = vmatpush1.xpose.msra.mxu0 0.0
    %1336 = vmatprep.subr.mxu0 0.0
    %1337 = vmatpush1.xpose.msra.mxu0 0.0
    %1338 = vmatprep.subr.mxu0 0.0
    %1339 = vmatpush1.xpose.msra.mxu0 0.0
    %1340 = vmatprep.subr.mxu0 0.0
    %1341 = vmatpush1.xpose.msra.mxu0 0.0
    %1342 = vmatprep.subr.mxu0 0.0
    %1343 = vmatpush1.xpose.msra.mxu0 0.0
    %1344 = vmatprep.subr.mxu0 0.0
    %1345 = vmatpush1.xpose.msra.mxu0 0.0
    %1346 = vmatprep.subr.mxu0 0.0
    %1347 = vmatpush1.xpose.msra.mxu0 0.0
    %1348 = vmatprep.subr.mxu0 0.0
    %1349 = vmatpush1.xpose.msra.mxu0 0.0
    %1350 = vmatprep.subr.mxu0 0.0
    %1351 = vmatpush1.xpose.msra.mxu0 0.0
    %1352 = vmatprep.subr.mxu0 0.0
    %1353 = vmatpush1.xpose.msra.mxu0 0.0
    %1354 = vmatprep.subr.mxu0 0.0
    %1355 = vmatpush1.xpose.msra.mxu0 0.0
    %1356 = vmatprep.subr.mxu0 0.0
    %1357 = vmatpush1.xpose.msra.mxu0 0.0
    %1358 = vmatprep.subr.mxu0 0.0
    %1359 = vmatpush1.xpose.msra.mxu0 0.0
    %1360 = vmatprep.subr.mxu0 0.0
    %1361 = vmatpush1.xpose.msra.mxu0 %v1328
    %1362 = vmatprep.subr.mxu0 0.0
    %1363 = vmatpush2.xpose.msra.mxu0 0.0
    %1364 = vmatprep.subr.mxu0 0.0
    %1365 = vmatpush2.xpose.msra.mxu0 0.0
    %1366 = vmatprep.subr.mxu0 0.0
    %1367 = vmatpush2.xpose.msra.mxu0 0.0
    %1368 = vmatprep.subr.mxu0 0.0
    %1369 = vmatpush2.xpose.msra.mxu0 0.0
    %1370 = vmatprep.subr.mxu0 0.0
    %1371 = vmatpush2.xpose.msra.mxu0 0.0
    %1372 = vmatprep.subr.mxu0 0.0
    %1373 = vmatpush2.xpose.msra.mxu0 0.0
    %1374 = vmatprep.subr.mxu0 0.0
    %1375 = vmatpush2.xpose.msra.mxu0 0.0
    %1376 = vmatprep.subr.mxu0 0.0
    %1377 = vmatpush2.xpose.msra.mxu0 0.0
    %1378 = vmatprep.subr.mxu0 0.0
    %1379 = vmatpush2.xpose.msra.mxu0 0.0
    %1380 = vmatprep.subr.mxu0 0.0
    %1381 = vmatpush2.xpose.msra.mxu0 0.0
    %1382 = vmatprep.subr.mxu0 0.0
    %1383 = vmatpush2.xpose.msra.mxu0 0.0
    %1384 = vmatprep.subr.mxu0 0.0
    %1385 = vmatpush2.xpose.msra.mxu0 0.0
    %1386 = vmatprep.subr.mxu0 0.0
    %1387 = vmatpush2.xpose.msra.mxu0 0.0
    %1388 = vmatprep.subr.mxu0 0.0
    %1389 = vmatpush2.xpose.msra.mxu0 0.0
    %1390 = vmatprep.subr.mxu0 0.0
    %1391 = vmatpush2.xpose.msra.mxu0 0.0
    %1392 = vmatprep.subr.mxu0 0.0
    %1393 = vmatpush2.xpose.msra.mxu0 0.0
    %1394 = vmatprep.mubr.f32.mxu0 0.0
    %1395 = vmatmul.mubr.f32.gmra.mxu0 %v1326
    %v1396 = vpop.f32.mrf.mxu0
    %v1397 = vadd.f32 %v308, %v1396
    %v1398 = vpop.f32.mrf.mxu0
    %1399 = vdwg.mxu0
    %v1400 = vsel %vm578, %v1319, -inf
    %1401 = vmax.xlane.f32.xlu0 %v1400
    %v1402 = vpop.xlane.xlu0 %1401
    %v1403 = vsel %vm578, %v1397, -inf
    %1404 = vmax.xlane.f32.xlu0 %v1403
    %v1405 = vpop.xlane.xlu0 %1404
    %v1406 = vsub.f32 %v1319, %v1402
    %v1407 = vsub.f32 %v1397, %v1405
    %v1408 = vmul.f32 %v1406, 1.442695
    %v1409 = vpow.pop %v1408
    %v1410 = vmul.f32 %v1407, 1.442695
    %v1411 = vpow.pop %v1410
    %v1412 = vsel %vm578, %v1409, 0.0
    %1413 = vadd.xlane.f32.xlu0 %v1412
    %v1414 = vpop.xlane.xlu0 %1413
    %v1415 = vsel %vm578, %v1411, 0.0
    %1416 = vadd.xlane.f32.xlu0 %v1415
    %v1417 = vpop.xlane.xlu0 %1416
    %v1418 = vrcp.pop %v1414
    %v1419 = vrcp.pop %v1417
    %v1420 = vmul.f32 %v1409, %v1418
    %v1421 = vmul.f32 %v1411, %v1419
    %1422 = vrot.lane.b32.xlu0 %v570, 112
    %v1423 = vpop.permute.xlu0 %1422
    %v1426 = vsel %vm578, %v1420, 0
    %1428 = vmatprep.subr.mxu0 0.0
    %1429 = vmatpush1.msra.mxu0 0.0
    %1430 = vmatprep.subr.mxu0 0.0
    %1431 = vmatpush1.msra.mxu0 0.0
    %1432 = vmatprep.subr.mxu0 0.0
    %1433 = vmatpush1.msra.mxu0 0.0
    %1434 = vmatprep.subr.mxu0 0.0
    %1435 = vmatpush1.msra.mxu0 0.0
    %1436 = vmatprep.subr.mxu0 0.0
    %1437 = vmatpush1.msra.mxu0 0.0
    %1438 = vmatprep.subr.mxu0 0.0
    %1439 = vmatpush1.msra.mxu0 0.0
    %1440 = vmatprep.subr.mxu0 0.0
    %1441 = vmatpush1.msra.mxu0 0.0
    %1442 = vmatprep.subr.mxu0 0.0
    %1443 = vmatpush1.msra.mxu0 0.0
    %1444 = vmatprep.subr.mxu0 0.0
    %1445 = vmatpush1.msra.mxu0 0.0
    %1446 = vmatprep.subr.mxu0 0.0
    %1447 = vmatpush1.msra.mxu0 0.0
    %1448 = vmatprep.subr.mxu0 0.0
    %1449 = vmatpush1.msra.mxu0 0.0
    %1450 = vmatprep.subr.mxu0 0.0
    %1451 = vmatpush1.msra.mxu0 0.0
    %1452 = vmatprep.subr.mxu0 0.0
    %1453 = vmatpush1.msra.mxu0 0.0
    %1454 = vmatprep.subr.mxu0 0.0
    %1455 = vmatpush1.msra.mxu0 0.0
    %1456 = vmatprep.subr.mxu0 0.0
    %1457 = vmatpush1.msra.mxu0 0.0
    %1458 = vmatprep.subr.mxu0 0.0
    %1459 = vmatpush1.msra.mxu0 %v1423
    %1460 = vmatprep.subr.mxu0 0.0
    %1461 = vmatpush2.msra.mxu0 0.0
    %1462 = vmatprep.subr.mxu0 0.0
    %1463 = vmatpush2.msra.mxu0 0.0
    %1464 = vmatprep.subr.mxu0 0.0
    %1465 = vmatpush2.msra.mxu0 0.0
    %1466 = vmatprep.subr.mxu0 0.0
    %1467 = vmatpush2.msra.mxu0 0.0
    %1468 = vmatprep.subr.mxu0 0.0
    %1469 = vmatpush2.msra.mxu0 0.0
    %1470 = vmatprep.subr.mxu0 0.0
    %1471 = vmatpush2.msra.mxu0 0.0
    %1472 = vmatprep.subr.mxu0 0.0
    %1473 = vmatpush2.msra.mxu0 0.0
    %1474 = vmatprep.subr.mxu0 0.0
    %1475 = vmatpush2.msra.mxu0 0.0
    %1476 = vmatprep.subr.mxu0 0.0
    %1477 = vmatpush2.msra.mxu0 0.0
    %1478 = vmatprep.subr.mxu0 0.0
    %1479 = vmatpush2.msra.mxu0 0.0
    %1480 = vmatprep.subr.mxu0 0.0
    %1481 = vmatpush2.msra.mxu0 0.0
    %1482 = vmatprep.subr.mxu0 0.0
    %1483 = vmatpush2.msra.mxu0 0.0
    %1484 = vmatprep.subr.mxu0 0.0
    %1485 = vmatpush2.msra.mxu0 0.0
    %1486 = vmatprep.subr.mxu0 0.0
    %1487 = vmatpush2.msra.mxu0 0.0
    %1488 = vmatprep.subr.mxu0 0.0
    %1489 = vmatpush2.msra.mxu0 0.0
    %1490 = vmatprep.subr.mxu0 0.0
    %1491 = vmatpush2.msra.mxu0 0.0
    %1492 = vmatprep.mubr.f32.mxu0 0.0
    %1493 = vmatmul.mubr.f32.gmra.mxu0 %v1426
    %v1494 = vpop.f32.mrf.mxu0
    %v1495 = vadd.f32 0.0, %v1494
    %v1496 = vpop.f32.mrf.mxu0
    %1497 = vdwg.mxu0
    %1498 = vrot.lane.b32.xlu0 %v575, 112
    %v1499 = vpop.permute.xlu0 %1498
    %v1502 = vsel %vm578, %v1421, 0
    %1504 = vmatprep.subr.mxu0 0.0
    %1505 = vmatpush1.msra.mxu0 0.0
    %1506 = vmatprep.subr.mxu0 0.0
    %1507 = vmatpush1.msra.mxu0 0.0
    %1508 = vmatprep.subr.mxu0 0.0
    %1509 = vmatpush1.msra.mxu0 0.0
    %1510 = vmatprep.subr.mxu0 0.0
    %1511 = vmatpush1.msra.mxu0 0.0
    %1512 = vmatprep.subr.mxu0 0.0
    %1513 = vmatpush1.msra.mxu0 0.0
    %1514 = vmatprep.subr.mxu0 0.0
    %1515 = vmatpush1.msra.mxu0 0.0
    %1516 = vmatprep.subr.mxu0 0.0
    %1517 = vmatpush1.msra.mxu0 0.0
    %1518 = vmatprep.subr.mxu0 0.0
    %1519 = vmatpush1.msra.mxu0 0.0
    %1520 = vmatprep.subr.mxu0 0.0
    %1521 = vmatpush1.msra.mxu0 0.0
    %1522 = vmatprep.subr.mxu0 0.0
    %1523 = vmatpush1.msra.mxu0 0.0
    %1524 = vmatprep.subr.mxu0 0.0
    %1525 = vmatpush1.msra.mxu0 0.0
    %1526 = vmatprep.subr.mxu0 0.0
    %1527 = vmatpush1.msra.mxu0 0.0
    %1528 = vmatprep.subr.mxu0 0.0
    %1529 = vmatpush1.msra.mxu0 0.0
    %1530 = vmatprep.subr.mxu0 0.0
    %1531 = vmatpush1.msra.mxu0 0.0
    %1532 = vmatprep.subr.mxu0 0.0
    %1533 = vmatpush1.msra.mxu0 0.0
    %1534 = vmatprep.subr.mxu0 0.0
    %1535 = vmatpush1.msra.mxu0 %v1499
    %1536 = vmatprep.subr.mxu0 0.0
    %1537 = vmatpush2.msra.mxu0 0.0
    %1538 = vmatprep.subr.mxu0 0.0
    %1539 = vmatpush2.msra.mxu0 0.0
    %1540 = vmatprep.subr.mxu0 0.0
    %1541 = vmatpush2.msra.mxu0 0.0
    %1542 = vmatprep.subr.mxu0 0.0
    %1543 = vmatpush2.msra.mxu0 0.0
    %1544 = vmatprep.subr.mxu0 0.0
    %1545 = vmatpush2.msra.mxu0 0.0
    %1546 = vmatprep.subr.mxu0 0.0
    %1547 = vmatpush2.msra.mxu0 0.0
    %1548 = vmatprep.subr.mxu0 0.0
    %1549 = vmatpush2.msra.mxu0 0.0
    %1550 = vmatprep.subr.mxu0 0.0
    %1551 = vmatpush2.msra.mxu0 0.0
    %1552 = vmatprep.subr.mxu0 0.0
    %1553 = vmatpush2.msra.mxu0 0.0
    %1554 = vmatprep.subr.mxu0 0.0
    %1555 = vmatpush2.msra.mxu0 0.0
    %1556 = vmatprep.subr.mxu0 0.0
    %1557 = vmatpush2.msra.mxu0 0.0
    %1558 = vmatprep.subr.mxu0 0.0
    %1559 = vmatpush2.msra.mxu0 0.0
    %1560 = vmatprep.subr.mxu0 0.0
    %1561 = vmatpush2.msra.mxu0 0.0
    %1562 = vmatprep.subr.mxu0 0.0
    %1563 = vmatpush2.msra.mxu0 0.0
    %1564 = vmatprep.subr.mxu0 0.0
    %1565 = vmatpush2.msra.mxu0 0.0
    %1566 = vmatprep.subr.mxu0 0.0
    %1567 = vmatpush2.msra.mxu0 0.0
    %1568 = vmatprep.mubr.f32.mxu0 0.0
    %1569 = vmatmul.mubr.f32.gmra.mxu0 %v1502
    %v1570 = vpop.f32.mrf.mxu0
    %v1571 = vadd.f32 0.0, %v1570
    %v1572 = vpop.f32.mrf.mxu0
    %1573 = vdwg.mxu0
    %1576 = vrot.lane.b32.xlu0 %v1495, 16
    %v1577 = vpop.permute.xlu0 %1576
    %1578 = vrot.lane.b32.xlu0 %v1571, 16
    %v1579 = vpop.permute.xlu0 %1578
    %vm1582 = vcmask 195712
    %1583 = vst.msk [vmem:[#allocation2] sm:$0xff] %vm1582, %v1577
    %1584 = vst.msk [vmem:[#allocation2 + $0x8] sm:$0xff] %vm1582, %v1579
    %1585 = vrot.lane.b32.xlu0 %v404, 104
    %v1586 = vpop.permute.xlu0 %1585
    %1587 = vrot.lane.b32.xlu0 %v484, 104
    %v1588 = vpop.permute.xlu0 %1587
    %v1589 = vsel %vm578, %v1586, 0
    %v1591 = vsel %vm578, %v1588, 0
    %1593 = vmatprep.subr.mxu0 0.0
    %1594 = vmatpush1.xpose.msra.mxu0 0.0
    %1595 = vmatprep.subr.mxu0 0.0
    %1596 = vmatpush1.xpose.msra.mxu0 0.0
    %1597 = vmatprep.subr.mxu0 0.0
    %1598 = vmatpush1.xpose.msra.mxu0 0.0
    %1599 = vmatprep.subr.mxu0 0.0
    %1600 = vmatpush1.xpose.msra.mxu0 0.0
    %1601 = vmatprep.subr.mxu0 0.0
    %1602 = vmatpush1.xpose.msra.mxu0 0.0
    %1603 = vmatprep.subr.mxu0 0.0
    %1604 = vmatpush1.xpose.msra.mxu0 0.0
    %1605 = vmatprep.subr.mxu0 0.0
    %1606 = vmatpush1.xpose.msra.mxu0 0.0
    %1607 = vmatprep.subr.mxu0 0.0
    %1608 = vmatpush1.xpose.msra.mxu0 0.0
    %1609 = vmatprep.subr.mxu0 0.0
    %1610 = vmatpush1.xpose.msra.mxu0 0.0
    %1611 = vmatprep.subr.mxu0 0.0
    %1612 = vmatpush1.xpose.msra.mxu0 0.0
    %1613 = vmatprep.subr.mxu0 0.0
    %1614 = vmatpush1.xpose.msra.mxu0 0.0
    %1615 = vmatprep.subr.mxu0 0.0
    %1616 = vmatpush1.xpose.msra.mxu0 0.0
    %1617 = vmatprep.subr.mxu0 0.0
    %1618 = vmatpush1.xpose.msra.mxu0 0.0
    %1619 = vmatprep.subr.mxu0 0.0
    %1620 = vmatpush1.xpose.msra.mxu0 0.0
    %1621 = vmatprep.subr.mxu0 0.0
    %1622 = vmatpush1.xpose.msra.mxu0 0.0
    %1623 = vmatprep.subr.mxu0 0.0
    %1624 = vmatpush1.xpose.msra.mxu0 %v1591
    %1625 = vmatprep.subr.mxu0 0.0
    %1626 = vmatpush2.xpose.msra.mxu0 0.0
    %1627 = vmatprep.subr.mxu0 0.0
    %1628 = vmatpush2.xpose.msra.mxu0 0.0
    %1629 = vmatprep.subr.mxu0 0.0
    %1630 = vmatpush2.xpose.msra.mxu0 0.0
    %1631 = vmatprep.subr.mxu0 0.0
    %1632 = vmatpush2.xpose.msra.mxu0 0.0
    %1633 = vmatprep.subr.mxu0 0.0
    %1634 = vmatpush2.xpose.msra.mxu0 0.0
    %1635 = vmatprep.subr.mxu0 0.0
    %1636 = vmatpush2.xpose.msra.mxu0 0.0
    %1637 = vmatprep.subr.mxu0 0.0
    %1638 = vmatpush2.xpose.msra.mxu0 0.0
    %1639 = vmatprep.subr.mxu0 0.0
    %1640 = vmatpush2.xpose.msra.mxu0 0.0
    %1641 = vmatprep.subr.mxu0 0.0
    %1642 = vmatpush2.xpose.msra.mxu0 0.0
    %1643 = vmatprep.subr.mxu0 0.0
    %1644 = vmatpush2.xpose.msra.mxu0 0.0
    %1645 = vmatprep.subr.mxu0 0.0
    %1646 = vmatpush2.xpose.msra.mxu0 0.0
    %1647 = vmatprep.subr.mxu0 0.0
    %1648 = vmatpush2.xpose.msra.mxu0 0.0
    %1649 = vmatprep.subr.mxu0 0.0
    %1650 = vmatpush2.xpose.msra.mxu0 0.0
    %1651 = vmatprep.subr.mxu0 0.0
    %1652 = vmatpush2.xpose.msra.mxu0 0.0
    %1653 = vmatprep.subr.mxu0 0.0
    %1654 = vmatpush2.xpose.msra.mxu0 0.0
    %1655 = vmatprep.subr.mxu0 0.0
    %1656 = vmatpush2.xpose.msra.mxu0 0.0
    %1657 = vmatprep.mubr.f32.mxu0 0.0
    %1658 = vmatmul.mubr.f32.gmra.mxu0 %v1589
    %v1659 = vpop.f32.mrf.mxu0
    %v1660 = vadd.f32 %v307, %v1659
    %v1661 = vpop.f32.mrf.mxu0
    %1662 = vdwg.mxu0
    %1663 = vrot.lane.b32.xlu0 %v405, 104
    %v1664 = vpop.permute.xlu0 %1663
    %1665 = vrot.lane.b32.xlu0 %v489, 104
    %v1666 = vpop.permute.xlu0 %1665
    %v1667 = vsel %vm578, %v1664, 0
    %v1669 = vsel %vm578, %v1666, 0
    %1671 = vmatprep.subr.mxu0 0.0
    %1672 = vmatpush1.xpose.msra.mxu0 0.0
    %1673 = vmatprep.subr.mxu0 0.0
    %1674 = vmatpush1.xpose.msra.mxu0 0.0
    %1675 = vmatprep.subr.mxu0 0.0
    %1676 = vmatpush1.xpose.msra.mxu0 0.0
    %1677 = vmatprep.subr.mxu0 0.0
    %1678 = vmatpush1.xpose.msra.mxu0 0.0
    %1679 = vmatprep.subr.mxu0 0.0
    %1680 = vmatpush1.xpose.msra.mxu0 0.0
    %1681 = vmatprep.subr.mxu0 0.0
    %1682 = vmatpush1.xpose.msra.mxu0 0.0
    %1683 = vmatprep.subr.mxu0 0.0
    %1684 = vmatpush1.xpose.msra.mxu0 0.0
    %1685 = vmatprep.subr.mxu0 0.0
    %1686 = vmatpush1.xpose.msra.mxu0 0.0
    %1687 = vmatprep.subr.mxu0 0.0
    %1688 = vmatpush1.xpose.msra.mxu0 0.0
    %1689 = vmatprep.subr.mxu0 0.0
    %1690 = vmatpush1.xpose.msra.mxu0 0.0
    %1691 = vmatprep.subr.mxu0 0.0
    %1692 = vmatpush1.xpose.msra.mxu0 0.0
    %1693 = vmatprep.subr.mxu0 0.0
    %1694 = vmatpush1.xpose.msra.mxu0 0.0
    %1695 = vmatprep.subr.mxu0 0.0
    %1696 = vmatpush1.xpose.msra.mxu0 0.0
    %1697 = vmatprep.subr.mxu0 0.0
    %1698 = vmatpush1.xpose.msra.mxu0 0.0
    %1699 = vmatprep.subr.mxu0 0.0
    %1700 = vmatpush1.xpose.msra.mxu0 0.0
    %1701 = vmatprep.subr.mxu0 0.0
    %1702 = vmatpush1.xpose.msra.mxu0 %v1669
    %1703 = vmatprep.subr.mxu0 0.0
    %1704 = vmatpush2.xpose.msra.mxu0 0.0
    %1705 = vmatprep.subr.mxu0 0.0
    %1706 = vmatpush2.xpose.msra.mxu0 0.0
    %1707 = vmatprep.subr.mxu0 0.0
    %1708 = vmatpush2.xpose.msra.mxu0 0.0
    %1709 = vmatprep.subr.mxu0 0.0
    %1710 = vmatpush2.xpose.msra.mxu0 0.0
    %1711 = vmatprep.subr.mxu0 0.0
    %1712 = vmatpush2.xpose.msra.mxu0 0.0
    %1713 = vmatprep.subr.mxu0 0.0
    %1714 = vmatpush2.xpose.msra.mxu0 0.0
    %1715 = vmatprep.subr.mxu0 0.0
    %1716 = vmatpush2.xpose.msra.mxu0 0.0
    %1717 = vmatprep.subr.mxu0 0.0
    %1718 = vmatpush2.xpose.msra.mxu0 0.0
    %1719 = vmatprep.subr.mxu0 0.0
    %1720 = vmatpush2.xpose.msra.mxu0 0.0
    %1721 = vmatprep.subr.mxu0 0.0
    %1722 = vmatpush2.xpose.msra.mxu0 0.0
    %1723 = vmatprep.subr.mxu0 0.0
    %1724 = vmatpush2.xpose.msra.mxu0 0.0
    %1725 = vmatprep.subr.mxu0 0.0
    %1726 = vmatpush2.xpose.msra.mxu0 0.0
    %1727 = vmatprep.subr.mxu0 0.0
    %1728 = vmatpush2.xpose.msra.mxu0 0.0
    %1729 = vmatprep.subr.mxu0 0.0
    %1730 = vmatpush2.xpose.msra.mxu0 0.0
    %1731 = vmatprep.subr.mxu0 0.0
    %1732 = vmatpush2.xpose.msra.mxu0 0.0
    %1733 = vmatprep.subr.mxu0 0.0
    %1734 = vmatpush2.xpose.msra.mxu0 0.0
    %1735 = vmatprep.mubr.f32.mxu0 0.0
    %1736 = vmatmul.mubr.f32.gmra.mxu0 %v1667
    %v1737 = vpop.f32.mrf.mxu0
    %v1738 = vadd.f32 %v308, %v1737
    %v1739 = vpop.f32.mrf.mxu0
    %1740 = vdwg.mxu0
    %v1741 = vsel %vm578, %v1660, -inf
    %1742 = vmax.xlane.f32.xlu0 %v1741
    %v1743 = vpop.xlane.xlu0 %1742
    %v1744 = vsel %vm578, %v1738, -inf
    %1745 = vmax.xlane.f32.xlu0 %v1744
    %v1746 = vpop.xlane.xlu0 %1745
    %v1747 = vsub.f32 %v1660, %v1743
    %v1748 = vsub.f32 %v1738, %v1746
    %v1749 = vmul.f32 %v1747, 1.442695
    %v1750 = vpow.pop %v1749
    %v1751 = vmul.f32 %v1748, 1.442695
    %v1752 = vpow.pop %v1751
    %v1753 = vsel %vm578, %v1750, 0.0
    %1754 = vadd.xlane.f32.xlu0 %v1753
    %v1755 = vpop.xlane.xlu0 %1754
    %v1756 = vsel %vm578, %v1752, 0.0
    %1757 = vadd.xlane.f32.xlu0 %v1756
    %v1758 = vpop.xlane.xlu0 %1757
    %v1759 = vrcp.pop %v1755
    %v1760 = vrcp.pop %v1758
    %v1761 = vmul.f32 %v1750, %v1759
    %v1762 = vmul.f32 %v1752, %v1760
    %1763 = vrot.lane.b32.xlu0 %v570, 104
    %v1764 = vpop.permute.xlu0 %1763
    %v1767 = vsel %vm578, %v1761, 0
    %1769 = vmatprep.subr.mxu0 0.0
    %1770 = vmatpush1.msra.mxu0 0.0
    %1771 = vmatprep.subr.mxu0 0.0
    %1772 = vmatpush1.msra.mxu0 0.0
    %1773 = vmatprep.subr.mxu0 0.0
    %1774 = vmatpush1.msra.mxu0 0.0
    %1775 = vmatprep.subr.mxu0 0.0
    %1776 = vmatpush1.msra.mxu0 0.0
    %1777 = vmatprep.subr.mxu0 0.0
    %1778 = vmatpush1.msra.mxu0 0.0
    %1779 = vmatprep.subr.mxu0 0.0
    %1780 = vmatpush1.msra.mxu0 0.0
    %1781 = vmatprep.subr.mxu0 0.0
    %1782 = vmatpush1.msra.mxu0 0.0
    %1783 = vmatprep.subr.mxu0 0.0
    %1784 = vmatpush1.msra.mxu0 0.0
    %1785 = vmatprep.subr.mxu0 0.0
    %1786 = vmatpush1.msra.mxu0 0.0
    %1787 = vmatprep.subr.mxu0 0.0
    %1788 = vmatpush1.msra.mxu0 0.0
    %1789 = vmatprep.subr.mxu0 0.0
    %1790 = vmatpush1.msra.mxu0 0.0
    %1791 = vmatprep.subr.mxu0 0.0
    %1792 = vmatpush1.msra.mxu0 0.0
    %1793 = vmatprep.subr.mxu0 0.0
    %1794 = vmatpush1.msra.mxu0 0.0
    %1795 = vmatprep.subr.mxu0 0.0
    %1796 = vmatpush1.msra.mxu0 0.0
    %1797 = vmatprep.subr.mxu0 0.0
    %1798 = vmatpush1.msra.mxu0 0.0
    %1799 = vmatprep.subr.mxu0 0.0
    %1800 = vmatpush1.msra.mxu0 %v1764
    %1801 = vmatprep.subr.mxu0 0.0
    %1802 = vmatpush2.msra.mxu0 0.0
    %1803 = vmatprep.subr.mxu0 0.0
    %1804 = vmatpush2.msra.mxu0 0.0
    %1805 = vmatprep.subr.mxu0 0.0
    %1806 = vmatpush2.msra.mxu0 0.0
    %1807 = vmatprep.subr.mxu0 0.0
    %1808 = vmatpush2.msra.mxu0 0.0
    %1809 = vmatprep.subr.mxu0 0.0
    %1810 = vmatpush2.msra.mxu0 0.0
    %1811 = vmatprep.subr.mxu0 0.0
    %1812 = vmatpush2.msra.mxu0 0.0
    %1813 = vmatprep.subr.mxu0 0.0
    %1814 = vmatpush2.msra.mxu0 0.0
    %1815 = vmatprep.subr.mxu0 0.0
    %1816 = vmatpush2.msra.mxu0 0.0
    %1817 = vmatprep.subr.mxu0 0.0
    %1818 = vmatpush2.msra.mxu0 0.0
    %1819 = vmatprep.subr.mxu0 0.0
    %1820 = vmatpush2.msra.mxu0 0.0
    %1821 = vmatprep.subr.mxu0 0.0
    %1822 = vmatpush2.msra.mxu0 0.0
    %1823 = vmatprep.subr.mxu0 0.0
    %1824 = vmatpush2.msra.mxu0 0.0
    %1825 = vmatprep.subr.mxu0 0.0
    %1826 = vmatpush2.msra.mxu0 0.0
    %1827 = vmatprep.subr.mxu0 0.0
    %1828 = vmatpush2.msra.mxu0 0.0
    %1829 = vmatprep.subr.mxu0 0.0
    %1830 = vmatpush2.msra.mxu0 0.0
    %1831 = vmatprep.subr.mxu0 0.0
    %1832 = vmatpush2.msra.mxu0 0.0
    %1833 = vmatprep.mubr.f32.mxu0 0.0
    %1834 = vmatmul.mubr.f32.gmra.mxu0 %v1767
    %v1835 = vpop.f32.mrf.mxu0
    %v1836 = vadd.f32 0.0, %v1835
    %v1837 = vpop.f32.mrf.mxu0
    %1838 = vdwg.mxu0
    %1839 = vrot.lane.b32.xlu0 %v575, 104
    %v1840 = vpop.permute.xlu0 %1839
    %v1843 = vsel %vm578, %v1762, 0
    %1845 = vmatprep.subr.mxu0 0.0
    %1846 = vmatpush1.msra.mxu0 0.0
    %1847 = vmatprep.subr.mxu0 0.0
    %1848 = vmatpush1.msra.mxu0 0.0
    %1849 = vmatprep.subr.mxu0 0.0
    %1850 = vmatpush1.msra.mxu0 0.0
    %1851 = vmatprep.subr.mxu0 0.0
    %1852 = vmatpush1.msra.mxu0 0.0
    %1853 = vmatprep.subr.mxu0 0.0
    %1854 = vmatpush1.msra.mxu0 0.0
    %1855 = vmatprep.subr.mxu0 0.0
    %1856 = vmatpush1.msra.mxu0 0.0
    %1857 = vmatprep.subr.mxu0 0.0
    %1858 = vmatpush1.msra.mxu0 0.0
    %1859 = vmatprep.subr.mxu0 0.0
    %1860 = vmatpush1.msra.mxu0 0.0
    %1861 = vmatprep.subr.mxu0 0.0
    %1862 = vmatpush1.msra.mxu0 0.0
    %1863 = vmatprep.subr.mxu0 0.0
    %1864 = vmatpush1.msra.mxu0 0.0
    %1865 = vmatprep.subr.mxu0 0.0
    %1866 = vmatpush1.msra.mxu0 0.0
    %1867 = vmatprep.subr.mxu0 0.0
    %1868 = vmatpush1.msra.mxu0 0.0
    %1869 = vmatprep.subr.mxu0 0.0
    %1870 = vmatpush1.msra.mxu0 0.0
    %1871 = vmatprep.subr.mxu0 0.0
    %1872 = vmatpush1.msra.mxu0 0.0
    %1873 = vmatprep.subr.mxu0 0.0
    %1874 = vmatpush1.msra.mxu0 0.0
    %1875 = vmatprep.subr.mxu0 0.0
    %1876 = vmatpush1.msra.mxu0 %v1840
    %1877 = vmatprep.subr.mxu0 0.0
    %1878 = vmatpush2.msra.mxu0 0.0
    %1879 = vmatprep.subr.mxu0 0.0
    %1880 = vmatpush2.msra.mxu0 0.0
    %1881 = vmatprep.subr.mxu0 0.0
    %1882 = vmatpush2.msra.mxu0 0.0
    %1883 = vmatprep.subr.mxu0 0.0
    %1884 = vmatpush2.msra.mxu0 0.0
    %1885 = vmatprep.subr.mxu0 0.0
    %1886 = vmatpush2.msra.mxu0 0.0
    %1887 = vmatprep.subr.mxu0 0.0
    %1888 = vmatpush2.msra.mxu0 0.0
    %1889 = vmatprep.subr.mxu0 0.0
    %1890 = vmatpush2.msra.mxu0 0.0
    %1891 = vmatprep.subr.mxu0 0.0
    %1892 = vmatpush2.msra.mxu0 0.0
    %1893 = vmatprep.subr.mxu0 0.0
    %1894 = vmatpush2.msra.mxu0 0.0
    %1895 = vmatprep.subr.mxu0 0.0
    %1896 = vmatpush2.msra.mxu0 0.0
    %1897 = vmatprep.subr.mxu0 0.0
    %1898 = vmatpush2.msra.mxu0 0.0
    %1899 = vmatprep.subr.mxu0 0.0
    %1900 = vmatpush2.msra.mxu0 0.0
    %1901 = vmatprep.subr.mxu0 0.0
    %1902 = vmatpush2.msra.mxu0 0.0
    %1903 = vmatprep.subr.mxu0 0.0
    %1904 = vmatpush2.msra.mxu0 0.0
    %1905 = vmatprep.subr.mxu0 0.0
    %1906 = vmatpush2.msra.mxu0 0.0
    %1907 = vmatprep.subr.mxu0 0.0
    %1908 = vmatpush2.msra.mxu0 0.0
    %1909 = vmatprep.mubr.f32.mxu0 0.0
    %1910 = vmatmul.mubr.f32.gmra.mxu0 %v1843
    %v1911 = vpop.f32.mrf.mxu0
    %v1912 = vadd.f32 0.0, %v1911
    %v1913 = vpop.f32.mrf.mxu0
    %1914 = vdwg.mxu0
    %1917 = vrot.lane.b32.xlu0 %v1836, 24
    %v1918 = vpop.permute.xlu0 %1917
    %1919 = vrot.lane.b32.xlu0 %v1912, 24
    %v1920 = vpop.permute.xlu0 %1919
    %vm1923 = vcmask 261312
    %1924 = vst.msk [vmem:[#allocation2] sm:$0xff] %vm1923, %v1918
    %1925 = vst.msk [vmem:[#allocation2 + $0x8] sm:$0xff] %vm1923, %v1920
    %v1926 = vld [vmem:[#allocation2] sm:$0xff]
    %v1927 = vld [vmem:[#allocation2 + $0x8] sm:$0xff]
    %v1928 = vld [vmem:[#allocation12] sm:$0xff]
    %v1929 = vld [vmem:[#allocation12 + $0x8] sm:$0xff]
    %v1930 = vld [vmem:[#allocation12 + $0x10] sm:$0xff]
    %v1931 = vld [vmem:[#allocation12 + $0x18] sm:$0xff]
    %v1932 = vld [vmem:[#allocation14] sm:$0x1]
    %v1934 = vlaneseq
    %v1935 = vshrl.u32 %v1934, 7
    %v1936 = vsub.s32 0, %v1935
    %v1937 = vrot.slane %v1932, %v1936
    %v1940 = vsel %vm322, %v1926, 0
    %v1943 = vsel %vm322, %v1927, 0
    %1945 = vmatprep.subr.mxu0 0.0
    %1946 = vmatpush1.msra.mxu0 0.0
    %1947 = vmatprep.subr.mxu0 0.0
    %1948 = vmatpush1.msra.mxu0 0.0
    %1949 = vmatprep.subr.mxu0 0.0
    %1950 = vmatpush1.msra.mxu0 0.0
    %1951 = vmatprep.subr.mxu0 0.0
    %1952 = vmatpush1.msra.mxu0 0.0
    %1953 = vmatprep.subr.mxu0 0.0
    %1954 = vmatpush1.msra.mxu0 0.0
    %1955 = vmatprep.subr.mxu0 0.0
    %1956 = vmatpush1.msra.mxu0 0.0
    %1957 = vmatprep.subr.mxu0 0.0
    %1958 = vmatpush1.msra.mxu0 0.0
    %1959 = vmatprep.subr.mxu0 0.0
    %1960 = vmatpush1.msra.mxu0 0.0
    %1961 = vmatprep.subr.mxu0 0.0
    %1962 = vmatpush1.msra.mxu0 0.0
    %1963 = vmatprep.subr.mxu0 0.0
    %1964 = vmatpush1.msra.mxu0 0.0
    %1965 = vmatprep.subr.mxu0 0.0
    %1966 = vmatpush1.msra.mxu0 0.0
    %1967 = vmatprep.subr.mxu0 0.0
    %1968 = vmatpush1.msra.mxu0 0.0
    %1969 = vmatprep.subr.mxu0 0.0
    %1970 = vmatpush1.msra.mxu0 %v1931
    %1971 = vmatprep.subr.mxu0 0.0
    %1972 = vmatpush1.msra.mxu0 %v1930
    %1973 = vmatprep.subr.mxu0 0.0
    %1974 = vmatpush1.msra.mxu0 %v1929
    %1975 = vmatprep.subr.mxu0 0.0
    %1976 = vmatpush1.msra.mxu0 %v1928
    %1977 = vmatprep.subr.mxu0 0.0
    %1978 = vmatpush2.msra.mxu0 0.0
    %1979 = vmatprep.subr.mxu0 0.0
    %1980 = vmatpush2.msra.mxu0 0.0
    %1981 = vmatprep.subr.mxu0 0.0
    %1982 = vmatpush2.msra.mxu0 0.0
    %1983 = vmatprep.subr.mxu0 0.0
    %1984 = vmatpush2.msra.mxu0 0.0
    %1985 = vmatprep.subr.mxu0 0.0
    %1986 = vmatpush2.msra.mxu0 0.0
    %1987 = vmatprep.subr.mxu0 0.0
    %1988 = vmatpush2.msra.mxu0 0.0
    %1989 = vmatprep.subr.mxu0 0.0
    %1990 = vmatpush2.msra.mxu0 0.0
    %1991 = vmatprep.subr.mxu0 0.0
    %1992 = vmatpush2.msra.mxu0 0.0
    %1993 = vmatprep.subr.mxu0 0.0
    %1994 = vmatpush2.msra.mxu0 0.0
    %1995 = vmatprep.subr.mxu0 0.0
    %1996 = vmatpush2.msra.mxu0 0.0
    %1997 = vmatprep.subr.mxu0 0.0
    %1998 = vmatpush2.msra.mxu0 0.0
    %1999 = vmatprep.subr.mxu0 0.0
    %2000 = vmatpush2.msra.mxu0 0.0
    %2001 = vmatprep.subr.mxu0 0.0
    %2002 = vmatpush2.msra.mxu0 0.0
    %2003 = vmatprep.subr.mxu0 0.0
    %2004 = vmatpush2.msra.mxu0 0.0
    %2005 = vmatprep.subr.mxu0 0.0
    %2006 = vmatpush2.msra.mxu0 0.0
    %2007 = vmatprep.subr.mxu0 0.0
    %2008 = vmatpush2.msra.mxu0 0.0
    %2009 = vmatprep.mubr.f32.mxu0 0.0
    %2010 = vmatmul.mubr.f32.gmra.mxu0 %v1940
    %v2011 = vpop.f32.mrf.mxu0
    %v2012 = vadd.f32 %v1937, %v2011
    %v2013 = vpop.f32.mrf.mxu0
    %2014 = vmatprep.mubr.f32.mxu0 0.0
    %2015 = vmatmul.mubr.f32.gmra.mxu0 %v1943
    %v2016 = vpop.f32.mrf.mxu0
    %v2017 = vadd.f32 %v1937, %v2016
    %v2018 = vpop.f32.mrf.mxu0
    %2019 = vdwg.mxu0
    %v2020 = vadd.f32 %v309, %v2012
    %v2021 = vadd.f32 %v310, %v2017
    %v2022 = vsel %vm322, %v2020, 0.0
    %2023 = vadd.xlane.f32.xlu0 %v2022
    %v2024 = vpop.xlane.xlu0 %2023
    %v2025 = vsel %vm322, %v2021, 0.0
    %2026 = vadd.xlane.f32.xlu0 %v2025
    %v2027 = vpop.xlane.xlu0 %2026
    %v2028 = vrcp.pop 32.0
    %v2029 = vmul.f32 %v2024, %v2028
    %v2030 = vmul.f32 %v2027, %v2028
    %v2031 = vsub.f32 %v2020, %v2029
    %v2032 = vsub.f32 %v2021, %v2030
    %v2033 = vmul.f32 %v2031, %v2031
    %v2034 = vmul.f32 %v2032, %v2032
    %v2035 = vsel %vm322, %v2033, 0.0
    %2036 = vadd.xlane.f32.xlu0 %v2035
    %v2037 = vpop.xlane.xlu0 %2036
    %v2038 = vsel %vm322, %v2034, 0.0
    %2039 = vadd.xlane.f32.xlu0 %v2038
    %v2040 = vpop.xlane.xlu0 %2039
    %v2041 = vmul.f32 %v2037, %v2028
    %v2042 = vmul.f32 %v2040, %v2028
    %v2043 = vadd.f32 %v2041, 1e-05
    %v2044 = vadd.f32 %v2042, 1e-05
    %v2045 = vrsqrt.pop %v2043
    %v2046 = vrsqrt.pop %v2044
    %v2047 = vmul.f32 %v2031, %v2045
    %v2048 = vmul.f32 %v2032, %v2046
    %v2049 = vld [vmem:[#allocation15] sm:$0x1]
    %v2051 = vlaneseq
    %v2052 = vshrl.u32 %v2051, 7
    %v2053 = vsub.s32 0, %v2052
    %v2054 = vrot.slane %v2049, %v2053
    %v2056 = vmul.f32 %v2047, %v2054
    %v2057 = vmul.f32 %v2048, %v2054
    %v2058 = vld [vmem:[#allocation17] sm:$0x1]
    %v2060 = vlaneseq
    %v2061 = vshrl.u32 %v2060, 7
    %v2062 = vsub.s32 0, %v2061
    %v2063 = vrot.slane %v2058, %v2062
    %v2065 = vadd.f32 %v2056, %v2063
    %v2066 = vadd.f32 %v2057, %v2063
    %v2067 = vld [vmem:[#allocation21] sm:$0xff]
    %v2068 = vld [vmem:[#allocation21 + $0x8] sm:$0xff]
    %v2069 = vld [vmem:[#allocation21 + $0x10] sm:$0xff]
    %v2070 = vld [vmem:[#allocation21 + $0x18] sm:$0xff]
    %v2071 = vld [vmem:[#allocation23] sm:$0x1]
    %v2073 = vlaneseq
    %v2074 = vshrl.u32 %v2073, 7
    %v2075 = vsub.s32 0, %v2074
    %v2076 = vrot.slane %v2071, %v2075
    %v2079 = vsel %vm322, %v2065, 0
    %v2082 = vsel %vm322, %v2066, 0
    %2084 = vmatprep.subr.mxu0 0.0
    %2085 = vmatpush1.msra.mxu0 0.0
    %2086 = vmatprep.subr.mxu0 0.0
    %2087 = vmatpush1.msra.mxu0 0.0
    %2088 = vmatprep.subr.mxu0 0.0
    %2089 = vmatpush1.msra.mxu0 0.0
    %2090 = vmatprep.subr.mxu0 0.0
    %2091 = vmatpush1.msra.mxu0 0.0
    %2092 = vmatprep.subr.mxu0 0.0
    %2093 = vmatpush1.msra.mxu0 0.0
    %2094 = vmatprep.subr.mxu0 0.0
    %2095 = vmatpush1.msra.mxu0 0.0
    %2096 = vmatprep.subr.mxu0 0.0
    %2097 = vmatpush1.msra.mxu0 0.0
    %2098 = vmatprep.subr.mxu0 0.0
    %2099 = vmatpush1.msra.mxu0 0.0
    %2100 = vmatprep.subr.mxu0 0.0
    %2101 = vmatpush1.msra.mxu0 0.0
    %2102 = vmatprep.subr.mxu0 0.0
    %2103 = vmatpush1.msra.mxu0 0.0
    %2104 = vmatprep.subr.mxu0 0.0
    %2105 = vmatpush1.msra.mxu0 0.0
    %2106 = vmatprep.subr.mxu0 0.0
    %2107 = vmatpush1.msra.mxu0 0.0
    %2108 = vmatprep.subr.mxu0 0.0
    %2109 = vmatpush1.msra.mxu0 %v2070
    %2110 = vmatprep.subr.mxu0 0.0
    %2111 = vmatpush1.msra.mxu0 %v2069
    %2112 = vmatprep.subr.mxu0 0.0
    %2113 = vmatpush1.msra.mxu0 %v2068
    %2114 = vmatprep.subr.mxu0 0.0
    %2115 = vmatpush1.msra.mxu0 %v2067
    %2116 = vmatprep.subr.mxu0 0.0
    %2117 = vmatpush2.msra.mxu0 0.0
    %2118 = vmatprep.subr.mxu0 0.0
    %2119 = vmatpush2.msra.mxu0 0.0
    %2120 = vmatprep.subr.mxu0 0.0
    %2121 = vmatpush2.msra.mxu0 0.0
    %2122 = vmatprep.subr.mxu0 0.0
    %2123 = vmatpush2.msra.mxu0 0.0
    %2124 = vmatprep.subr.mxu0 0.0
    %2125 = vmatpush2.msra.mxu0 0.0
    %2126 = vmatprep.subr.mxu0 0.0
    %2127 = vmatpush2.msra.mxu0 0.0
    %2128 = vmatprep.subr.mxu0 0.0
    %2129 = vmatpush2.msra.mxu0 0.0
    %2130 = vmatprep.subr.mxu0 0.0
    %2131 = vmatpush2.msra.mxu0 0.0
    %2132 = vmatprep.subr.mxu0 0.0
    %2133 = vmatpush2.msra.mxu0 0.0
    %2134 = vmatprep.subr.mxu0 0.0
    %2135 = vmatpush2.msra.mxu0 0.0
    %2136 = vmatprep.subr.mxu0 0.0
    %2137 = vmatpush2.msra.mxu0 0.0
    %2138 = vmatprep.subr.mxu0 0.0
    %2139 = vmatpush2.msra.mxu0 0.0
    %2140 = vmatprep.subr.mxu0 0.0
    %2141 = vmatpush2.msra.mxu0 0.0
    %2142 = vmatprep.subr.mxu0 0.0
    %2143 = vmatpush2.msra.mxu0 0.0
    %2144 = vmatprep.subr.mxu0 0.0
    %2145 = vmatpush2.msra.mxu0 0.0
    %2146 = vmatprep.subr.mxu0 0.0
    %2147 = vmatpush2.msra.mxu0 0.0
    %2148 = vmatprep.mubr.f32.mxu0 0.0
    %2149 = vmatmul.mubr.f32.gmra.mxu0 %v2079
    %v2150 = vpop.f32.mrf.mxu0
    %v2151 = vadd.f32 %v2076, %v2150
    %v2152 = vpop.f32.mrf.mxu0
    %2153 = vmatprep.mubr.f32.mxu0 0.0
    %2154 = vmatmul.mubr.f32.gmra.mxu0 %v2082
    %v2155 = vpop.f32.mrf.mxu0
    %v2156 = vadd.f32 %v2076, %v2155
    %v2157 = vpop.f32.mrf.mxu0
    %2158 = vdwg.mxu0
    %v2159 = vmax.f32 %v2151, 0.0
    %v2160 = vmax.f32 %v2156, 0.0
    %v2161 = vld [vmem:[%s16] sm:$0xff]
    %v2162 = vld [vmem:[%s16 + $0x8] sm:$0xff]
    %v2163 = vld [vmem:[%s16 + $0x10] sm:$0xff]
    %v2164 = vld [vmem:[%s16 + $0x18] sm:$0xff]
    %v2165 = vld [vmem:[%s16 + $0x20] sm:$0xff]
    %v2166 = vld [vmem:[%s16 + $0x28] sm:$0xff]
    %v2167 = vld [vmem:[%s16 + $0x30] sm:$0xff]
    %v2168 = vld [vmem:[%s16 + $0x38] sm:$0xff]
    %v2169 = vld [vmem:[#allocation24] sm:$0x1]
    %v2171 = vlaneseq
    %v2172 = vshrl.u32 %v2171, 7
    %v2173 = vsub.s32 0, %v2172
    %v2174 = vrot.slane %v2169, %v2173
    %vm2176 = vcmask 523264
    %v2178 = vsel %vm2176, %v2159, 0
    %v2181 = vsel %vm2176, %v2160, 0
    %2183 = vmatprep.subr.mxu0 0.0
    %2184 = vmatpush1.msra.mxu0 0.0
    %2185 = vmatprep.subr.mxu0 0.0
    %2186 = vmatpush1.msra.mxu0 0.0
    %2187 = vmatprep.subr.mxu0 0.0
    %2188 = vmatpush1.msra.mxu0 0.0
    %2189 = vmatprep.subr.mxu0 0.0
    %2190 = vmatpush1.msra.mxu0 0.0
    %2191 = vmatprep.subr.mxu0 0.0
    %2192 = vmatpush1.msra.mxu0 0.0
    %2193 = vmatprep.subr.mxu0 0.0
    %2194 = vmatpush1.msra.mxu0 0.0
    %2195 = vmatprep.subr.mxu0 0.0
    %2196 = vmatpush1.msra.mxu0 0.0
    %2197 = vmatprep.subr.mxu0 0.0
    %2198 = vmatpush1.msra.mxu0 0.0
    %2199 = vmatprep.subr.mxu0 0.0
    %2200 = vmatpush1.msra.mxu0 %v2168
    %2201 = vmatprep.subr.mxu0 0.0
    %2202 = vmatpush1.msra.mxu0 %v2167
    %2203 = vmatprep.subr.mxu0 0.0
    %2204 = vmatpush1.msra.mxu0 %v2166
    %2205 = vmatprep.subr.mxu0 0.0
    %2206 = vmatpush1.msra.mxu0 %v2165
    %2207 = vmatprep.subr.mxu0 0.0
    %2208 = vmatpush1.msra.mxu0 %v2164
    %2209 = vmatprep.subr.mxu0 0.0
    %2210 = vmatpush1.msra.mxu0 %v2163
    %2211 = vmatprep.subr.mxu0 0.0
    %2212 = vmatpush1.msra.mxu0 %v2162
    %2213 = vmatprep.subr.mxu0 0.0
    %2214 = vmatpush1.msra.mxu0 %v2161
    %2215 = vmatprep.subr.mxu0 0.0
    %2216 = vmatpush2.msra.mxu0 0.0
    %2217 = vmatprep.subr.mxu0 0.0
    %2218 = vmatpush2.msra.mxu0 0.0
    %2219 = vmatprep.subr.mxu0 0.0
    %2220 = vmatpush2.msra.mxu0 0.0
    %2221 = vmatprep.subr.mxu0 0.0
    %2222 = vmatpush2.msra.mxu0 0.0
    %2223 = vmatprep.subr.mxu0 0.0
    %2224 = vmatpush2.msra.mxu0 0.0
    %2225 = vmatprep.subr.mxu0 0.0
    %2226 = vmatpush2.msra.mxu0 0.0
    %2227 = vmatprep.subr.mxu0 0.0
    %2228 = vmatpush2.msra.mxu0 0.0
    %2229 = vmatprep.subr.mxu0 0.0
    %2230 = vmatpush2.msra.mxu0 0.0
    %2231 = vmatprep.subr.mxu0 0.0
    %2232 = vmatpush2.msra.mxu0 0.0
    %2233 = vmatprep.subr.mxu0 0.0
    %2234 = vmatpush2.msra.mxu0 0.0
    %2235 = vmatprep.subr.mxu0 0.0
    %2236 = vmatpush2.msra.mxu0 0.0
    %2237 = vmatprep.subr.mxu0 0.0
    %2238 = vmatpush2.msra.mxu0 0.0
    %2239 = vmatprep.subr.mxu0 0.0
    %2240 = vmatpush2.msra.mxu0 0.0
    %2241 = vmatprep.subr.mxu0 0.0
    %2242 = vmatpush2.msra.mxu0 0.0
    %2243 = vmatprep.subr.mxu0 0.0
    %2244 = vmatpush2.msra.mxu0 0.0
    %2245 = vmatprep.subr.mxu0 0.0
    %2246 = vmatpush2.msra.mxu0 0.0
    %2247 = vmatprep.mubr.f32.mxu0 0.0
    %2248 = vmatmul.mubr.f32.gmra.mxu0 %v2178
    %v2249 = vpop.f32.mrf.mxu0
    %v2250 = vadd.f32 %v2174, %v2249
    %v2251 = vpop.f32.mrf.mxu0
    %2252 = vmatprep.mubr.f32.mxu0 0.0
    %2253 = vmatmul.mubr.f32.gmra.mxu0 %v2181
    %v2254 = vpop.f32.mrf.mxu0
    %v2255 = vadd.f32 %v2174, %v2254
    %v2256 = vpop.f32.mrf.mxu0
    %2257 = vdwg.mxu0
    %v2258 = vadd.f32 %v2065, %v2250
    %v2259 = vadd.f32 %v2066, %v2255
    %v2260 = vsel %vm322, %v2258, 0.0
    %2261 = vadd.xlane.f32.xlu0 %v2260
    %v2262 = vpop.xlane.xlu0 %2261
    %v2263 = vsel %vm322, %v2259, 0.0
    %2264 = vadd.xlane.f32.xlu0 %v2263
    %v2265 = vpop.xlane.xlu0 %2264
    %v2266 = vmul.f32 %v2262, %v2028
    %v2267 = vmul.f32 %v2265, %v2028
    %v2268 = vsub.f32 %v2258, %v2266
    %v2269 = vsub.f32 %v2259, %v2267
    %v2270 = vmul.f32 %v2268, %v2268
    %v2271 = vmul.f32 %v2269, %v2269
    %v2272 = vsel %vm322, %v2270, 0.0
    %2273 = vadd.xlane.f32.xlu0 %v2272
    %v2274 = vpop.xlane.xlu0 %2273
    %v2275 = vsel %vm322, %v2271, 0.0
    %2276 = vadd.xlane.f32.xlu0 %v2275
    %v2277 = vpop.xlane.xlu0 %2276
    %v2278 = vmul.f32 %v2274, %v2028
    %v2279 = vmul.f32 %v2277, %v2028
    %v2280 = vadd.f32 %v2278, 1e-05
    %v2281 = vadd.f32 %v2279, 1e-05
    %v2282 = vrsqrt.pop %v2280
    %v2283 = vrsqrt.pop %v2281
    %v2284 = vmul.f32 %v2268, %v2282
    %v2285 = vmul.f32 %v2269, %v2283
    %v2286 = vld [vmem:[#allocation18] sm:$0x1]
    %v2288 = vlaneseq
    %v2289 = vshrl.u32 %v2288, 7
    %v2290 = vsub.s32 0, %v2289
    %v2291 = vrot.slane %v2286, %v2290
    %v2293 = vmul.f32 %v2284, %v2291
    %v2294 = vmul.f32 %v2285, %v2291
    %v2295 = vld [vmem:[#allocation20] sm:$0x1]
    %v2297 = vlaneseq
    %v2298 = vshrl.u32 %v2297, 7
    %v2299 = vsub.s32 0, %v2298
    %v2300 = vrot.slane %v2295, %v2299
    %v2302 = vadd.f32 %v2293, %v2300
    %v2303 = vadd.f32 %v2294, %v2300
    %s2304 = scalar_lea.vmem %s2, 32
    %v2305 = vld [vmem:[%s2304] sm:$0xff]
    %v2306 = vld [vmem:[%s2304 + $0x8] sm:$0xff]
    %v2307 = vld [vmem:[%s2304 + $0x10] sm:$0xff]
    %v2308 = vld [vmem:[%s2304 + $0x18] sm:$0xff]
    %s2309 = scalar_lea.vmem [#allocation8], 1
    %v2310 = vld [vmem:[%s2309] sm:$0x1]
    %v2312 = vlaneseq
    %v2313 = vshrl.u32 %v2312, 7
    %v2314 = vsub.s32 0, %v2313
    %v2315 = vrot.slane %v2310, %v2314
    %v2318 = vsel %vm322, %v2302, 0
    %v2321 = vsel %vm322, %v2303, 0
    %2323 = vmatprep.subr.mxu0 0.0
    %2324 = vmatpush1.msra.mxu0 0.0
    %2325 = vmatprep.subr.mxu0 0.0
    %2326 = vmatpush1.msra.mxu0 0.0
    %2327 = vmatprep.subr.mxu0 0.0
    %2328 = vmatpush1.msra.mxu0 0.0
    %2329 = vmatprep.subr.mxu0 0.0
    %2330 = vmatpush1.msra.mxu0 0.0
    %2331 = vmatprep.subr.mxu0 0.0
    %2332 = vmatpush1.msra.mxu0 0.0
    %2333 = vmatprep.subr.mxu0 0.0
    %2334 = vmatpush1.msra.mxu0 0.0
    %2335 = vmatprep.subr.mxu0 0.0
    %2336 = vmatpush1.msra.mxu0 0.0
    %2337 = vmatprep.subr.mxu0 0.0
    %2338 = vmatpush1.msra.mxu0 0.0
    %2339 = vmatprep.subr.mxu0 0.0
    %2340 = vmatpush1.msra.mxu0 0.0
    %2341 = vmatprep.subr.mxu0 0.0
    %2342 = vmatpush1.msra.mxu0 0.0
    %2343 = vmatprep.subr.mxu0 0.0
    %2344 = vmatpush1.msra.mxu0 0.0
    %2345 = vmatprep.subr.mxu0 0.0
    %2346 = vmatpush1.msra.mxu0 0.0
    %2347 = vmatprep.subr.mxu0 0.0
    %2348 = vmatpush1.msra.mxu0 %v2308
    %2349 = vmatprep.subr.mxu0 0.0
    %2350 = vmatpush1.msra.mxu0 %v2307
    %2351 = vmatprep.subr.mxu0 0.0
    %2352 = vmatpush1.msra.mxu0 %v2306
    %2353 = vmatprep.subr.mxu0 0.0
    %2354 = vmatpush1.msra.mxu0 %v2305
    %2355 = vmatprep.subr.mxu0 0.0
    %2356 = vmatpush2.msra.mxu0 0.0
    %2357 = vmatprep.subr.mxu0 0.0
    %2358 = vmatpush2.msra.mxu0 0.0
    %2359 = vmatprep.subr.mxu0 0.0
    %2360 = vmatpush2.msra.mxu0 0.0
    %2361 = vmatprep.subr.mxu0 0.0
    %2362 = vmatpush2.msra.mxu0 0.0
    %2363 = vmatprep.subr.mxu0 0.0
    %2364 = vmatpush2.msra.mxu0 0.0
    %2365 = vmatprep.subr.mxu0 0.0
    %2366 = vmatpush2.msra.mxu0 0.0
    %2367 = vmatprep.subr.mxu0 0.0
    %2368 = vmatpush2.msra.mxu0 0.0
    %2369 = vmatprep.subr.mxu0 0.0
    %2370 = vmatpush2.msra.mxu0 0.0
    %2371 = vmatprep.subr.mxu0 0.0
    %2372 = vmatpush2.msra.mxu0 0.0
    %2373 = vmatprep.subr.mxu0 0.0
    %2374 = vmatpush2.msra.mxu0 0.0
    %2375 = vmatprep.subr.mxu0 0.0
    %2376 = vmatpush2.msra.mxu0 0.0
    %2377 = vmatprep.subr.mxu0 0.0
    %2378 = vmatpush2.msra.mxu0 0.0
    %2379 = vmatprep.subr.mxu0 0.0
    %2380 = vmatpush2.msra.mxu0 0.0
    %2381 = vmatprep.subr.mxu0 0.0
    %2382 = vmatpush2.msra.mxu0 0.0
    %2383 = vmatprep.subr.mxu0 0.0
    %2384 = vmatpush2.msra.mxu0 0.0
    %2385 = vmatprep.subr.mxu0 0.0
    %2386 = vmatpush2.msra.mxu0 0.0
    %2387 = vmatprep.mubr.f32.mxu0 0.0
    %2388 = vmatmul.mubr.f32.gmra.mxu0 %v2318
    %v2389 = vpop.f32.mrf.mxu0
    %v2390 = vadd.f32 %v2315, %v2389
    %v2391 = vpop.f32.mrf.mxu0
    %2392 = vmatprep.mubr.f32.mxu0 0.0
    %2393 = vmatmul.mubr.f32.gmra.mxu0 %v2321
    %v2394 = vpop.f32.mrf.mxu0
    %v2395 = vadd.f32 %v2315, %v2394
    %v2396 = vpop.f32.mrf.mxu0
    %2397 = vdwg.mxu0
    %v2398 = vmul.f32 %v2390, 0.35355338
    %v2399 = vmul.f32 %v2395, 0.35355338
    %s2400 = scalar_lea.vmem %s3, 32
    %v2401 = vld [vmem:[%s2400] sm:$0xff]
    %v2402 = vld [vmem:[%s2400 + $0x8] sm:$0xff]
    %v2403 = vld [vmem:[%s2400 + $0x10] sm:$0xff]
    %v2404 = vld [vmem:[%s2400 + $0x18] sm:$0xff]
    %s2405 = scalar_lea.vmem [#allocation9], 1
    %v2406 = vld [vmem:[%s2405] sm:$0x1]
    %v2408 = vlaneseq
    %v2409 = vshrl.u32 %v2408, 7
    %v2410 = vsub.s32 0, %v2409
    %v2411 = vrot.slane %v2406, %v2410
    %2413 = vmatprep.subr.mxu0 0.0
    %2414 = vmatpush1.msra.mxu0 0.0
    %2415 = vmatprep.subr.mxu0 0.0
    %2416 = vmatpush1.msra.mxu0 0.0
    %2417 = vmatprep.subr.mxu0 0.0
    %2418 = vmatpush1.msra.mxu0 0.0
    %2419 = vmatprep.subr.mxu0 0.0
    %2420 = vmatpush1.msra.mxu0 0.0
    %2421 = vmatprep.subr.mxu0 0.0
    %2422 = vmatpush1.msra.mxu0 0.0
    %2423 = vmatprep.subr.mxu0 0.0
    %2424 = vmatpush1.msra.mxu0 0.0
    %2425 = vmatprep.subr.mxu0 0.0
    %2426 = vmatpush1.msra.mxu0 0.0
    %2427 = vmatprep.subr.mxu0 0.0
    %2428 = vmatpush1.msra.mxu0 0.0
    %2429 = vmatprep.subr.mxu0 0.0
    %2430 = vmatpush1.msra.mxu0 0.0
    %2431 = vmatprep.subr.mxu0 0.0
    %2432 = vmatpush1.msra.mxu0 0.0
    %2433 = vmatprep.subr.mxu0 0.0
    %2434 = vmatpush1.msra.mxu0 0.0
    %2435 = vmatprep.subr.mxu0 0.0
    %2436 = vmatpush1.msra.mxu0 0.0
    %2437 = vmatprep.subr.mxu0 0.0
    %2438 = vmatpush1.msra.mxu0 %v2404
    %2439 = vmatprep.subr.mxu0 0.0
    %2440 = vmatpush1.msra.mxu0 %v2403
    %2441 = vmatprep.subr.mxu0 0.0
    %2442 = vmatpush1.msra.mxu0 %v2402
    %2443 = vmatprep.subr.mxu0 0.0
    %2444 = vmatpush1.msra.mxu0 %v2401
    %2445 = vmatprep.subr.mxu0 0.0
    %2446 = vmatpush2.msra.mxu0 0.0
    %2447 = vmatprep.subr.mxu0 0.0
    %2448 = vmatpush2.msra.mxu0 0.0
    %2449 = vmatprep.subr.mxu0 0.0
    %2450 = vmatpush2.msra.mxu0 0.0
    %2451 = vmatprep.subr.mxu0 0.0
    %2452 = vmatpush2.msra.mxu0 0.0
    %2453 = vmatprep.subr.mxu0 0.0
    %2454 = vmatpush2.msra.mxu0 0.0
    %2455 = vmatprep.subr.mxu0 0.0
    %2456 = vmatpush2.msra.mxu0 0.0
    %2457 = vmatprep.subr.mxu0 0.0
    %2458 = vmatpush2.msra.mxu0 0.0
    %2459 = vmatprep.subr.mxu0 0.0
    %2460 = vmatpush2.msra.mxu0 0.0
    %2461 = vmatprep.subr.mxu0 0.0
    %2462 = vmatpush2.msra.mxu0 0.0
    %2463 = vmatprep.subr.mxu0 0.0
    %2464 = vmatpush2.msra.mxu0 0.0
    %2465 = vmatprep.subr.mxu0 0.0
    %2466 = vmatpush2.msra.mxu0 0.0
    %2467 = vmatprep.subr.mxu0 0.0
    %2468 = vmatpush2.msra.mxu0 0.0
    %2469 = vmatprep.subr.mxu0 0.0
    %2470 = vmatpush2.msra.mxu0 0.0
    %2471 = vmatprep.subr.mxu0 0.0
    %2472 = vmatpush2.msra.mxu0 0.0
    %2473 = vmatprep.subr.mxu0 0.0
    %2474 = vmatpush2.msra.mxu0 0.0
    %2475 = vmatprep.subr.mxu0 0.0
    %2476 = vmatpush2.msra.mxu0 0.0
    %2477 = vmatprep.mubr.f32.mxu0 0.0
    %2478 = vmatmul.mubr.f32.gmra.mxu0 %v2318
    %v2479 = vpop.f32.mrf.mxu0
    %v2480 = vadd.f32 %v2411, %v2479
    %v2481 = vpop.f32.mrf.mxu0
    %2482 = vmatprep.mubr.f32.mxu0 0.0
    %2483 = vmatmul.mubr.f32.gmra.mxu0 %v2321
    %v2484 = vpop.f32.mrf.mxu0
    %v2485 = vadd.f32 %v2411, %v2484
    %v2486 = vpop.f32.mrf.mxu0
    %2487 = vdwg.mxu0
    %s2488 = scalar_lea.vmem %s4, 32
    %v2489 = vld [vmem:[%s2488] sm:$0xff]
    %v2490 = vld [vmem:[%s2488 + $0x8] sm:$0xff]
    %v2491 = vld [vmem:[%s2488 + $0x10] sm:$0xff]
    %v2492 = vld [vmem:[%s2488 + $0x18] sm:$0xff]
    %s2493 = scalar_lea.vmem [#allocation11], 1
    %v2494 = vld [vmem:[%s2493] sm:$0x1]
    %v2496 = vlaneseq
    %v2497 = vshrl.u32 %v2496, 7
    %v2498 = vsub.s32 0, %v2497
    %v2499 = vrot.slane %v2494, %v2498
    %2501 = vmatprep.subr.mxu0 0.0
    %2502 = vmatpush1.msra.mxu0 0.0
    %2503 = vmatprep.subr.mxu0 0.0
    %2504 = vmatpush1.msra.mxu0 0.0
    %2505 = vmatprep.subr.mxu0 0.0
    %2506 = vmatpush1.msra.mxu0 0.0
    %2507 = vmatprep.subr.mxu0 0.0
    %2508 = vmatpush1.msra.mxu0 0.0
    %2509 = vmatprep.subr.mxu0 0.0
    %2510 = vmatpush1.msra.mxu0 0.0
    %2511 = vmatprep.subr.mxu0 0.0
    %2512 = vmatpush1.msra.mxu0 0.0
    %2513 = vmatprep.subr.mxu0 0.0
    %2514 = vmatpush1.msra.mxu0 0.0
    %2515 = vmatprep.subr.mxu0 0.0
    %2516 = vmatpush1.msra.mxu0 0.0
    %2517 = vmatprep.subr.mxu0 0.0
    %2518 = vmatpush1.msra.mxu0 0.0
    %2519 = vmatprep.subr.mxu0 0.0
    %2520 = vmatpush1.msra.mxu0 0.0
    %2521 = vmatprep.subr.mxu0 0.0
    %2522 = vmatpush1.msra.mxu0 0.0
    %2523 = vmatprep.subr.mxu0 0.0
    %2524 = vmatpush1.msra.mxu0 0.0
    %2525 = vmatprep.subr.mxu0 0.0
    %2526 = vmatpush1.msra.mxu0 %v2492
    %2527 = vmatprep.subr.mxu0 0.0
    %2528 = vmatpush1.msra.mxu0 %v2491
    %2529 = vmatprep.subr.mxu0 0.0
    %2530 = vmatpush1.msra.mxu0 %v2490
    %2531 = vmatprep.subr.mxu0 0.0
    %2532 = vmatpush1.msra.mxu0 %v2489
    %2533 = vmatprep.subr.mxu0 0.0
    %2534 = vmatpush2.msra.mxu0 0.0
    %2535 = vmatprep.subr.mxu0 0.0
    %2536 = vmatpush2.msra.mxu0 0.0
    %2537 = vmatprep.subr.mxu0 0.0
    %2538 = vmatpush2.msra.mxu0 0.0
    %2539 = vmatprep.subr.mxu0 0.0
    %2540 = vmatpush2.msra.mxu0 0.0
    %2541 = vmatprep.subr.mxu0 0.0
    %2542 = vmatpush2.msra.mxu0 0.0
    %2543 = vmatprep.subr.mxu0 0.0
    %2544 = vmatpush2.msra.mxu0 0.0
    %2545 = vmatprep.subr.mxu0 0.0
    %2546 = vmatpush2.msra.mxu0 0.0
    %2547 = vmatprep.subr.mxu0 0.0
    %2548 = vmatpush2.msra.mxu0 0.0
    %2549 = vmatprep.subr.mxu0 0.0
    %2550 = vmatpush2.msra.mxu0 0.0
    %2551 = vmatprep.subr.mxu0 0.0
    %2552 = vmatpush2.msra.mxu0 0.0
    %2553 = vmatprep.subr.mxu0 0.0
    %2554 = vmatpush2.msra.mxu0 0.0
    %2555 = vmatprep.subr.mxu0 0.0
    %2556 = vmatpush2.msra.mxu0 0.0
    %2557 = vmatprep.subr.mxu0 0.0
    %2558 = vmatpush2.msra.mxu0 0.0
    %2559 = vmatprep.subr.mxu0 0.0
    %2560 = vmatpush2.msra.mxu0 0.0
    %2561 = vmatprep.subr.mxu0 0.0
    %2562 = vmatpush2.msra.mxu0 0.0
    %2563 = vmatprep.subr.mxu0 0.0
    %2564 = vmatpush2.msra.mxu0 0.0
    %2565 = vmatprep.mubr.f32.mxu0 0.0
    %2566 = vmatmul.mubr.f32.gmra.mxu0 %v2318
    %v2567 = vpop.f32.mrf.mxu0
    %v2568 = vadd.f32 %v2499, %v2567
    %v2569 = vpop.f32.mrf.mxu0
    %2570 = vmatprep.mubr.f32.mxu0 0.0
    %2571 = vmatmul.mubr.f32.gmra.mxu0 %v2321
    %v2572 = vpop.f32.mrf.mxu0
    %v2573 = vadd.f32 %v2499, %v2572
    %v2574 = vpop.f32.mrf.mxu0
    %2575 = vdwg.mxu0
    %v2577 = vsel %vm578, %v2398, 0
    %v2580 = vsel %vm578, %v2480, 0
    %2582 = vmatprep.subr.mxu0 0.0
    %2583 = vmatpush1.xpose.msra.mxu0 0.0
    %2584 = vmatprep.subr.mxu0 0.0
    %2585 = vmatpush1.xpose.msra.mxu0 0.0
    %2586 = vmatprep.subr.mxu0 0.0
    %2587 = vmatpush1.xpose.msra.mxu0 0.0
    %2588 = vmatprep.subr.mxu0 0.0
    %2589 = vmatpush1.xpose.msra.mxu0 0.0
    %2590 = vmatprep.subr.mxu0 0.0
    %2591 = vmatpush1.xpose.msra.mxu0 0.0
    %2592 = vmatprep.subr.mxu0 0.0
    %2593 = vmatpush1.xpose.msra.mxu0 0.0
    %2594 = vmatprep.subr.mxu0 0.0
    %2595 = vmatpush1.xpose.msra.mxu0 0.0
    %2596 = vmatprep.subr.mxu0 0.0
    %2597 = vmatpush1.xpose.msra.mxu0 0.0
    %2598 = vmatprep.subr.mxu0 0.0
    %2599 = vmatpush1.xpose.msra.mxu0 0.0
    %2600 = vmatprep.subr.mxu0 0.0
    %2601 = vmatpush1.xpose.msra.mxu0 0.0
    %2602 = vmatprep.subr.mxu0 0.0
    %2603 = vmatpush1.xpose.msra.mxu0 0.0
    %2604 = vmatprep.subr.mxu0 0.0
    %2605 = vmatpush1.xpose.msra.mxu0 0.0
    %2606 = vmatprep.subr.mxu0 0.0
    %2607 = vmatpush1.xpose.msra.mxu0 0.0
    %2608 = vmatprep.subr.mxu0 0.0
    %2609 = vmatpush1.xpose.msra.mxu0 0.0
    %2610 = vmatprep.subr.mxu0 0.0
    %2611 = vmatpush1.xpose.msra.mxu0 0.0
    %2612 = vmatprep.subr.mxu0 0.0
    %2613 = vmatpush1.xpose.msra.mxu0 %v2580
    %2614 = vmatprep.subr.mxu0 0.0
    %2615 = vmatpush2.xpose.msra.mxu0 0.0
    %2616 = vmatprep.subr.mxu0 0.0
    %2617 = vmatpush2.xpose.msra.mxu0 0.0
    %2618 = vmatprep.subr.mxu0 0.0
    %2619 = vmatpush2.xpose.msra.mxu0 0.0
    %2620 = vmatprep.subr.mxu0 0.0
    %2621 = vmatpush2.xpose.msra.mxu0 0.0
    %2622 = vmatprep.subr.mxu0 0.0
    %2623 = vmatpush2.xpose.msra.mxu0 0.0
    %2624 = vmatprep.subr.mxu0 0.0
    %2625 = vmatpush2.xpose.msra.mxu0 0.0
    %2626 = vmatprep.subr.mxu0 0.0
    %2627 = vmatpush2.xpose.msra.mxu0 0.0
    %2628 = vmatprep.subr.mxu0 0.0
    %2629 = vmatpush2.xpose.msra.mxu0 0.0
    %2630 = vmatprep.subr.mxu0 0.0
    %2631 = vmatpush2.xpose.msra.mxu0 0.0
    %2632 = vmatprep.subr.mxu0 0.0
    %2633 = vmatpush2.xpose.msra.mxu0 0.0
    %2634 = vmatprep.subr.mxu0 0.0
    %2635 = vmatpush2.xpose.msra.mxu0 0.0
    %2636 = vmatprep.subr.mxu0 0.0
    %2637 = vmatpush2.xpose.msra.mxu0 0.0
    %2638 = vmatprep.subr.mxu0 0.0
    %2639 = vmatpush2.xpose.msra.mxu0 0.0
    %2640 = vmatprep.subr.mxu0 0.0
    %2641 = vmatpush2.xpose.msra.mxu0 0.0
    %2642 = vmatprep.subr.mxu0 0.0
    %2643 = vmatpush2.xpose.msra.mxu0 0.0
    %2644 = vmatprep.subr.mxu0 0.0
    %2645 = vmatpush2.xpose.msra.mxu0 0.0
    %2646 = vmatprep.mubr.f32.mxu0 0.0
    %2647 = vmatmul.mubr.f32.gmra.mxu0 %v2577
    %v2648 = vpop.f32.mrf.mxu0
    %v2649 = vadd.f32 %v307, %v2648
    %v2650 = vpop.f32.mrf.mxu0
    %2651 = vdwg.mxu0
    %v2653 = vsel %vm578, %v2399, 0
    %v2656 = vsel %vm578, %v2485, 0
    %2658 = vmatprep.subr.mxu0 0.0
    %2659 = vmatpush1.xpose.msra.mxu0 0.0
    %2660 = vmatprep.subr.mxu0 0.0
    %2661 = vmatpush1.xpose.msra.mxu0 0.0
    %2662 = vmatprep.subr.mxu0 0.0
    %2663 = vmatpush1.xpose.msra.mxu0 0.0
    %2664 = vmatprep.subr.mxu0 0.0
    %2665 = vmatpush1.xpose.msra.mxu0 0.0
    %2666 = vmatprep.subr.mxu0 0.0
    %2667 = vmatpush1.xpose.msra.mxu0 0.0
    %2668 = vmatprep.subr.mxu0 0.0
    %2669 = vmatpush1.xpose.msra.mxu0 0.0
    %2670 = vmatprep.subr.mxu0 0.0
    %2671 = vmatpush1.xpose.msra.mxu0 0.0
    %2672 = vmatprep.subr.mxu0 0.0
    %2673 = vmatpush1.xpose.msra.mxu0 0.0
    %2674 = vmatprep.subr.mxu0 0.0
    %2675 = vmatpush1.xpose.msra.mxu0 0.0
    %2676 = vmatprep.subr.mxu0 0.0
    %2677 = vmatpush1.xpose.msra.mxu0 0.0
    %2678 = vmatprep.subr.mxu0 0.0
    %2679 = vmatpush1.xpose.msra.mxu0 0.0
    %2680 = vmatprep.subr.mxu0 0.0
    %2681 = vmatpush1.xpose.msra.mxu0 0.0
    %2682 = vmatprep.subr.mxu0 0.0
    %2683 = vmatpush1.xpose.msra.mxu0 0.0
    %2684 = vmatprep.subr.mxu0 0.0
    %2685 = vmatpush1.xpose.msra.mxu0 0.0
    %2686 = vmatprep.subr.mxu0 0.0
    %2687 = vmatpush1.xpose.msra.mxu0 0.0
    %2688 = vmatprep.subr.mxu0 0.0
    %2689 = vmatpush1.xpose.msra.mxu0 %v2656
    %2690 = vmatprep.subr.mxu0 0.0
    %2691 = vmatpush2.xpose.msra.mxu0 0.0
    %2692 = vmatprep.subr.mxu0 0.0
    %2693 = vmatpush2.xpose.msra.mxu0 0.0
    %2694 = vmatprep.subr.mxu0 0.0
    %2695 = vmatpush2.xpose.msra.mxu0 0.0
    %2696 = vmatprep.subr.mxu0 0.0
    %2697 = vmatpush2.xpose.msra.mxu0 0.0
    %2698 = vmatprep.subr.mxu0 0.0
    %2699 = vmatpush2.xpose.msra.mxu0 0.0
    %2700 = vmatprep.subr.mxu0 0.0
    %2701 = vmatpush2.xpose.msra.mxu0 0.0
    %2702 = vmatprep.subr.mxu0 0.0
    %2703 = vmatpush2.xpose.msra.mxu0 0.0
    %2704 = vmatprep.subr.mxu0 0.0
    %2705 = vmatpush2.xpose.msra.mxu0 0.0
    %2706 = vmatprep.subr.mxu0 0.0
    %2707 = vmatpush2.xpose.msra.mxu0 0.0
    %2708 = vmatprep.subr.mxu0 0.0
    %2709 = vmatpush2.xpose.msra.mxu0 0.0
    %2710 = vmatprep.subr.mxu0 0.0
    %2711 = vmatpush2.xpose.msra.mxu0 0.0
    %2712 = vmatprep.subr.mxu0 0.0
    %2713 = vmatpush2.xpose.msra.mxu0 0.0
    %2714 = vmatprep.subr.mxu0 0.0
    %2715 = vmatpush2.xpose.msra.mxu0 0.0
    %2716 = vmatprep.subr.mxu0 0.0
    %2717 = vmatpush2.xpose.msra.mxu0 0.0
    %2718 = vmatprep.subr.mxu0 0.0
    %2719 = vmatpush2.xpose.msra.mxu0 0.0
    %2720 = vmatprep.subr.mxu0 0.0
    %2721 = vmatpush2.xpose.msra.mxu0 0.0
    %2722 = vmatprep.mubr.f32.mxu0 0.0
    %2723 = vmatmul.mubr.f32.gmra.mxu0 %v2653
    %v2724 = vpop.f32.mrf.mxu0
    %v2725 = vadd.f32 %v308, %v2724
    %v2726 = vpop.f32.mrf.mxu0
    %2727 = vdwg.mxu0
    %v2728 = vsel %vm578, %v2649, -inf
    %2729 = vmax.xlane.f32.xlu0 %v2728
    %v2730 = vpop.xlane.xlu0 %2729
    %v2731 = vsel %vm578, %v2725, -inf
    %2732 = vmax.xlane.f32.xlu0 %v2731
    %v2733 = vpop.xlane.xlu0 %2732
    %v2734 = vsub.f32 %v2649, %v2730
    %v2735 = vsub.f32 %v2725, %v2733
    %v2736 = vmul.f32 %v2734, 1.442695
    %v2737 = vpow.pop %v2736
    %v2738 = vmul.f32 %v2735, 1.442695
    %v2739 = vpow.pop %v2738
    %v2740 = vsel %vm578, %v2737, 0.0
    %2741 = vadd.xlane.f32.xlu0 %v2740
    %v2742 = vpop.xlane.xlu0 %2741
    %v2743 = vsel %vm578, %v2739, 0.0
    %2744 = vadd.xlane.f32.xlu0 %v2743
    %v2745 = vpop.xlane.xlu0 %2744
    %v2746 = vrcp.pop %v2742
    %v2747 = vrcp.pop %v2745
    %v2748 = vmul.f32 %v2737, %v2746
    %v2749 = vmul.f32 %v2739, %v2747
    %v2751 = vsel %vm578, %v2748, 0
    %2753 = vmatprep.subr.mxu0 0.0
    %2754 = vmatpush1.msra.mxu0 0.0
    %2755 = vmatprep.subr.mxu0 0.0
    %2756 = vmatpush1.msra.mxu0 0.0
    %2757 = vmatprep.subr.mxu0 0.0
    %2758 = vmatpush1.msra.mxu0 0.0
    %2759 = vmatprep.subr.mxu0 0.0
    %2760 = vmatpush1.msra.mxu0 0.0
    %2761 = vmatprep.subr.mxu0 0.0
    %2762 = vmatpush1.msra.mxu0 0.0
    %2763 = vmatprep.subr.mxu0 0.0
    %2764 = vmatpush1.msra.mxu0 0.0
    %2765 = vmatprep.subr.mxu0 0.0
    %2766 = vmatpush1.msra.mxu0 0.0
    %2767 = vmatprep.subr.mxu0 0.0
    %2768 = vmatpush1.msra.mxu0 0.0
    %2769 = vmatprep.subr.mxu0 0.0
    %2770 = vmatpush1.msra.mxu0 0.0
    %2771 = vmatprep.subr.mxu0 0.0
    %2772 = vmatpush1.msra.mxu0 0.0
    %2773 = vmatprep.subr.mxu0 0.0
    %2774 = vmatpush1.msra.mxu0 0.0
    %2775 = vmatprep.subr.mxu0 0.0
    %2776 = vmatpush1.msra.mxu0 0.0
    %2777 = vmatprep.subr.mxu0 0.0
    %2778 = vmatpush1.msra.mxu0 0.0
    %2779 = vmatprep.subr.mxu0 0.0
    %2780 = vmatpush1.msra.mxu0 0.0
    %2781 = vmatprep.subr.mxu0 0.0
    %2782 = vmatpush1.msra.mxu0 0.0
    %2783 = vmatprep.subr.mxu0 0.0
    %2784 = vmatpush1.msra.mxu0 %v2568
    %2785 = vmatprep.subr.mxu0 0.0
    %2786 = vmatpush2.msra.mxu0 0.0
    %2787 = vmatprep.subr.mxu0 0.0
    %2788 = vmatpush2.msra.mxu0 0.0
    %2789 = vmatprep.subr.mxu0 0.0
    %2790 = vmatpush2.msra.mxu0 0.0
    %2791 = vmatprep.subr.mxu0 0.0
    %2792 = vmatpush2.msra.mxu0 0.0
    %2793 = vmatprep.subr.mxu0 0.0
    %2794 = vmatpush2.msra.mxu0 0.0
    %2795 = vmatprep.subr.mxu0 0.0
    %2796 = vmatpush2.msra.mxu0 0.0
    %2797 = vmatprep.subr.mxu0 0.0
    %2798 = vmatpush2.msra.mxu0 0.0
    %2799 = vmatprep.subr.mxu0 0.0
    %2800 = vmatpush2.msra.mxu0 0.0
    %2801 = vmatprep.subr.mxu0 0.0
    %2802 = vmatpush2.msra.mxu0 0.0
    %2803 = vmatprep.subr.mxu0 0.0
    %2804 = vmatpush2.msra.mxu0 0.0
    %2805 = vmatprep.subr.mxu0 0.0
    %2806 = vmatpush2.msra.mxu0 0.0
    %2807 = vmatprep.subr.mxu0 0.0
    %2808 = vmatpush2.msra.mxu0 0.0
    %2809 = vmatprep.subr.mxu0 0.0
    %2810 = vmatpush2.msra.mxu0 0.0
    %2811 = vmatprep.subr.mxu0 0.0
    %2812 = vmatpush2.msra.mxu0 0.0
    %2813 = vmatprep.subr.mxu0 0.0
    %2814 = vmatpush2.msra.mxu0 0.0
    %2815 = vmatprep.subr.mxu0 0.0
    %2816 = vmatpush2.msra.mxu0 0.0
    %2817 = vmatprep.mubr.f32.mxu0 0.0
    %2818 = vmatmul.mubr.f32.gmra.mxu0 %v2751
    %v2819 = vpop.f32.mrf.mxu0
    %v2820 = vadd.f32 0.0, %v2819
    %v2821 = vpop.f32.mrf.mxu0
    %2822 = vdwg.mxu0
    %v2824 = vsel %vm578, %v2749, 0
    %2826 = vmatprep.subr.mxu0 0.0
    %2827 = vmatpush1.msra.mxu0 0.0
    %2828 = vmatprep.subr.mxu0 0.0
    %2829 = vmatpush1.msra.mxu0 0.0
    %2830 = vmatprep.subr.mxu0 0.0
    %2831 = vmatpush1.msra.mxu0 0.0
    %2832 = vmatprep.subr.mxu0 0.0
    %2833 = vmatpush1.msra.mxu0 0.0
    %2834 = vmatprep.subr.mxu0 0.0
    %2835 = vmatpush1.msra.mxu0 0.0
    %2836 = vmatprep.subr.mxu0 0.0
    %2837 = vmatpush1.msra.mxu0 0.0
    %2838 = vmatprep.subr.mxu0 0.0
    %2839 = vmatpush1.msra.mxu0 0.0
    %2840 = vmatprep.subr.mxu0 0.0
    %2841 = vmatpush1.msra.mxu0 0.0
    %2842 = vmatprep.subr.mxu0 0.0
    %2843 = vmatpush1.msra.mxu0 0.0
    %2844 = vmatprep.subr.mxu0 0.0
    %2845 = vmatpush1.msra.mxu0 0.0
    %2846 = vmatprep.subr.mxu0 0.0
    %2847 = vmatpush1.msra.mxu0 0.0
    %2848 = vmatprep.subr.mxu0 0.0
    %2849 = vmatpush1.msra.mxu0 0.0
    %2850 = vmatprep.subr.mxu0 0.0
    %2851 = vmatpush1.msra.mxu0 0.0
    %2852 = vmatprep.subr.mxu0 0.0
    %2853 = vmatpush1.msra.mxu0 0.0
    %2854 = vmatprep.subr.mxu0 0.0
    %2855 = vmatpush1.msra.mxu0 0.0
    %2856 = vmatprep.subr.mxu0 0.0
    %2857 = vmatpush1.msra.mxu0 %v2573
    %2858 = vmatprep.subr.mxu0 0.0
    %2859 = vmatpush2.msra.mxu0 0.0
    %2860 = vmatprep.subr.mxu0 0.0
    %2861 = vmatpush2.msra.mxu0 0.0
    %2862 = vmatprep.subr.mxu0 0.0
    %2863 = vmatpush2.msra.mxu0 0.0
    %2864 = vmatprep.subr.mxu0 0.0
    %2865 = vmatpush2.msra.mxu0 0.0
    %2866 = vmatprep.subr.mxu0 0.0
    %2867 = vmatpush2.msra.mxu0 0.0
    %2868 = vmatprep.subr.mxu0 0.0
    %2869 = vmatpush2.msra.mxu0 0.0
    %2870 = vmatprep.subr.mxu0 0.0
    %2871 = vmatpush2.msra.mxu0 0.0
    %2872 = vmatprep.subr.mxu0 0.0
    %2873 = vmatpush2.msra.mxu0 0.0
    %2874 = vmatprep.subr.mxu0 0.0
    %2875 = vmatpush2.msra.mxu0 0.0
    %2876 = vmatprep.subr.mxu0 0.0
    %2877 = vmatpush2.msra.mxu0 0.0
    %2878 = vmatprep.subr.mxu0 0.0
    %2879 = vmatpush2.msra.mxu0 0.0
    %2880 = vmatprep.subr.mxu0 0.0
    %2881 = vmatpush2.msra.mxu0 0.0
    %2882 = vmatprep.subr.mxu0 0.0
    %2883 = vmatpush2.msra.mxu0 0.0
    %2884 = vmatprep.subr.mxu0 0.0
    %2885 = vmatpush2.msra.mxu0 0.0
    %2886 = vmatprep.subr.mxu0 0.0
    %2887 = vmatpush2.msra.mxu0 0.0
    %2888 = vmatprep.subr.mxu0 0.0
    %2889 = vmatpush2.msra.mxu0 0.0
    %2890 = vmatprep.mubr.f32.mxu0 0.0
    %2891 = vmatmul.mubr.f32.gmra.mxu0 %v2824
    %v2892 = vpop.f32.mrf.mxu0
    %v2893 = vadd.f32 0.0, %v2892
    %v2894 = vpop.f32.mrf.mxu0
    %2895 = vdwg.mxu0
    %2896 = vst.msk [vmem:[#allocation2] sm:$0xff] %vm578, %v2820
    %2897 = vst.msk [vmem:[#allocation2 + $0x8] sm:$0xff] %vm578, %v2893
    %2898 = vrot.lane.b32.xlu0 %v2398, 120
    %v2899 = vpop.permute.xlu0 %2898
    %2900 = vrot.lane.b32.xlu0 %v2480, 120
    %v2901 = vpop.permute.xlu0 %2900
    %v2902 = vsel %vm578, %v2899, 0
    %v2904 = vsel %vm578, %v2901, 0
    %2906 = vmatprep.subr.mxu0 0.0
    %2907 = vmatpush1.xpose.msra.mxu0 0.0
    %2908 = vmatprep.subr.mxu0 0.0
    %2909 = vmatpush1.xpose.msra.mxu0 0.0
    %2910 = vmatprep.subr.mxu0 0.0
    %2911 = vmatpush1.xpose.msra.mxu0 0.0
    %2912 = vmatprep.subr.mxu0 0.0
    %2913 = vmatpush1.xpose.msra.mxu0 0.0
    %2914 = vmatprep.subr.mxu0 0.0
    %2915 = vmatpush1.xpose.msra.mxu0 0.0
    %2916 = vmatprep.subr.mxu0 0.0
    %2917 = vmatpush1.xpose.msra.mxu0 0.0
    %2918 = vmatprep.subr.mxu0 0.0
    %2919 = vmatpush1.xpose.msra.mxu0 0.0
    %2920 = vmatprep.subr.mxu0 0.0
    %2921 = vmatpush1.xpose.msra.mxu0 0.0
    %2922 = vmatprep.subr.mxu0 0.0
    %2923 = vmatpush1.xpose.msra.mxu0 0.0
    %2924 = vmatprep.subr.mxu0 0.0
    %2925 = vmatpush1.xpose.msra.mxu0 0.0
    %2926 = vmatprep.subr.mxu0 0.0
    %2927 = vmatpush1.xpose.msra.mxu0 0.0
    %2928 = vmatprep.subr.mxu0 0.0
    %2929 = vmatpush1.xpose.msra.mxu0 0.0
    %2930 = vmatprep.subr.mxu0 0.0
    %2931 = vmatpush1.xpose.msra.mxu0 0.0
    %2932 = vmatprep.subr.mxu0 0.0
    %2933 = vmatpush1.xpose.msra.mxu0 0.0
    %2934 = vmatprep.subr.mxu0 0.0
    %2935 = vmatpush1.xpose.msra.mxu0 0.0
    %2936 = vmatprep.subr.mxu0 0.0
    %2937 = vmatpush1.xpose.msra.mxu0 %v2904
    %2938 = vmatprep.subr.mxu0 0.0
    %2939 = vmatpush2.xpose.msra.mxu0 0.0
    %2940 = vmatprep.subr.mxu0 0.0
    %2941 = vmatpush2.xpose.msra.mxu0 0.0
    %2942 = vmatprep.subr.mxu0 0.0
    %2943 = vmatpush2.xpose.msra.mxu0 0.0
    %2944 = vmatprep.subr.mxu0 0.0
    %2945 = vmatpush2.xpose.msra.mxu0 0.0
    %2946 = vmatprep.subr.mxu0 0.0
    %2947 = vmatpush2.xpose.msra.mxu0 0.0
    %2948 = vmatprep.subr.mxu0 0.0
    %2949 = vmatpush2.xpose.msra.mxu0 0.0
    %2950 = vmatprep.subr.mxu0 0.0
    %2951 = vmatpush2.xpose.msra.mxu0 0.0
    %2952 = vmatprep.subr.mxu0 0.0
    %2953 = vmatpush2.xpose.msra.mxu0 0.0
    %2954 = vmatprep.subr.mxu0 0.0
    %2955 = vmatpush2.xpose.msra.mxu0 0.0
    %2956 = vmatprep.subr.mxu0 0.0
    %2957 = vmatpush2.xpose.msra.mxu0 0.0
    %2958 = vmatprep.subr.mxu0 0.0
    %2959 = vmatpush2.xpose.msra.mxu0 0.0
    %2960 = vmatprep.subr.mxu0 0.0
    %2961 = vmatpush2.xpose.msra.mxu0 0.0
    %2962 = vmatprep.subr.mxu0 0.0
    %2963 = vmatpush2.xpose.msra.mxu0 0.0
    %2964 = vmatprep.subr.mxu0 0.0
    %2965 = vmatpush2.xpose.msra.mxu0 0.0
    %2966 = vmatprep.subr.mxu0 0.0
    %2967 = vmatpush2.xpose.msra.mxu0 0.0
    %2968 = vmatprep.subr.mxu0 0.0
    %2969 = vmatpush2.xpose.msra.mxu0 0.0
    %2970 = vmatprep.mubr.f32.mxu0 0.0
    %2971 = vmatmul.mubr.f32.gmra.mxu0 %v2902
    %v2972 = vpop.f32.mrf.mxu0
    %v2973 = vadd.f32 %v307, %v2972
    %v2974 = vpop.f32.mrf.mxu0
    %2975 = vdwg.mxu0
    %2976 = vrot.lane.b32.xlu0 %v2399, 120
    %v2977 = vpop.permute.xlu0 %2976
    %2978 = vrot.lane.b32.xlu0 %v2485, 120
    %v2979 = vpop.permute.xlu0 %2978
    %v2980 = vsel %vm578, %v2977, 0
    %v2982 = vsel %vm578, %v2979, 0
    %2984 = vmatprep.subr.mxu0 0.0
    %2985 = vmatpush1.xpose.msra.mxu0 0.0
    %2986 = vmatprep.subr.mxu0 0.0
    %2987 = vmatpush1.xpose.msra.mxu0 0.0
    %2988 = vmatprep.subr.mxu0 0.0
    %2989 = vmatpush1.xpose.msra.mxu0 0.0
    %2990 = vmatprep.subr.mxu0 0.0
    %2991 = vmatpush1.xpose.msra.mxu0 0.0
    %2992 = vmatprep.subr.mxu0 0.0
    %2993 = vmatpush1.xpose.msra.mxu0 0.0
    %2994 = vmatprep.subr.mxu0 0.0
    %2995 = vmatpush1.xpose.msra.mxu0 0.0
    %2996 = vmatprep.subr.mxu0 0.0
    %2997 = vmatpush1.xpose.msra.mxu0 0.0
    %2998 = vmatprep.subr.mxu0 0.0
    %2999 = vmatpush1.xpose.msra.mxu0 0.0
    %3000 = vmatprep.subr.mxu0 0.0
    %3001 = vmatpush1.xpose.msra.mxu0 0.0
    %3002 = vmatprep.subr.mxu0 0.0
    %3003 = vmatpush1.xpose.msra.mxu0 0.0
    %3004 = vmatprep.subr.mxu0 0.0
    %3005 = vmatpush1.xpose.msra.mxu0 0.0
    %3006 = vmatprep.subr.mxu0 0.0
    %3007 = vmatpush1.xpose.msra.mxu0 0.0
    %3008 = vmatprep.subr.mxu0 0.0
    %3009 = vmatpush1.xpose.msra.mxu0 0.0
    %3010 = vmatprep.subr.mxu0 0.0
    %3011 = vmatpush1.xpose.msra.mxu0 0.0
    %3012 = vmatprep.subr.mxu0 0.0
    %3013 = vmatpush1.xpose.msra.mxu0 0.0
    %3014 = vmatprep.subr.mxu0 0.0
    %3015 = vmatpush1.xpose.msra.mxu0 %v2982
    %3016 = vmatprep.subr.mxu0 0.0
    %3017 = vmatpush2.xpose.msra.mxu0 0.0
    %3018 = vmatprep.subr.mxu0 0.0
    %3019 = vmatpush2.xpose.msra.mxu0 0.0
    %3020 = vmatprep.subr.mxu0 0.0
    %3021 = vmatpush2.xpose.msra.mxu0 0.0
    %3022 = vmatprep.subr.mxu0 0.0
    %3023 = vmatpush2.xpose.msra.mxu0 0.0
    %3024 = vmatprep.subr.mxu0 0.0
    %3025 = vmatpush2.xpose.msra.mxu0 0.0
    %3026 = vmatprep.subr.mxu0 0.0
    %3027 = vmatpush2.xpose.msra.mxu0 0.0
    %3028 = vmatprep.subr.mxu0 0.0
    %3029 = vmatpush2.xpose.msra.mxu0 0.0
    %3030 = vmatprep.subr.mxu0 0.0
    %3031 = vmatpush2.xpose.msra.mxu0 0.0
    %3032 = vmatprep.subr.mxu0 0.0
    %3033 = vmatpush2.xpose.msra.mxu0 0.0
    %3034 = vmatprep.subr.mxu0 0.0
    %3035 = vmatpush2.xpose.msra.mxu0 0.0
    %3036 = vmatprep.subr.mxu0 0.0
    %3037 = vmatpush2.xpose.msra.mxu0 0.0
    %3038 = vmatprep.subr.mxu0 0.0
    %3039 = vmatpush2.xpose.msra.mxu0 0.0
    %3040 = vmatprep.subr.mxu0 0.0
    %3041 = vmatpush2.xpose.msra.mxu0 0.0
    %3042 = vmatprep.subr.mxu0 0.0
    %3043 = vmatpush2.xpose.msra.mxu0 0.0
    %3044 = vmatprep.subr.mxu0 0.0
    %3045 = vmatpush2.xpose.msra.mxu0 0.0
    %3046 = vmatprep.subr.mxu0 0.0
    %3047 = vmatpush2.xpose.msra.mxu0 0.0
    %3048 = vmatprep.mubr.f32.mxu0 0.0
    %3049 = vmatmul.mubr.f32.gmra.mxu0 %v2980
    %v3050 = vpop.f32.mrf.mxu0
    %v3051 = vadd.f32 %v308, %v3050
    %v3052 = vpop.f32.mrf.mxu0
    %3053 = vdwg.mxu0
    %v3054 = vsel %vm578, %v2973, -inf
    %3055 = vmax.xlane.f32.xlu0 %v3054
    %v3056 = vpop.xlane.xlu0 %3055
    %v3057 = vsel %vm578, %v3051, -inf
    %3058 = vmax.xlane.f32.xlu0 %v3057
    %v3059 = vpop.xlane.xlu0 %3058
    %v3060 = vsub.f32 %v2973, %v3056
    %v3061 = vsub.f32 %v3051, %v3059
    %v3062 = vmul.f32 %v3060, 1.442695
    %v3063 = vpow.pop %v3062
    %v3064 = vmul.f32 %v3061, 1.442695
    %v3065 = vpow.pop %v3064
    %v3066 = vsel %vm578, %v3063, 0.0
    %3067 = vadd.xlane.f32.xlu0 %v3066
    %v3068 = vpop.xlane.xlu0 %3067
    %v3069 = vsel %vm578, %v3065, 0.0
    %3070 = vadd.xlane.f32.xlu0 %v3069
    %v3071 = vpop.xlane.xlu0 %3070
    %v3072 = vrcp.pop %v3068
    %v3073 = vrcp.pop %v3071
    %v3074 = vmul.f32 %v3063, %v3072
    %v3075 = vmul.f32 %v3065, %v3073
    %3077 = vrot.lane.b32.xlu0 %v2568, 120
    %v3078 = vpop.permute.xlu0 %3077
    %v3081 = vsel %vm578, %v3074, 0
    %3083 = vmatprep.subr.mxu0 0.0
    %3084 = vmatpush1.msra.mxu0 0.0
    %3085 = vmatprep.subr.mxu0 0.0
    %3086 = vmatpush1.msra.mxu0 0.0
    %3087 = vmatprep.subr.mxu0 0.0
    %3088 = vmatpush1.msra.mxu0 0.0
    %3089 = vmatprep.subr.mxu0 0.0
    %3090 = vmatpush1.msra.mxu0 0.0
    %3091 = vmatprep.subr.mxu0 0.0
    %3092 = vmatpush1.msra.mxu0 0.0
    %3093 = vmatprep.subr.mxu0 0.0
    %3094 = vmatpush1.msra.mxu0 0.0
    %3095 = vmatprep.subr.mxu0 0.0
    %3096 = vmatpush1.msra.mxu0 0.0
    %3097 = vmatprep.subr.mxu0 0.0
    %3098 = vmatpush1.msra.mxu0 0.0
    %3099 = vmatprep.subr.mxu0 0.0
    %3100 = vmatpush1.msra.mxu0 0.0
    %3101 = vmatprep.subr.mxu0 0.0
    %3102 = vmatpush1.msra.mxu0 0.0
    %3103 = vmatprep.subr.mxu0 0.0
    %3104 = vmatpush1.msra.mxu0 0.0
    %3105 = vmatprep.subr.mxu0 0.0
    %3106 = vmatpush1.msra.mxu0 0.0
    %3107 = vmatprep.subr.mxu0 0.0
    %3108 = vmatpush1.msra.mxu0 0.0
    %3109 = vmatprep.subr.mxu0 0.0
    %3110 = vmatpush1.msra.mxu0 0.0
    %3111 = vmatprep.subr.mxu0 0.0
    %3112 = vmatpush1.msra.mxu0 0.0
    %3113 = vmatprep.subr.mxu0 0.0
    %3114 = vmatpush1.msra.mxu0 %v3078
    %3115 = vmatprep.subr.mxu0 0.0
    %3116 = vmatpush2.msra.mxu0 0.0
    %3117 = vmatprep.subr.mxu0 0.0
    %3118 = vmatpush2.msra.mxu0 0.0
    %3119 = vmatprep.subr.mxu0 0.0
    %3120 = vmatpush2.msra.mxu0 0.0
    %3121 = vmatprep.subr.mxu0 0.0
    %3122 = vmatpush2.msra.mxu0 0.0
    %3123 = vmatprep.subr.mxu0 0.0
    %3124 = vmatpush2.msra.mxu0 0.0
    %3125 = vmatprep.subr.mxu0 0.0
    %3126 = vmatpush2.msra.mxu0 0.0
    %3127 = vmatprep.subr.mxu0 0.0
    %3128 = vmatpush2.msra.mxu0 0.0
    %3129 = vmatprep.subr.mxu0 0.0
    %3130 = vmatpush2.msra.mxu0 0.0
    %3131 = vmatprep.subr.mxu0 0.0
    %3132 = vmatpush2.msra.mxu0 0.0
    %3133 = vmatprep.subr.mxu0 0.0
    %3134 = vmatpush2.msra.mxu0 0.0
    %3135 = vmatprep.subr.mxu0 0.0
    %3136 = vmatpush2.msra.mxu0 0.0
    %3137 = vmatprep.subr.mxu0 0.0
    %3138 = vmatpush2.msra.mxu0 0.0
    %3139 = vmatprep.subr.mxu0 0.0
    %3140 = vmatpush2.msra.mxu0 0.0
    %3141 = vmatprep.subr.mxu0 0.0
    %3142 = vmatpush2.msra.mxu0 0.0
    %3143 = vmatprep.subr.mxu0 0.0
    %3144 = vmatpush2.msra.mxu0 0.0
    %3145 = vmatprep.subr.mxu0 0.0
    %3146 = vmatpush2.msra.mxu0 0.0
    %3147 = vmatprep.mubr.f32.mxu0 0.0
    %3148 = vmatmul.mubr.f32.gmra.mxu0 %v3081
    %v3149 = vpop.f32.mrf.mxu0
    %v3150 = vadd.f32 0.0, %v3149
    %v3151 = vpop.f32.mrf.mxu0
    %3152 = vdwg.mxu0
    %3154 = vrot.lane.b32.xlu0 %v2573, 120
    %v3155 = vpop.permute.xlu0 %3154
    %v3158 = vsel %vm578, %v3075, 0
    %3160 = vmatprep.subr.mxu0 0.0
    %3161 = vmatpush1.msra.mxu0 0.0
    %3162 = vmatprep.subr.mxu0 0.0
    %3163 = vmatpush1.msra.mxu0 0.0
    %3164 = vmatprep.subr.mxu0 0.0
    %3165 = vmatpush1.msra.mxu0 0.0
    %3166 = vmatprep.subr.mxu0 0.0
    %3167 = vmatpush1.msra.mxu0 0.0
    %3168 = vmatprep.subr.mxu0 0.0
    %3169 = vmatpush1.msra.mxu0 0.0
    %3170 = vmatprep.subr.mxu0 0.0
    %3171 = vmatpush1.msra.mxu0 0.0
    %3172 = vmatprep.subr.mxu0 0.0
    %3173 = vmatpush1.msra.mxu0 0.0
    %3174 = vmatprep.subr.mxu0 0.0
    %3175 = vmatpush1.msra.mxu0 0.0
    %3176 = vmatprep.subr.mxu0 0.0
    %3177 = vmatpush1.msra.mxu0 0.0
    %3178 = vmatprep.subr.mxu0 0.0
    %3179 = vmatpush1.msra.mxu0 0.0
    %3180 = vmatprep.subr.mxu0 0.0
    %3181 = vmatpush1.msra.mxu0 0.0
    %3182 = vmatprep.subr.mxu0 0.0
    %3183 = vmatpush1.msra.mxu0 0.0
    %3184 = vmatprep.subr.mxu0 0.0
    %3185 = vmatpush1.msra.mxu0 0.0
    %3186 = vmatprep.subr.mxu0 0.0
    %3187 = vmatpush1.msra.mxu0 0.0
    %3188 = vmatprep.subr.mxu0 0.0
    %3189 = vmatpush1.msra.mxu0 0.0
    %3190 = vmatprep.subr.mxu0 0.0
    %3191 = vmatpush1.msra.mxu0 %v3155
    %3192 = vmatprep.subr.mxu0 0.0
    %3193 = vmatpush2.msra.mxu0 0.0
    %3194 = vmatprep.subr.mxu0 0.0
    %3195 = vmatpush2.msra.mxu0 0.0
    %3196 = vmatprep.subr.mxu0 0.0
    %3197 = vmatpush2.msra.mxu0 0.0
    %3198 = vmatprep.subr.mxu0 0.0
    %3199 = vmatpush2.msra.mxu0 0.0
    %3200 = vmatprep.subr.mxu0 0.0
    %3201 = vmatpush2.msra.mxu0 0.0
    %3202 = vmatprep.subr.mxu0 0.0
    %3203 = vmatpush2.msra.mxu0 0.0
    %3204 = vmatprep.subr.mxu0 0.0
    %3205 = vmatpush2.msra.mxu0 0.0
    %3206 = vmatprep.subr.mxu0 0.0
    %3207 = vmatpush2.msra.mxu0 0.0
    %3208 = vmatprep.subr.mxu0 0.0
    %3209 = vmatpush2.msra.mxu0 0.0
    %3210 = vmatprep.subr.mxu0 0.0
    %3211 = vmatpush2.msra.mxu0 0.0
    %3212 = vmatprep.subr.mxu0 0.0
    %3213 = vmatpush2.msra.mxu0 0.0
    %3214 = vmatprep.subr.mxu0 0.0
    %3215 = vmatpush2.msra.mxu0 0.0
    %3216 = vmatprep.subr.mxu0 0.0
    %3217 = vmatpush2.msra.mxu0 0.0
    %3218 = vmatprep.subr.mxu0 0.0
    %3219 = vmatpush2.msra.mxu0 0.0
    %3220 = vmatprep.subr.mxu0 0.0
    %3221 = vmatpush2.msra.mxu0 0.0
    %3222 = vmatprep.subr.mxu0 0.0
    %3223 = vmatpush2.msra.mxu0 0.0
    %3224 = vmatprep.mubr.f32.mxu0 0.0
    %3225 = vmatmul.mubr.f32.gmra.mxu0 %v3158
    %v3226 = vpop.f32.mrf.mxu0
    %v3227 = vadd.f32 0.0, %v3226
    %v3228 = vpop.f32.mrf.mxu0
    %3229 = vdwg.mxu0
    %3232 = vrot.lane.b32.xlu0 %v3150, 8
    %v3233 = vpop.permute.xlu0 %3232
    %3234 = vrot.lane.b32.xlu0 %v3227, 8
    %v3235 = vpop.permute.xlu0 %3234
    %3238 = vst.msk [vmem:[#allocation2] sm:$0xff] %vm1241, %v3233
    %3239 = vst.msk [vmem:[#allocation2 + $0x8] sm:$0xff] %vm1241, %v3235
    %3240 = vrot.lane.b32.xlu0 %v2398, 112
    %v3241 = vpop.permute.xlu0 %3240
    %3242 = vrot.lane.b32.xlu0 %v2480, 112
    %v3243 = vpop.permute.xlu0 %3242
    %v3244 = vsel %vm578, %v3241, 0
    %v3246 = vsel %vm578, %v3243, 0
    %3248 = vmatprep.subr.mxu0 0.0
    %3249 = vmatpush1.xpose.msra.mxu0 0.0
    %3250 = vmatprep.subr.mxu0 0.0
    %3251 = vmatpush1.xpose.msra.mxu0 0.0
    %3252 = vmatprep.subr.mxu0 0.0
    %3253 = vmatpush1.xpose.msra.mxu0 0.0
    %3254 = vmatprep.subr.mxu0 0.0
    %3255 = vmatpush1.xpose.msra.mxu0 0.0
    %3256 = vmatprep.subr.mxu0 0.0
    %3257 = vmatpush1.xpose.msra.mxu0 0.0
    %3258 = vmatprep.subr.mxu0 0.0
    %3259 = vmatpush1.xpose.msra.mxu0 0.0
    %3260 = vmatprep.subr.mxu0 0.0
    %3261 = vmatpush1.xpose.msra.mxu0 0.0
    %3262 = vmatprep.subr.mxu0 0.0
    %3263 = vmatpush1.xpose.msra.mxu0 0.0
    %3264 = vmatprep.subr.mxu0 0.0
    %3265 = vmatpush1.xpose.msra.mxu0 0.0
    %3266 = vmatprep.subr.mxu0 0.0
    %3267 = vmatpush1.xpose.msra.mxu0 0.0
    %3268 = vmatprep.subr.mxu0 0.0
    %3269 = vmatpush1.xpose.msra.mxu0 0.0
    %3270 = vmatprep.subr.mxu0 0.0
    %3271 = vmatpush1.xpose.msra.mxu0 0.0
    %3272 = vmatprep.subr.mxu0 0.0
    %3273 = vmatpush1.xpose.msra.mxu0 0.0
    %3274 = vmatprep.subr.mxu0 0.0
    %3275 = vmatpush1.xpose.msra.mxu0 0.0
    %3276 = vmatprep.subr.mxu0 0.0
    %3277 = vmatpush1.xpose.msra.mxu0 0.0
    %3278 = vmatprep.subr.mxu0 0.0
    %3279 = vmatpush1.xpose.msra.mxu0 %v3246
    %3280 = vmatprep.subr.mxu0 0.0
    %3281 = vmatpush2.xpose.msra.mxu0 0.0
    %3282 = vmatprep.subr.mxu0 0.0
    %3283 = vmatpush2.xpose.msra.mxu0 0.0
    %3284 = vmatprep.subr.mxu0 0.0
    %3285 = vmatpush2.xpose.msra.mxu0 0.0
    %3286 = vmatprep.subr.mxu0 0.0
    %3287 = vmatpush2.xpose.msra.mxu0 0.0
    %3288 = vmatprep.subr.mxu0 0.0
    %3289 = vmatpush2.xpose.msra.mxu0 0.0
    %3290 = vmatprep.subr.mxu0 0.0
    %3291 = vmatpush2.xpose.msra.mxu0 0.0
    %3292 = vmatprep.subr.mxu0 0.0
    %3293 = vmatpush2.xpose.msra.mxu0 0.0
    %3294 = vmatprep.subr.mxu0 0.0
    %3295 = vmatpush2.xpose.msra.mxu0 0.0
    %3296 = vmatprep.subr.mxu0 0.0
    %3297 = vmatpush2.xpose.msra.mxu0 0.0
    %3298 = vmatprep.subr.mxu0 0.0
    %3299 = vmatpush2.xpose.msra.mxu0 0.0
    %3300 = vmatprep.subr.mxu0 0.0
    %3301 = vmatpush2.xpose.msra.mxu0 0.0
    %3302 = vmatprep.subr.mxu0 0.0
    %3303 = vmatpush2.xpose.msra.mxu0 0.0
    %3304 = vmatprep.subr.mxu0 0.0
    %3305 = vmatpush2.xpose.msra.mxu0 0.0
    %3306 = vmatprep.subr.mxu0 0.0
    %3307 = vmatpush2.xpose.msra.mxu0 0.0
    %3308 = vmatprep.subr.mxu0 0.0
    %3309 = vmatpush2.xpose.msra.mxu0 0.0
    %3310 = vmatprep.subr.mxu0 0.0
    %3311 = vmatpush2.xpose.msra.mxu0 0.0
    %3312 = vmatprep.mubr.f32.mxu0 0.0
    %3313 = vmatmul.mubr.f32.gmra.mxu0 %v3244
    %v3314 = vpop.f32.mrf.mxu0
    %v3315 = vadd.f32 %v307, %v3314
    %v3316 = vpop.f32.mrf.mxu0
    %3317 = vdwg.mxu0
    %3318 = vrot.lane.b32.xlu0 %v2399, 112
    %v3319 = vpop.permute.xlu0 %3318
    %3320 = vrot.lane.b32.xlu0 %v2485, 112
    %v3321 = vpop.permute.xlu0 %3320
    %v3322 = vsel %vm578, %v3319, 0
    %v3324 = vsel %vm578, %v3321, 0
    %3326 = vmatprep.subr.mxu0 0.0
    %3327 = vmatpush1.xpose.msra.mxu0 0.0
    %3328 = vmatprep.subr.mxu0 0.0
    %3329 = vmatpush1.xpose.msra.mxu0 0.0
    %3330 = vmatprep.subr.mxu0 0.0
    %3331 = vmatpush1.xpose.msra.mxu0 0.0
    %3332 = vmatprep.subr.mxu0 0.0
    %3333 = vmatpush1.xpose.msra.mxu0 0.0
    %3334 = vmatprep.subr.mxu0 0.0
    %3335 = vmatpush1.xpose.msra.mxu0 0.0
    %3336 = vmatprep.subr.mxu0 0.0
    %3337 = vmatpush1.xpose.msra.mxu0 0.0
    %3338 = vmatprep.subr.mxu0 0.0
    %3339 = vmatpush1.xpose.msra.mxu0 0.0
    %3340 = vmatprep.subr.mxu0 0.0
    %3341 = vmatpush1.xpose.msra.mxu0 0.0
    %3342 = vmatprep.subr.mxu0 0.0
    %3343 = vmatpush1.xpose.msra.mxu0 0.0
    %3344 = vmatprep.subr.mxu0 0.0
    %3345 = vmatpush1.xpose.msra.mxu0 0.0
    %3346 = vmatprep.subr.mxu0 0.0
    %3347 = vmatpush1.xpose.msra.mxu0 0.0
    %3348 = vmatprep.subr.mxu0 0.0
    %3349 = vmatpush1.xpose.msra.mxu0 0.0
    %3350 = vmatprep.subr.mxu0 0.0
    %3351 = vmatpush1.xpose.msra.mxu0 0.0
    %3352 = vmatprep.subr.mxu0 0.0
    %3353 = vmatpush1.xpose.msra.mxu0 0.0
    %3354 = vmatprep.subr.mxu0 0.0
    %3355 = vmatpush1.xpose.msra.mxu0 0.0
    %3356 = vmatprep.subr.mxu0 0.0
    %3357 = vmatpush1.xpose.msra.mxu0 %v3324
    %3358 = vmatprep.subr.mxu0 0.0
    %3359 = vmatpush2.xpose.msra.mxu0 0.0
    %3360 = vmatprep.subr.mxu0 0.0
    %3361 = vmatpush2.xpose.msra.mxu0 0.0
    %3362 = vmatprep.subr.mxu0 0.0
    %3363 = vmatpush2.xpose.msra.mxu0 0.0
    %3364 = vmatprep.subr.mxu0 0.0
    %3365 = vmatpush2.xpose.msra.mxu0 0.0
    %3366 = vmatprep.subr.mxu0 0.0
    %3367 = vmatpush2.xpose.msra.mxu0 0.0
    %3368 = vmatprep.subr.mxu0 0.0
    %3369 = vmatpush2.xpose.msra.mxu0 0.0
    %3370 = vmatprep.subr.mxu0 0.0
    %3371 = vmatpush2.xpose.msra.mxu0 0.0
    %3372 = vmatprep.subr.mxu0 0.0
    %3373 = vmatpush2.xpose.msra.mxu0 0.0
    %3374 = vmatprep.subr.mxu0 0.0
    %3375 = vmatpush2.xpose.msra.mxu0 0.0
    %3376 = vmatprep.subr.mxu0 0.0
    %3377 = vmatpush2.xpose.msra.mxu0 0.0
    %3378 = vmatprep.subr.mxu0 0.0
    %3379 = vmatpush2.xpose.msra.mxu0 0.0
    %3380 = vmatprep.subr.mxu0 0.0
    %3381 = vmatpush2.xpose.msra.mxu0 0.0
    %3382 = vmatprep.subr.mxu0 0.0
    %3383 = vmatpush2.xpose.msra.mxu0 0.0
    %3384 = vmatprep.subr.mxu0 0.0
    %3385 = vmatpush2.xpose.msra.mxu0 0.0
    %3386 = vmatprep.subr.mxu0 0.0
    %3387 = vmatpush2.xpose.msra.mxu0 0.0
    %3388 = vmatprep.subr.mxu0 0.0
    %3389 = vmatpush2.xpose.msra.mxu0 0.0
    %3390 = vmatprep.mubr.f32.mxu0 0.0
    %3391 = vmatmul.mubr.f32.gmra.mxu0 %v3322
    %v3392 = vpop.f32.mrf.mxu0
    %v3393 = vadd.f32 %v308, %v3392
    %v3394 = vpop.f32.mrf.mxu0
    %3395 = vdwg.mxu0
    %v3396 = vsel %vm578, %v3315, -inf
    %3397 = vmax.xlane.f32.xlu0 %v3396
    %v3398 = vpop.xlane.xlu0 %3397
    %v3399 = vsel %vm578, %v3393, -inf
    %3400 = vmax.xlane.f32.xlu0 %v3399
    %v3401 = vpop.xlane.xlu0 %3400
    %v3402 = vsub.f32 %v3315, %v3398
    %v3403 = vsub.f32 %v3393, %v3401
    %v3404 = vmul.f32 %v3402, 1.442695
    %v3405 = vpow.pop %v3404
    %v3406 = vmul.f32 %v3403, 1.442695
    %v3407 = vpow.pop %v3406
    %v3408 = vsel %vm578, %v3405, 0.0
    %3409 = vadd.xlane.f32.xlu0 %v3408
    %v3410 = vpop.xlane.xlu0 %3409
    %v3411 = vsel %vm578, %v3407, 0.0
    %3412 = vadd.xlane.f32.xlu0 %v3411
    %v3413 = vpop.xlane.xlu0 %3412
    %v3414 = vrcp.pop %v3410
    %v3415 = vrcp.pop %v3413
    %v3416 = vmul.f32 %v3405, %v3414
    %v3417 = vmul.f32 %v3407, %v3415
    %3418 = vrot.lane.b32.xlu0 %v2568, 112
    %v3419 = vpop.permute.xlu0 %3418
    %v3422 = vsel %vm578, %v3416, 0
    %3424 = vmatprep.subr.mxu0 0.0
    %3425 = vmatpush1.msra.mxu0 0.0
    %3426 = vmatprep.subr.mxu0 0.0
    %3427 = vmatpush1.msra.mxu0 0.0
    %3428 = vmatprep.subr.mxu0 0.0
    %3429 = vmatpush1.msra.mxu0 0.0
    %3430 = vmatprep.subr.mxu0 0.0
    %3431 = vmatpush1.msra.mxu0 0.0
    %3432 = vmatprep.subr.mxu0 0.0
    %3433 = vmatpush1.msra.mxu0 0.0
    %3434 = vmatprep.subr.mxu0 0.0
    %3435 = vmatpush1.msra.mxu0 0.0
    %3436 = vmatprep.subr.mxu0 0.0
    %3437 = vmatpush1.msra.mxu0 0.0
    %3438 = vmatprep.subr.mxu0 0.0
    %3439 = vmatpush1.msra.mxu0 0.0
    %3440 = vmatprep.subr.mxu0 0.0
    %3441 = vmatpush1.msra.mxu0 0.0
    %3442 = vmatprep.subr.mxu0 0.0
    %3443 = vmatpush1.msra.mxu0 0.0
    %3444 = vmatprep.subr.mxu0 0.0
    %3445 = vmatpush1.msra.mxu0 0.0
    %3446 = vmatprep.subr.mxu0 0.0
    %3447 = vmatpush1.msra.mxu0 0.0
    %3448 = vmatprep.subr.mxu0 0.0
    %3449 = vmatpush1.msra.mxu0 0.0
    %3450 = vmatprep.subr.mxu0 0.0
    %3451 = vmatpush1.msra.mxu0 0.0
    %3452 = vmatprep.subr.mxu0 0.0
    %3453 = vmatpush1.msra.mxu0 0.0
    %3454 = vmatprep.subr.mxu0 0.0
    %3455 = vmatpush1.msra.mxu0 %v3419
    %3456 = vmatprep.subr.mxu0 0.0
    %3457 = vmatpush2.msra.mxu0 0.0
    %3458 = vmatprep.subr.mxu0 0.0
    %3459 = vmatpush2.msra.mxu0 0.0
    %3460 = vmatprep.subr.mxu0 0.0
    %3461 = vmatpush2.msra.mxu0 0.0
    %3462 = vmatprep.subr.mxu0 0.0
    %3463 = vmatpush2.msra.mxu0 0.0
    %3464 = vmatprep.subr.mxu0 0.0
    %3465 = vmatpush2.msra.mxu0 0.0
    %3466 = vmatprep.subr.mxu0 0.0
    %3467 = vmatpush2.msra.mxu0 0.0
    %3468 = vmatprep.subr.mxu0 0.0
    %3469 = vmatpush2.msra.mxu0 0.0
    %3470 = vmatprep.subr.mxu0 0.0
    %3471 = vmatpush2.msra.mxu0 0.0
    %3472 = vmatprep.subr.mxu0 0.0
    %3473 = vmatpush2.msra.mxu0 0.0
    %3474 = vmatprep.subr.mxu0 0.0
    %3475 = vmatpush2.msra.mxu0 0.0
    %3476 = vmatprep.subr.mxu0 0.0
    %3477 = vmatpush2.msra.mxu0 0.0
    %3478 = vmatprep.subr.mxu0 0.0
    %3479 = vmatpush2.msra.mxu0 0.0
    %3480 = vmatprep.subr.mxu0 0.0
    %3481 = vmatpush2.msra.mxu0 0.0
    %3482 = vmatprep.subr.mxu0 0.0
    %3483 = vmatpush2.msra.mxu0 0.0
    %3484 = vmatprep.subr.mxu0 0.0
    %3485 = vmatpush2.msra.mxu0 0.0
    %3486 = vmatprep.subr.mxu0 0.0
    %3487 = vmatpush2.msra.mxu0 0.0
    %3488 = vmatprep.mubr.f32.mxu0 0.0
    %3489 = vmatmul.mubr.f32.gmra.mxu0 %v3422
    %v3490 = vpop.f32.mrf.mxu0
    %v3491 = vadd.f32 0.0, %v3490
    %v3492 = vpop.f32.mrf.mxu0
    %3493 = vdwg.mxu0
    %3494 = vrot.lane.b32.xlu0 %v2573, 112
    %v3495 = vpop.permute.xlu0 %3494
    %v3498 = vsel %vm578, %v3417, 0
    %3500 = vmatprep.subr.mxu0 0.0
    %3501 = vmatpush1.msra.mxu0 0.0
    %3502 = vmatprep.subr.mxu0 0.0
    %3503 = vmatpush1.msra.mxu0 0.0
    %3504 = vmatprep.subr.mxu0 0.0
    %3505 = vmatpush1.msra.mxu0 0.0
    %3506 = vmatprep.subr.mxu0 0.0
    %3507 = vmatpush1.msra.mxu0 0.0
    %3508 = vmatprep.subr.mxu0 0.0
    %3509 = vmatpush1.msra.mxu0 0.0
    %3510 = vmatprep.subr.mxu0 0.0
    %3511 = vmatpush1.msra.mxu0 0.0
    %3512 = vmatprep.subr.mxu0 0.0
    %3513 = vmatpush1.msra.mxu0 0.0
    %3514 = vmatprep.subr.mxu0 0.0
    %3515 = vmatpush1.msra.mxu0 0.0
    %3516 = vmatprep.subr.mxu0 0.0
    %3517 = vmatpush1.msra.mxu0 0.0
    %3518 = vmatprep.subr.mxu0 0.0
    %3519 = vmatpush1.msra.mxu0 0.0
    %3520 = vmatprep.subr.mxu0 0.0
    %3521 = vmatpush1.msra.mxu0 0.0
    %3522 = vmatprep.subr.mxu0 0.0
    %3523 = vmatpush1.msra.mxu0 0.0
    %3524 = vmatprep.subr.mxu0 0.0
    %3525 = vmatpush1.msra.mxu0 0.0
    %3526 = vmatprep.subr.mxu0 0.0
    %3527 = vmatpush1.msra.mxu0 0.0
    %3528 = vmatprep.subr.mxu0 0.0
    %3529 = vmatpush1.msra.mxu0 0.0
    %3530 = vmatprep.subr.mxu0 0.0
    %3531 = vmatpush1.msra.mxu0 %v3495
    %3532 = vmatprep.subr.mxu0 0.0
    %3533 = vmatpush2.msra.mxu0 0.0
    %3534 = vmatprep.subr.mxu0 0.0
    %3535 = vmatpush2.msra.mxu0 0.0
    %3536 = vmatprep.subr.mxu0 0.0
    %3537 = vmatpush2.msra.mxu0 0.0
    %3538 = vmatprep.subr.mxu0 0.0
    %3539 = vmatpush2.msra.mxu0 0.0
    %3540 = vmatprep.subr.mxu0 0.0
    %3541 = vmatpush2.msra.mxu0 0.0
    %3542 = vmatprep.subr.mxu0 0.0
    %3543 = vmatpush2.msra.mxu0 0.0
    %3544 = vmatprep.subr.mxu0 0.0
    %3545 = vmatpush2.msra.mxu0 0.0
    %3546 = vmatprep.subr.mxu0 0.0
    %3547 = vmatpush2.msra.mxu0 0.0
    %3548 = vmatprep.subr.mxu0 0.0
    %3549 = vmatpush2.msra.mxu0 0.0
    %3550 = vmatprep.subr.mxu0 0.0
    %3551 = vmatpush2.msra.mxu0 0.0
    %3552 = vmatprep.subr.mxu0 0.0
    %3553 = vmatpush2.msra.mxu0 0.0
    %3554 = vmatprep.subr.mxu0 0.0
    %3555 = vmatpush2.msra.mxu0 0.0
    %3556 = vmatprep.subr.mxu0 0.0
    %3557 = vmatpush2.msra.mxu0 0.0
    %3558 = vmatprep.subr.mxu0 0.0
    %3559 = vmatpush2.msra.mxu0 0.0
    %3560 = vmatprep.subr.mxu0 0.0
    %3561 = vmatpush2.msra.mxu0 0.0
    %3562 = vmatprep.subr.mxu0 0.0
    %3563 = vmatpush2.msra.mxu0 0.0
    %3564 = vmatprep.mubr.f32.mxu0 0.0
    %3565 = vmatmul.mubr.f32.gmra.mxu0 %v3498
    %v3566 = vpop.f32.mrf.mxu0
    %v3567 = vadd.f32 0.0, %v3566
    %v3568 = vpop.f32.mrf.mxu0
    %3569 = vdwg.mxu0
    %3572 = vrot.lane.b32.xlu0 %v3491, 16
    %v3573 = vpop.permute.xlu0 %3572
    %3574 = vrot.lane.b32.xlu0 %v3567, 16
    %v3575 = vpop.permute.xlu0 %3574
    %3578 = vst.msk [vmem:[#allocation2] sm:$0xff] %vm1582, %v3573
    %3579 = vst.msk [vmem:[#allocation2 + $0x8] sm:$0xff] %vm1582, %v3575
    %3580 = vrot.lane.b32.xlu0 %v2398, 104
    %v3581 = vpop.permute.xlu0 %3580
    %3582 = vrot.lane.b32.xlu0 %v2480, 104
    %v3583 = vpop.permute.xlu0 %3582
    %v3584 = vsel %vm578, %v3581, 0
    %v3586 = vsel %vm578, %v3583, 0
    %3588 = vmatprep.subr.mxu0 0.0
    %3589 = vmatpush1.xpose.msra.mxu0 0.0
    %3590 = vmatprep.subr.mxu0 0.0
    %3591 = vmatpush1.xpose.msra.mxu0 0.0
    %3592 = vmatprep.subr.mxu0 0.0
    %3593 = vmatpush1.xpose.msra.mxu0 0.0
    %3594 = vmatprep.subr.mxu0 0.0
    %3595 = vmatpush1.xpose.msra.mxu0 0.0
    %3596 = vmatprep.subr.mxu0 0.0
    %3597 = vmatpush1.xpose.msra.mxu0 0.0
    %3598 = vmatprep.subr.mxu0 0.0
    %3599 = vmatpush1.xpose.msra.mxu0 0.0
    %3600 = vmatprep.subr.mxu0 0.0
    %3601 = vmatpush1.xpose.msra.mxu0 0.0
    %3602 = vmatprep.subr.mxu0 0.0
    %3603 = vmatpush1.xpose.msra.mxu0 0.0
    %3604 = vmatprep.subr.mxu0 0.0
    %3605 = vmatpush1.xpose.msra.mxu0 0.0
    %3606 = vmatprep.subr.mxu0 0.0
    %3607 = vmatpush1.xpose.msra.mxu0 0.0
    %3608 = vmatprep.subr.mxu0 0.0
    %3609 = vmatpush1.xpose.msra.mxu0 0.0
    %3610 = vmatprep.subr.mxu0 0.0
    %3611 = vmatpush1.xpose.msra.mxu0 0.0
    %3612 = vmatprep.subr.mxu0 0.0
    %3613 = vmatpush1.xpose.msra.mxu0 0.0
    %3614 = vmatprep.subr.mxu0 0.0
    %3615 = vmatpush1.xpose.msra.mxu0 0.0
    %3616 = vmatprep.subr.mxu0 0.0
    %3617 = vmatpush1.xpose.msra.mxu0 0.0
    %3618 = vmatprep.subr.mxu0 0.0
    %3619 = vmatpush1.xpose.msra.mxu0 %v3586
    %3620 = vmatprep.subr.mxu0 0.0
    %3621 = vmatpush2.xpose.msra.mxu0 0.0
    %3622 = vmatprep.subr.mxu0 0.0
    %3623 = vmatpush2.xpose.msra.mxu0 0.0
    %3624 = vmatprep.subr.mxu0 0.0
    %3625 = vmatpush2.xpose.msra.mxu0 0.0
    %3626 = vmatprep.subr.mxu0 0.0
    %3627 = vmatpush2.xpose.msra.mxu0 0.0
    %3628 = vmatprep.subr.mxu0 0.0
    %3629 = vmatpush2.xpose.msra.mxu0 0.0
    %3630 = vmatprep.subr.mxu0 0.0
    %3631 = vmatpush2.xpose.msra.mxu0 0.0
    %3632 = vmatprep.subr.mxu0 0.0
    %3633 = vmatpush2.xpose.msra.mxu0 0.0
    %3634 = vmatprep.subr.mxu0 0.0
    %3635 = vmatpush2.xpose.msra.mxu0 0.0
    %3636 = vmatprep.subr.mxu0 0.0
    %3637 = vmatpush2.xpose.msra.mxu0 0.0
    %3638 = vmatprep.subr.mxu0 0.0
    %3639 = vmatpush2.xpose.msra.mxu0 0.0
    %3640 = vmatprep.subr.mxu0 0.0
    %3641 = vmatpush2.xpose.msra.mxu0 0.0
    %3642 = vmatprep.subr.mxu0 0.0
    %3643 = vmatpush2.xpose.msra.mxu0 0.0
    %3644 = vmatprep.subr.mxu0 0.0
    %3645 = vmatpush2.xpose.msra.mxu0 0.0
    %3646 = vmatprep.subr.mxu0 0.0
    %3647 = vmatpush2.xpose.msra.mxu0 0.0
    %3648 = vmatprep.subr.mxu0 0.0
    %3649 = vmatpush2.xpose.msra.mxu0 0.0
    %3650 = vmatprep.subr.mxu0 0.0
    %3651 = vmatpush2.xpose.msra.mxu0 0.0
    %3652 = vmatprep.mubr.f32.mxu0 0.0
    %3653 = vmatmul.mubr.f32.gmra.mxu0 %v3584
    %v3654 = vpop.f32.mrf.mxu0
    %v3655 = vadd.f32 %v307, %v3654
    %v3656 = vpop.f32.mrf.mxu0
    %3657 = vdwg.mxu0
    %3658 = vrot.lane.b32.xlu0 %v2399, 104
    %v3659 = vpop.permute.xlu0 %3658
    %3660 = vrot.lane.b32.xlu0 %v2485, 104
    %v3661 = vpop.permute.xlu0 %3660
    %v3662 = vsel %vm578, %v3659, 0
    %v3664 = vsel %vm578, %v3661, 0
    %3666 = vmatprep.subr.mxu0 0.0
    %3667 = vmatpush1.xpose.msra.mxu0 0.0
    %3668 = vmatprep.subr.mxu0 0.0
    %3669 = vmatpush1.xpose.msra.mxu0 0.0
    %3670 = vmatprep.subr.mxu0 0.0
    %3671 = vmatpush1.xpose.msra.mxu0 0.0
    %3672 = vmatprep.subr.mxu0 0.0
    %3673 = vmatpush1.xpose.msra.mxu0 0.0
    %3674 = vmatprep.subr.mxu0 0.0
    %3675 = vmatpush1.xpose.msra.mxu0 0.0
    %3676 = vmatprep.subr.mxu0 0.0
    %3677 = vmatpush1.xpose.msra.mxu0 0.0
    %3678 = vmatprep.subr.mxu0 0.0
    %3679 = vmatpush1.xpose.msra.mxu0 0.0
    %3680 = vmatprep.subr.mxu0 0.0
    %3681 = vmatpush1.xpose.msra.mxu0 0.0
    %3682 = vmatprep.subr.mxu0 0.0
    %3683 = vmatpush1.xpose.msra.mxu0 0.0
    %3684 = vmatprep.subr.mxu0 0.0
    %3685 = vmatpush1.xpose.msra.mxu0 0.0
    %3686 = vmatprep.subr.mxu0 0.0
    %3687 = vmatpush1.xpose.msra.mxu0 0.0
    %3688 = vmatprep.subr.mxu0 0.0
    %3689 = vmatpush1.xpose.msra.mxu0 0.0
    %3690 = vmatprep.subr.mxu0 0.0
    %3691 = vmatpush1.xpose.msra.mxu0 0.0
    %3692 = vmatprep.subr.mxu0 0.0
    %3693 = vmatpush1.xpose.msra.mxu0 0.0
    %3694 = vmatprep.subr.mxu0 0.0
    %3695 = vmatpush1.xpose.msra.mxu0 0.0
    %3696 = vmatprep.subr.mxu0 0.0
    %3697 = vmatpush1.xpose.msra.mxu0 %v3664
    %3698 = vmatprep.subr.mxu0 0.0
    %3699 = vmatpush2.xpose.msra.mxu0 0.0
    %3700 = vmatprep.subr.mxu0 0.0
    %3701 = vmatpush2.xpose.msra.mxu0 0.0
    %3702 = vmatprep.subr.mxu0 0.0
    %3703 = vmatpush2.xpose.msra.mxu0 0.0
    %3704 = vmatprep.subr.mxu0 0.0
    %3705 = vmatpush2.xpose.msra.mxu0 0.0
    %3706 = vmatprep.subr.mxu0 0.0
    %3707 = vmatpush2.xpose.msra.mxu0 0.0
    %3708 = vmatprep.subr.mxu0 0.0
    %3709 = vmatpush2.xpose.msra.mxu0 0.0
    %3710 = vmatprep.subr.mxu0 0.0
    %3711 = vmatpush2.xpose.msra.mxu0 0.0
    %3712 = vmatprep.subr.mxu0 0.0
    %3713 = vmatpush2.xpose.msra.mxu0 0.0
    %3714 = vmatprep.subr.mxu0 0.0
    %3715 = vmatpush2.xpose.msra.mxu0 0.0
    %3716 = vmatprep.subr.mxu0 0.0
    %3717 = vmatpush2.xpose.msra.mxu0 0.0
    %3718 = vmatprep.subr.mxu0 0.0
    %3719 = vmatpush2.xpose.msra.mxu0 0.0
    %3720 = vmatprep.subr.mxu0 0.0
    %3721 = vmatpush2.xpose.msra.mxu0 0.0
    %3722 = vmatprep.subr.mxu0 0.0
    %3723 = vmatpush2.xpose.msra.mxu0 0.0
    %3724 = vmatprep.subr.mxu0 0.0
    %3725 = vmatpush2.xpose.msra.mxu0 0.0
    %3726 = vmatprep.subr.mxu0 0.0
    %3727 = vmatpush2.xpose.msra.mxu0 0.0
    %3728 = vmatprep.subr.mxu0 0.0
    %3729 = vmatpush2.xpose.msra.mxu0 0.0
    %3730 = vmatprep.mubr.f32.mxu0 0.0
    %3731 = vmatmul.mubr.f32.gmra.mxu0 %v3662
    %v3732 = vpop.f32.mrf.mxu0
    %v3733 = vadd.f32 %v308, %v3732
    %v3734 = vpop.f32.mrf.mxu0
    %3735 = vdwg.mxu0
    %v3736 = vsel %vm578, %v3655, -inf
    %3737 = vmax.xlane.f32.xlu0 %v3736
    %v3738 = vpop.xlane.xlu0 %3737
    %v3739 = vsel %vm578, %v3733, -inf
    %3740 = vmax.xlane.f32.xlu0 %v3739
    %v3741 = vpop.xlane.xlu0 %3740
    %v3742 = vsub.f32 %v3655, %v3738
    %v3743 = vsub.f32 %v3733, %v3741
    %v3744 = vmul.f32 %v3742, 1.442695
    %v3745 = vpow.pop %v3744
    %v3746 = vmul.f32 %v3743, 1.442695
    %v3747 = vpow.pop %v3746
    %v3748 = vsel %vm578, %v3745, 0.0
    %3749 = vadd.xlane.f32.xlu0 %v3748
    %v3750 = vpop.xlane.xlu0 %3749
    %v3751 = vsel %vm578, %v3747, 0.0
    %3752 = vadd.xlane.f32.xlu0 %v3751
    %v3753 = vpop.xlane.xlu0 %3752
    %v3754 = vrcp.pop %v3750
    %v3755 = vrcp.pop %v3753
    %v3756 = vmul.f32 %v3745, %v3754
    %v3757 = vmul.f32 %v3747, %v3755
    %3758 = vrot.lane.b32.xlu0 %v2568, 104
    %v3759 = vpop.permute.xlu0 %3758
    %v3762 = vsel %vm578, %v3756, 0
    %3764 = vmatprep.subr.mxu0 0.0
    %3765 = vmatpush1.msra.mxu0 0.0
    %3766 = vmatprep.subr.mxu0 0.0
    %3767 = vmatpush1.msra.mxu0 0.0
    %3768 = vmatprep.subr.mxu0 0.0
    %3769 = vmatpush1.msra.mxu0 0.0
    %3770 = vmatprep.subr.mxu0 0.0
    %3771 = vmatpush1.msra.mxu0 0.0
    %3772 = vmatprep.subr.mxu0 0.0
    %3773 = vmatpush1.msra.mxu0 0.0
    %3774 = vmatprep.subr.mxu0 0.0
    %3775 = vmatpush1.msra.mxu0 0.0
    %3776 = vmatprep.subr.mxu0 0.0
    %3777 = vmatpush1.msra.mxu0 0.0
    %3778 = vmatprep.subr.mxu0 0.0
    %3779 = vmatpush1.msra.mxu0 0.0
    %3780 = vmatprep.subr.mxu0 0.0
    %3781 = vmatpush1.msra.mxu0 0.0
    %3782 = vmatprep.subr.mxu0 0.0
    %3783 = vmatpush1.msra.mxu0 0.0
    %3784 = vmatprep.subr.mxu0 0.0
    %3785 = vmatpush1.msra.mxu0 0.0
    %3786 = vmatprep.subr.mxu0 0.0
    %3787 = vmatpush1.msra.mxu0 0.0
    %3788 = vmatprep.subr.mxu0 0.0
    %3789 = vmatpush1.msra.mxu0 0.0
    %3790 = vmatprep.subr.mxu0 0.0
    %3791 = vmatpush1.msra.mxu0 0.0
    %3792 = vmatprep.subr.mxu0 0.0
    %3793 = vmatpush1.msra.mxu0 0.0
    %3794 = vmatprep.subr.mxu0 0.0
    %3795 = vmatpush1.msra.mxu0 %v3759
    %3796 = vmatprep.subr.mxu0 0.0
    %3797 = vmatpush2.msra.mxu0 0.0
    %3798 = vmatprep.subr.mxu0 0.0
    %3799 = vmatpush2.msra.mxu0 0.0
    %3800 = vmatprep.subr.mxu0 0.0
    %3801 = vmatpush2.msra.mxu0 0.0
    %3802 = vmatprep.subr.mxu0 0.0
    %3803 = vmatpush2.msra.mxu0 0.0
    %3804 = vmatprep.subr.mxu0 0.0
    %3805 = vmatpush2.msra.mxu0 0.0
    %3806 = vmatprep.subr.mxu0 0.0
    %3807 = vmatpush2.msra.mxu0 0.0
    %3808 = vmatprep.subr.mxu0 0.0
    %3809 = vmatpush2.msra.mxu0 0.0
    %3810 = vmatprep.subr.mxu0 0.0
    %3811 = vmatpush2.msra.mxu0 0.0
    %3812 = vmatprep.subr.mxu0 0.0
    %3813 = vmatpush2.msra.mxu0 0.0
    %3814 = vmatprep.subr.mxu0 0.0
    %3815 = vmatpush2.msra.mxu0 0.0
    %3816 = vmatprep.subr.mxu0 0.0
    %3817 = vmatpush2.msra.mxu0 0.0
    %3818 = vmatprep.subr.mxu0 0.0
    %3819 = vmatpush2.msra.mxu0 0.0
    %3820 = vmatprep.subr.mxu0 0.0
    %3821 = vmatpush2.msra.mxu0 0.0
    %3822 = vmatprep.subr.mxu0 0.0
    %3823 = vmatpush2.msra.mxu0 0.0
    %3824 = vmatprep.subr.mxu0 0.0
    %3825 = vmatpush2.msra.mxu0 0.0
    %3826 = vmatprep.subr.mxu0 0.0
    %3827 = vmatpush2.msra.mxu0 0.0
    %3828 = vmatprep.mubr.f32.mxu0 0.0
    %3829 = vmatmul.mubr.f32.gmra.mxu0 %v3762
    %v3830 = vpop.f32.mrf.mxu0
    %v3831 = vadd.f32 0.0, %v3830
    %v3832 = vpop.f32.mrf.mxu0
    %3833 = vdwg.mxu0
    %3834 = vrot.lane.b32.xlu0 %v2573, 104
    %v3835 = vpop.permute.xlu0 %3834
    %v3838 = vsel %vm578, %v3757, 0
    %3840 = vmatprep.subr.mxu0 0.0
    %3841 = vmatpush1.msra.mxu0 0.0
    %3842 = vmatprep.subr.mxu0 0.0
    %3843 = vmatpush1.msra.mxu0 0.0
    %3844 = vmatprep.subr.mxu0 0.0
    %3845 = vmatpush1.msra.mxu0 0.0
    %3846 = vmatprep.subr.mxu0 0.0
    %3847 = vmatpush1.msra.mxu0 0.0
    %3848 = vmatprep.subr.mxu0 0.0
    %3849 = vmatpush1.msra.mxu0 0.0
    %3850 = vmatprep.subr.mxu0 0.0
    %3851 = vmatpush1.msra.mxu0 0.0
    %3852 = vmatprep.subr.mxu0 0.0
    %3853 = vmatpush1.msra.mxu0 0.0
    %3854 = vmatprep.subr.mxu0 0.0
    %3855 = vmatpush1.msra.mxu0 0.0
    %3856 = vmatprep.subr.mxu0 0.0
    %3857 = vmatpush1.msra.mxu0 0.0
    %3858 = vmatprep.subr.mxu0 0.0
    %3859 = vmatpush1.msra.mxu0 0.0
    %3860 = vmatprep.subr.mxu0 0.0
    %3861 = vmatpush1.msra.mxu0 0.0
    %3862 = vmatprep.subr.mxu0 0.0
    %3863 = vmatpush1.msra.mxu0 0.0
    %3864 = vmatprep.subr.mxu0 0.0
    %3865 = vmatpush1.msra.mxu0 0.0
    %3866 = vmatprep.subr.mxu0 0.0
    %3867 = vmatpush1.msra.mxu0 0.0
    %3868 = vmatprep.subr.mxu0 0.0
    %3869 = vmatpush1.msra.mxu0 0.0
    %3870 = vmatprep.subr.mxu0 0.0
    %3871 = vmatpush1.msra.mxu0 %v3835
    %3872 = vmatprep.subr.mxu0 0.0
    %3873 = vmatpush2.msra.mxu0 0.0
    %3874 = vmatprep.subr.mxu0 0.0
    %3875 = vmatpush2.msra.mxu0 0.0
    %3876 = vmatprep.subr.mxu0 0.0
    %3877 = vmatpush2.msra.mxu0 0.0
    %3878 = vmatprep.subr.mxu0 0.0
    %3879 = vmatpush2.msra.mxu0 0.0
    %3880 = vmatprep.subr.mxu0 0.0
    %3881 = vmatpush2.msra.mxu0 0.0
    %3882 = vmatprep.subr.mxu0 0.0
    %3883 = vmatpush2.msra.mxu0 0.0
    %3884 = vmatprep.subr.mxu0 0.0
    %3885 = vmatpush2.msra.mxu0 0.0
    %3886 = vmatprep.subr.mxu0 0.0
    %3887 = vmatpush2.msra.mxu0 0.0
    %3888 = vmatprep.subr.mxu0 0.0
    %3889 = vmatpush2.msra.mxu0 0.0
    %3890 = vmatprep.subr.mxu0 0.0
    %3891 = vmatpush2.msra.mxu0 0.0
    %3892 = vmatprep.subr.mxu0 0.0
    %3893 = vmatpush2.msra.mxu0 0.0
    %3894 = vmatprep.subr.mxu0 0.0
    %3895 = vmatpush2.msra.mxu0 0.0
    %3896 = vmatprep.subr.mxu0 0.0
    %3897 = vmatpush2.msra.mxu0 0.0
    %3898 = vmatprep.subr.mxu0 0.0
    %3899 = vmatpush2.msra.mxu0 0.0
    %3900 = vmatprep.subr.mxu0 0.0
    %3901 = vmatpush2.msra.mxu0 0.0
    %3902 = vmatprep.subr.mxu0 0.0
    %3903 = vmatpush2.msra.mxu0 0.0
    %3904 = vmatprep.mubr.f32.mxu0 0.0
    %3905 = vmatmul.mubr.f32.gmra.mxu0 %v3838
    %v3906 = vpop.f32.mrf.mxu0
    %v3907 = vadd.f32 0.0, %v3906
    %v3908 = vpop.f32.mrf.mxu0
    %3909 = vdwg.mxu0
    %3912 = vrot.lane.b32.xlu0 %v3831, 24
    %v3913 = vpop.permute.xlu0 %3912
    %3914 = vrot.lane.b32.xlu0 %v3907, 24
    %v3915 = vpop.permute.xlu0 %3914
    %3918 = vst.msk [vmem:[#allocation2] sm:$0xff] %vm1923, %v3913
    %3919 = vst.msk [vmem:[#allocation2 + $0x8] sm:$0xff] %vm1923, %v3915
    %v3920 = vld [vmem:[#allocation2] sm:$0xff]
    %v3921 = vld [vmem:[#allocation2 + $0x8] sm:$0xff]
    %s3922 = scalar_lea.vmem [#allocation12], 32
    %v3923 = vld [vmem:[%s3922] sm:$0xff]
    %v3924 = vld [vmem:[%s3922 + $0x8] sm:$0xff]
    %v3925 = vld [vmem:[%s3922 + $0x10] sm:$0xff]
    %v3926 = vld [vmem:[%s3922 + $0x18] sm:$0xff]
    %s3927 = scalar_lea.vmem [#allocation14], 1
    %v3928 = vld [vmem:[%s3927] sm:$0x1]
    %v3930 = vlaneseq
    %v3931 = vshrl.u32 %v3930, 7
    %v3932 = vsub.s32 0, %v3931
    %v3933 = vrot.slane %v3928, %v3932
    %v3936 = vsel %vm322, %v3920, 0
    %v3939 = vsel %vm322, %v3921, 0
    %3941 = vmatprep.subr.mxu0 0.0
    %3942 = vmatpush1.msra.mxu0 0.0
    %3943 = vmatprep.subr.mxu0 0.0
    %3944 = vmatpush1.msra.mxu0 0.0
    %3945 = vmatprep.subr.mxu0 0.0
    %3946 = vmatpush1.msra.mxu0 0.0
    %3947 = vmatprep.subr.mxu0 0.0
    %3948 = vmatpush1.msra.mxu0 0.0
    %3949 = vmatprep.subr.mxu0 0.0
    %3950 = vmatpush1.msra.mxu0 0.0
    %3951 = vmatprep.subr.mxu0 0.0
    %3952 = vmatpush1.msra.mxu0 0.0
    %3953 = vmatprep.subr.mxu0 0.0
    %3954 = vmatpush1.msra.mxu0 0.0
    %3955 = vmatprep.subr.mxu0 0.0
    %3956 = vmatpush1.msra.mxu0 0.0
    %3957 = vmatprep.subr.mxu0 0.0
    %3958 = vmatpush1.msra.mxu0 0.0
    %3959 = vmatprep.subr.mxu0 0.0
    %3960 = vmatpush1.msra.mxu0 0.0
    %3961 = vmatprep.subr.mxu0 0.0
    %3962 = vmatpush1.msra.mxu0 0.0
    %3963 = vmatprep.subr.mxu0 0.0
    %3964 = vmatpush1.msra.mxu0 0.0
    %3965 = vmatprep.subr.mxu0 0.0
    %3966 = vmatpush1.msra.mxu0 %v3926
    %3967 = vmatprep.subr.mxu0 0.0
    %3968 = vmatpush1.msra.mxu0 %v3925
    %3969 = vmatprep.subr.mxu0 0.0
    %3970 = vmatpush1.msra.mxu0 %v3924
    %3971 = vmatprep.subr.mxu0 0.0
    %3972 = vmatpush1.msra.mxu0 %v3923
    %3973 = vmatprep.subr.mxu0 0.0
    %3974 = vmatpush2.msra.mxu0 0.0
    %3975 = vmatprep.subr.mxu0 0.0
    %3976 = vmatpush2.msra.mxu0 0.0
    %3977 = vmatprep.subr.mxu0 0.0
    %3978 = vmatpush2.msra.mxu0 0.0
    %3979 = vmatprep.subr.mxu0 0.0
    %3980 = vmatpush2.msra.mxu0 0.0
    %3981 = vmatprep.subr.mxu0 0.0
    %3982 = vmatpush2.msra.mxu0 0.0
    %3983 = vmatprep.subr.mxu0 0.0
    %3984 = vmatpush2.msra.mxu0 0.0
    %3985 = vmatprep.subr.mxu0 0.0
    %3986 = vmatpush2.msra.mxu0 0.0
    %3987 = vmatprep.subr.mxu0 0.0
    %3988 = vmatpush2.msra.mxu0 0.0
    %3989 = vmatprep.subr.mxu0 0.0
    %3990 = vmatpush2.msra.mxu0 0.0
    %3991 = vmatprep.subr.mxu0 0.0
    %3992 = vmatpush2.msra.mxu0 0.0
    %3993 = vmatprep.subr.mxu0 0.0
    %3994 = vmatpush2.msra.mxu0 0.0
    %3995 = vmatprep.subr.mxu0 0.0
    %3996 = vmatpush2.msra.mxu0 0.0
    %3997 = vmatprep.subr.mxu0 0.0
    %3998 = vmatpush2.msra.mxu0 0.0
    %3999 = vmatprep.subr.mxu0 0.0
    %4000 = vmatpush2.msra.mxu0 0.0
    %4001 = vmatprep.subr.mxu0 0.0
    %4002 = vmatpush2.msra.mxu0 0.0
    %4003 = vmatprep.subr.mxu0 0.0
    %4004 = vmatpush2.msra.mxu0 0.0
    %4005 = vmatprep.mubr.f32.mxu0 0.0
    %4006 = vmatmul.mubr.f32.gmra.mxu0 %v3936
    %v4007 = vpop.f32.mrf.mxu0
    %v4008 = vadd.f32 %v3933, %v4007
    %v4009 = vpop.f32.mrf.mxu0
    %4010 = vmatprep.mubr.f32.mxu0 0.0
    %4011 = vmatmul.mubr.f32.gmra.mxu0 %v3939
    %v4012 = vpop.f32.mrf.mxu0
    %v4013 = vadd.f32 %v3933, %v4012
    %v4014 = vpop.f32.mrf.mxu0
    %4015 = vdwg.mxu0
    %v4016 = vadd.f32 %v2302, %v4008
    %v4017 = vadd.f32 %v2303, %v4013
    %v4018 = vsel %vm322, %v4016, 0.0
    %4019 = vadd.xlane.f32.xlu0 %v4018
    %v4020 = vpop.xlane.xlu0 %4019
    %v4021 = vsel %vm322, %v4017, 0.0
    %4022 = vadd.xlane.f32.xlu0 %v4021
    %v4023 = vpop.xlane.xlu0 %4022
    %v4024 = vmul.f32 %v4020, %v2028
    %v4025 = vmul.f32 %v4023, %v2028
    %v4026 = vsub.f32 %v4016, %v4024
    %v4027 = vsub.f32 %v4017, %v4025
    %v4028 = vmul.f32 %v4026, %v4026
    %v4029 = vmul.f32 %v4027, %v4027
    %v4030 = vsel %vm322, %v4028, 0.0
    %4031 = vadd.xlane.f32.xlu0 %v4030
    %v4032 = vpop.xlane.xlu0 %4031
    %v4033 = vsel %vm322, %v4029, 0.0
    %4034 = vadd.xlane.f32.xlu0 %v4033
    %v4035 = vpop.xlane.xlu0 %4034
    %v4036 = vmul.f32 %v4032, %v2028
    %v4037 = vmul.f32 %v4035, %v2028
    %v4038 = vadd.f32 %v4036, 1e-05
    %v4039 = vadd.f32 %v4037, 1e-05
    %v4040 = vrsqrt.pop %v4038
    %v4041 = vrsqrt.pop %v4039
    %v4042 = vmul.f32 %v4026, %v4040
    %v4043 = vmul.f32 %v4027, %v4041
    %s4044 = scalar_lea.vmem [#allocation15], 1
    %v4045 = vld [vmem:[%s4044] sm:$0x1]
    %v4047 = vlaneseq
    %v4048 = vshrl.u32 %v4047, 7
    %v4049 = vsub.s32 0, %v4048
    %v4050 = vrot.slane %v4045, %v4049
    %v4052 = vmul.f32 %v4042, %v4050
    %v4053 = vmul.f32 %v4043, %v4050
    %s4054 = scalar_lea.vmem [#allocation17], 1
    %v4055 = vld [vmem:[%s4054] sm:$0x1]
    %v4057 = vlaneseq
    %v4058 = vshrl.u32 %v4057, 7
    %v4059 = vsub.s32 0, %v4058
    %v4060 = vrot.slane %v4055, %v4059
    %v4062 = vadd.f32 %v4052, %v4060
    %v4063 = vadd.f32 %v4053, %v4060
    %s4064 = scalar_lea.vmem [#allocation21], 32
    %v4065 = vld [vmem:[%s4064] sm:$0xff]
    %v4066 = vld [vmem:[%s4064 + $0x8] sm:$0xff]
    %v4067 = vld [vmem:[%s4064 + $0x10] sm:$0xff]
    %v4068 = vld [vmem:[%s4064 + $0x18] sm:$0xff]
    %s4069 = scalar_lea.vmem [#allocation23], 1
    %v4070 = vld [vmem:[%s4069] sm:$0x1]
    %v4072 = vlaneseq
    %v4073 = vshrl.u32 %v4072, 7
    %v4074 = vsub.s32 0, %v4073
    %v4075 = vrot.slane %v4070, %v4074
    %v4078 = vsel %vm322, %v4062, 0
    %v4081 = vsel %vm322, %v4063, 0
    %4083 = vmatprep.subr.mxu0 0.0
    %4084 = vmatpush1.msra.mxu0 0.0
    %4085 = vmatprep.subr.mxu0 0.0
    %4086 = vmatpush1.msra.mxu0 0.0
    %4087 = vmatprep.subr.mxu0 0.0
    %4088 = vmatpush1.msra.mxu0 0.0
    %4089 = vmatprep.subr.mxu0 0.0
    %4090 = vmatpush1.msra.mxu0 0.0
    %4091 = vmatprep.subr.mxu0 0.0
    %4092 = vmatpush1.msra.mxu0 0.0
    %4093 = vmatprep.subr.mxu0 0.0
    %4094 = vmatpush1.msra.mxu0 0.0
    %4095 = vmatprep.subr.mxu0 0.0
    %4096 = vmatpush1.msra.mxu0 0.0
    %4097 = vmatprep.subr.mxu0 0.0
    %4098 = vmatpush1.msra.mxu0 0.0
    %4099 = vmatprep.subr.mxu0 0.0
    %4100 = vmatpush1.msra.mxu0 0.0
    %4101 = vmatprep.subr.mxu0 0.0
    %4102 = vmatpush1.msra.mxu0 0.0
    %4103 = vmatprep.subr.mxu0 0.0
    %4104 = vmatpush1.msra.mxu0 0.0
    %4105 = vmatprep.subr.mxu0 0.0
    %4106 = vmatpush1.msra.mxu0 0.0
    %4107 = vmatprep.subr.mxu0 0.0
    %4108 = vmatpush1.msra.mxu0 %v4068
    %4109 = vmatprep.subr.mxu0 0.0
    %4110 = vmatpush1.msra.mxu0 %v4067
    %4111 = vmatprep.subr.mxu0 0.0
    %4112 = vmatpush1.msra.mxu0 %v4066
    %4113 = vmatprep.subr.mxu0 0.0
    %4114 = vmatpush1.msra.mxu0 %v4065
    %4115 = vmatprep.subr.mxu0 0.0
    %4116 = vmatpush2.msra.mxu0 0.0
    %4117 = vmatprep.subr.mxu0 0.0
    %4118 = vmatpush2.msra.mxu0 0.0
    %4119 = vmatprep.subr.mxu0 0.0
    %4120 = vmatpush2.msra.mxu0 0.0
    %4121 = vmatprep.subr.mxu0 0.0
    %4122 = vmatpush2.msra.mxu0 0.0
    %4123 = vmatprep.subr.mxu0 0.0
    %4124 = vmatpush2.msra.mxu0 0.0
    %4125 = vmatprep.subr.mxu0 0.0
    %4126 = vmatpush2.msra.mxu0 0.0
    %4127 = vmatprep.subr.mxu0 0.0
    %4128 = vmatpush2.msra.mxu0 0.0
    %4129 = vmatprep.subr.mxu0 0.0
    %4130 = vmatpush2.msra.mxu0 0.0
    %4131 = vmatprep.subr.mxu0 0.0
    %4132 = vmatpush2.msra.mxu0 0.0
    %4133 = vmatprep.subr.mxu0 0.0
    %4134 = vmatpush2.msra.mxu0 0.0
    %4135 = vmatprep.subr.mxu0 0.0
    %4136 = vmatpush2.msra.mxu0 0.0
    %4137 = vmatprep.subr.mxu0 0.0
    %4138 = vmatpush2.msra.mxu0 0.0
    %4139 = vmatprep.subr.mxu0 0.0
    %4140 = vmatpush2.msra.mxu0 0.0
    %4141 = vmatprep.subr.mxu0 0.0
    %4142 = vmatpush2.msra.mxu0 0.0
    %4143 = vmatprep.subr.mxu0 0.0
    %4144 = vmatpush2.msra.mxu0 0.0
    %4145 = vmatprep.subr.mxu0 0.0
    %4146 = vmatpush2.msra.mxu0 0.0
    %4147 = vmatprep.mubr.f32.mxu0 0.0
    %4148 = vmatmul.mubr.f32.gmra.mxu0 %v4078
    %v4149 = vpop.f32.mrf.mxu0
    %v4150 = vadd.f32 %v4075, %v4149
    %v4151 = vpop.f32.mrf.mxu0
    %4152 = vmatprep.mubr.f32.mxu0 0.0
    %4153 = vmatmul.mubr.f32.gmra.mxu0 %v4081
    %v4154 = vpop.f32.mrf.mxu0
    %v4155 = vadd.f32 %v4075, %v4154
    %v4156 = vpop.f32.mrf.mxu0
    %4157 = vdwg.mxu0
    %v4158 = vmax.f32 %v4150, 0.0
    %v4159 = vmax.f32 %v4155, 0.0
    %s4160 = scalar_lea.vmem %s16, 64
    %v4161 = vld [vmem:[%s4160] sm:$0xff]
    %v4162 = vld [vmem:[%s4160 + $0x8] sm:$0xff]
    %v4163 = vld [vmem:[%s4160 + $0x10] sm:$0xff]
    %v4164 = vld [vmem:[%s4160 + $0x18] sm:$0xff]
    %v4165 = vld [vmem:[%s4160 + $0x20] sm:$0xff]
    %v4166 = vld [vmem:[%s4160 + $0x28] sm:$0xff]
    %v4167 = vld [vmem:[%s4160 + $0x30] sm:$0xff]
    %v4168 = vld [vmem:[%s4160 + $0x38] sm:$0xff]
    %s4169 = scalar_lea.vmem [#allocation24], 1
    %v4170 = vld [vmem:[%s4169] sm:$0x1]
    %v4172 = vlaneseq
    %v4173 = vshrl.u32 %v4172, 7
    %v4174 = vsub.s32 0, %v4173
    %v4175 = vrot.slane %v4170, %v4174
    %v4178 = vsel %vm2176, %v4158, 0
    %v4181 = vsel %vm2176, %v4159, 0
    %4183 = vmatprep.subr.mxu0 0.0
    %4184 = vmatpush1.msra.mxu0 0.0
    %4185 = vmatprep.subr.mxu0 0.0
    %4186 = vmatpush1.msra.mxu0 0.0
    %4187 = vmatprep.subr.mxu0 0.0
    %4188 = vmatpush1.msra.mxu0 0.0
    %4189 = vmatprep.subr.mxu0 0.0
    %4190 = vmatpush1.msra.mxu0 0.0
    %4191 = vmatprep.subr.mxu0 0.0
    %4192 = vmatpush1.msra.mxu0 0.0
    %4193 = vmatprep.subr.mxu0 0.0
    %4194 = vmatpush1.msra.mxu0 0.0
    %4195 = vmatprep.subr.mxu0 0.0
    %4196 = vmatpush1.msra.mxu0 0.0
    %4197 = vmatprep.subr.mxu0 0.0
    %4198 = vmatpush1.msra.mxu0 0.0
    %4199 = vmatprep.subr.mxu0 0.0
    %4200 = vmatpush1.msra.mxu0 %v4168
    %4201 = vmatprep.subr.mxu0 0.0
    %4202 = vmatpush1.msra.mxu0 %v4167
    %4203 = vmatprep.subr.mxu0 0.0
    %4204 = vmatpush1.msra.mxu0 %v4166
    %4205 = vmatprep.subr.mxu0 0.0
    %4206 = vmatpush1.msra.mxu0 %v4165
    %4207 = vmatprep.subr.mxu0 0.0
    %4208 = vmatpush1.msra.mxu0 %v4164
    %4209 = vmatprep.subr.mxu0 0.0
    %4210 = vmatpush1.msra.mxu0 %v4163
    %4211 = vmatprep.subr.mxu0 0.0
    %4212 = vmatpush1.msra.mxu0 %v4162
    %4213 = vmatprep.subr.mxu0 0.0
    %4214 = vmatpush1.msra.mxu0 %v4161
    %4215 = vmatprep.subr.mxu0 0.0
    %4216 = vmatpush2.msra.mxu0 0.0
    %4217 = vmatprep.subr.mxu0 0.0
    %4218 = vmatpush2.msra.mxu0 0.0
    %4219 = vmatprep.subr.mxu0 0.0
    %4220 = vmatpush2.msra.mxu0 0.0
    %4221 = vmatprep.subr.mxu0 0.0
    %4222 = vmatpush2.msra.mxu0 0.0
    %4223 = vmatprep.subr.mxu0 0.0
    %4224 = vmatpush2.msra.mxu0 0.0
    %4225 = vmatprep.subr.mxu0 0.0
    %4226 = vmatpush2.msra.mxu0 0.0
    %4227 = vmatprep.subr.mxu0 0.0
    %4228 = vmatpush2.msra.mxu0 0.0
    %4229 = vmatprep.subr.mxu0 0.0
    %4230 = vmatpush2.msra.mxu0 0.0
    %4231 = vmatprep.subr.mxu0 0.0
    %4232 = vmatpush2.msra.mxu0 0.0
    %4233 = vmatprep.subr.mxu0 0.0
    %4234 = vmatpush2.msra.mxu0 0.0
    %4235 = vmatprep.subr.mxu0 0.0
    %4236 = vmatpush2.msra.mxu0 0.0
    %4237 = vmatprep.subr.mxu0 0.0
    %4238 = vmatpush2.msra.mxu0 0.0
    %4239 = vmatprep.subr.mxu0 0.0
    %4240 = vmatpush2.msra.mxu0 0.0
    %4241 = vmatprep.subr.mxu0 0.0
    %4242 = vmatpush2.msra.mxu0 0.0
    %4243 = vmatprep.subr.mxu0 0.0
    %4244 = vmatpush2.msra.mxu0 0.0
    %4245 = vmatprep.subr.mxu0 0.0
    %4246 = vmatpush2.msra.mxu0 0.0
    %4247 = vmatprep.mubr.f32.mxu0 0.0
    %4248 = vmatmul.mubr.f32.gmra.mxu0 %v4178
    %v4249 = vpop.f32.mrf.mxu0
    %v4250 = vadd.f32 %v4175, %v4249
    %v4251 = vpop.f32.mrf.mxu0
    %4252 = vmatprep.mubr.f32.mxu0 0.0
    %4253 = vmatmul.mubr.f32.gmra.mxu0 %v4181
    %v4254 = vpop.f32.mrf.mxu0
    %v4255 = vadd.f32 %v4175, %v4254
    %v4256 = vpop.f32.mrf.mxu0
    %4257 = vdwg.mxu0
    %v4258 = vadd.f32 %v4062, %v4250
    %v4259 = vadd.f32 %v4063, %v4255
    %v4260 = vsel %vm322, %v4258, 0.0
    %4261 = vadd.xlane.f32.xlu0 %v4260
    %v4262 = vpop.xlane.xlu0 %4261
    %v4263 = vsel %vm322, %v4259, 0.0
    %4264 = vadd.xlane.f32.xlu0 %v4263
    %v4265 = vpop.xlane.xlu0 %4264
    %v4266 = vmul.f32 %v4262, %v2028
    %v4267 = vmul.f32 %v4265, %v2028
    %v4268 = vsub.f32 %v4258, %v4266
    %v4269 = vsub.f32 %v4259, %v4267
    %v4270 = vmul.f32 %v4268, %v4268
    %v4271 = vmul.f32 %v4269, %v4269
    %v4272 = vsel %vm322, %v4270, 0.0
    %4273 = vadd.xlane.f32.xlu0 %v4272
    %v4274 = vpop.xlane.xlu0 %4273
    %v4275 = vsel %vm322, %v4271, 0.0
    %4276 = vadd.xlane.f32.xlu0 %v4275
    %v4277 = vpop.xlane.xlu0 %4276
    %v4278 = vmul.f32 %v4274, %v2028
    %v4279 = vmul.f32 %v4277, %v2028
    %v4280 = vadd.f32 %v4278, 1e-05
    %v4281 = vadd.f32 %v4279, 1e-05
    %v4282 = vrsqrt.pop %v4280
    %v4283 = vrsqrt.pop %v4281
    %v4284 = vmul.f32 %v4268, %v4282
    %v4285 = vmul.f32 %v4269, %v4283
    %s4286 = scalar_lea.vmem [#allocation18], 1
    %v4287 = vld [vmem:[%s4286] sm:$0x1]
    %v4289 = vlaneseq
    %v4290 = vshrl.u32 %v4289, 7
    %v4291 = vsub.s32 0, %v4290
    %v4292 = vrot.slane %v4287, %v4291
    %v4294 = vmul.f32 %v4284, %v4292
    %v4295 = vmul.f32 %v4285, %v4292
    %s4296 = scalar_lea.vmem [#allocation20], 1
    %v4297 = vld [vmem:[%s4296] sm:$0x1]
    %v4299 = vlaneseq
    %v4300 = vshrl.u32 %v4299, 7
    %v4301 = vsub.s32 0, %v4300
    %v4302 = vrot.slane %v4297, %v4301
    %v4304 = vadd.f32 %v4294, %v4302
    %v4305 = vadd.f32 %v4295, %v4302
    %v4306 = vld [vmem:[%s18] sm:$0xff]
    %v4307 = vld [vmem:[%s18 + $0x8] sm:$0xff]
    %v4308 = vld [vmem:[%s18 + $0x10] sm:$0xff]
    %v4309 = vld [vmem:[%s18 + $0x18] sm:$0xff]
    %v4310 = vld [vmem:[#allocation26] sm:$0x1]
    %v4312 = vlaneseq
    %v4313 = vshrl.u32 %v4312, 7
    %v4314 = vsub.s32 0, %v4313
    %v4315 = vrot.slane %v4310, %v4314
    %v4318 = vsel %vm322, %v4304, 0
    %v4321 = vsel %vm322, %v4305, 0
    %4323 = vmatprep.subr.mxu0 0.0
    %4324 = vmatpush1.msra.mxu0 0.0
    %4325 = vmatprep.subr.mxu0 0.0
    %4326 = vmatpush1.msra.mxu0 0.0
    %4327 = vmatprep.subr.mxu0 0.0
    %4328 = vmatpush1.msra.mxu0 0.0
    %4329 = vmatprep.subr.mxu0 0.0
    %4330 = vmatpush1.msra.mxu0 0.0
    %4331 = vmatprep.subr.mxu0 0.0
    %4332 = vmatpush1.msra.mxu0 0.0
    %4333 = vmatprep.subr.mxu0 0.0
    %4334 = vmatpush1.msra.mxu0 0.0
    %4335 = vmatprep.subr.mxu0 0.0
    %4336 = vmatpush1.msra.mxu0 0.0
    %4337 = vmatprep.subr.mxu0 0.0
    %4338 = vmatpush1.msra.mxu0 0.0
    %4339 = vmatprep.subr.mxu0 0.0
    %4340 = vmatpush1.msra.mxu0 0.0
    %4341 = vmatprep.subr.mxu0 0.0
    %4342 = vmatpush1.msra.mxu0 0.0
    %4343 = vmatprep.subr.mxu0 0.0
    %4344 = vmatpush1.msra.mxu0 0.0
    %4345 = vmatprep.subr.mxu0 0.0
    %4346 = vmatpush1.msra.mxu0 0.0
    %4347 = vmatprep.subr.mxu0 0.0
    %4348 = vmatpush1.msra.mxu0 %v4309
    %4349 = vmatprep.subr.mxu0 0.0
    %4350 = vmatpush1.msra.mxu0 %v4308
    %4351 = vmatprep.subr.mxu0 0.0
    %4352 = vmatpush1.msra.mxu0 %v4307
    %4353 = vmatprep.subr.mxu0 0.0
    %4354 = vmatpush1.msra.mxu0 %v4306
    %4355 = vmatprep.subr.mxu0 0.0
    %4356 = vmatpush2.msra.mxu0 0.0
    %4357 = vmatprep.subr.mxu0 0.0
    %4358 = vmatpush2.msra.mxu0 0.0
    %4359 = vmatprep.subr.mxu0 0.0
    %4360 = vmatpush2.msra.mxu0 0.0
    %4361 = vmatprep.subr.mxu0 0.0
    %4362 = vmatpush2.msra.mxu0 0.0
    %4363 = vmatprep.subr.mxu0 0.0
    %4364 = vmatpush2.msra.mxu0 0.0
    %4365 = vmatprep.subr.mxu0 0.0
    %4366 = vmatpush2.msra.mxu0 0.0
    %4367 = vmatprep.subr.mxu0 0.0
    %4368 = vmatpush2.msra.mxu0 0.0
    %4369 = vmatprep.subr.mxu0 0.0
    %4370 = vmatpush2.msra.mxu0 0.0
    %4371 = vmatprep.subr.mxu0 0.0
    %4372 = vmatpush2.msra.mxu0 0.0
    %4373 = vmatprep.subr.mxu0 0.0
    %4374 = vmatpush2.msra.mxu0 0.0
    %4375 = vmatprep.subr.mxu0 0.0
    %4376 = vmatpush2.msra.mxu0 0.0
    %4377 = vmatprep.subr.mxu0 0.0
    %4378 = vmatpush2.msra.mxu0 0.0
    %4379 = vmatprep.subr.mxu0 0.0
    %4380 = vmatpush2.msra.mxu0 0.0
    %4381 = vmatprep.subr.mxu0 0.0
    %4382 = vmatpush2.msra.mxu0 0.0
    %4383 = vmatprep.subr.mxu0 0.0
    %4384 = vmatpush2.msra.mxu0 0.0
    %4385 = vmatprep.subr.mxu0 0.0
    %4386 = vmatpush2.msra.mxu0 0.0
    %4387 = vmatprep.mubr.f32.mxu0 0.0
    %4388 = vmatmul.mubr.f32.gmra.mxu0 %v4318
    %v4389 = vpop.f32.mrf.mxu0
    %v4390 = vadd.f32 %v4315, %v4389
    %v4391 = vpop.f32.mrf.mxu0
    %4392 = vmatprep.mubr.f32.mxu0 0.0
    %4393 = vmatmul.mubr.f32.gmra.mxu0 %v4321
    %v4394 = vpop.f32.mrf.mxu0
    %v4395 = vadd.f32 %v4315, %v4394
    %v4396 = vpop.f32.mrf.mxu0
    %4397 = vdwg.mxu0
    %4398 = vmax.xlane.f32.xlu0 %v4390
    %v4399 = vpop.xlane.xlu0 %4398
    %4400 = vmax.xlane.f32.xlu0 %v4395
    %v4401 = vpop.xlane.xlu0 %4400
    %v4402 = vsub.f32 %v4390, %v4399
    %v4403 = vsub.f32 %v4395, %v4401
    %v4404 = vmul.f32 %v4402, 1.442695
    %v4405 = vpow.pop %v4404
    %v4406 = vmul.f32 %v4403, 1.442695
    %v4407 = vpow.pop %v4406
    %4408 = vadd.xlane.f32.xlu0 %v4405
    %v4409 = vpop.xlane.xlu0 %4408
    %4410 = vadd.xlane.f32.xlu0 %v4407
    %v4411 = vpop.xlane.xlu0 %4410
    %v4412 = vlog2.pop %v4409
    %v4413 = vmul.f32 %v4412, 0.6931472
    %v4414 = vlog2.pop %v4411
    %v4415 = vmul.f32 %v4414, 0.6931472
    %v4416 = vsub.f32 %v4402, %v4413
    %v4417 = vsub.f32 %v4403, %v4415
    %4418 = vst [vmem:[#allocation27] sm:$0xff] %v4416
    %4419 = vst [vmem:[#allocation27 + $0x8] sm:$0xff] %v4417
    // Predicated region
    $region142: #{tpu_custom_call.1} parent=1 // pred_check
      _
    $region143: #{tpu_custom_call.1} parent=1 // pred_check_branch
      %4421 = sbr.rel (0) target = $region145
    $region144: #{tpu_custom_call.1} parent=1 // pred_region
      %s4423 = ssub.s32 256, 256
      %4424 = vsyncadd [#allocation5], %s4423
      %s4425 = sshll.u32 [#allocation27], 4
      %s4426 = int_to_ptr.vmem [resolvable:$true] %s4425
      %4431 = dma.vmem_to_hbm [thread:$0]  %s4426, 256, %s20, [#allocation5], 128, 128, 8
    $region145: #{tpu_custom_call.1} parent=1 // pred_fallthru
      _
    // Predicated region
    $region146: #{tpu_custom_call.1} parent=1 // pred_check
      _
    $region147: #{tpu_custom_call.1} parent=1 // pred_check_branch
      %4433 = sbr.rel (0) target = $region149
    $region148: #{tpu_custom_call.1} parent=1 // pred_region
      %4434 = dma.done [#allocation5], 256
    $region149: #{tpu_custom_call.1} parent=1 // pred_fallthru
      _
    %4435 = vsyncpa [#allocation4], 1
    %4436 = vsyncpa [#allocation7], 1
    %4437 = vsyncpa [#allocation10], 1
    %4438 = vsyncpa [#allocation13], 1
    %4439 = vsyncpa [#allocation16], 1
    %4440 = vsyncpa [#allocation19], 1
    %4441 = vsyncpa [#allocation22], 1
    %4442 = vsyncpa [#allocation25], 1
    %4443 = vsyncpa [#allocation5], 1

</llo_original>
